<compile_context>
chip_gen: v7x
topology: tpu7x:2x2x1
jax: 0.10.0
libtpu: 0.0.40
codegen_flags: <defaults>
</compile_context>

<pallas_src>
import functools

import jax
import jax.numpy as jnp
from jax.experimental import pallas as pl
from jax.experimental.pallas import tpu as pltpu


# ----------------------------- kernel ---------------------------------------

def _fused_kernel(x_ref, w1_ref, s1_ref, t1_ref, w2_ref, s2_ref, t2_ref,
                  w3_ref, s3_ref, t3_ref, w4_ref, b4_ref,
                  o_ref, pooled_ref, *, n_points):
    b = pl.program_id(0)
    n = pl.program_id(1)
    tn = x_ref.shape[1]
    nb = pooled_ref.shape[0]

    @pl.when(jnp.logical_and(b == 0, n == 0))
    def _init():
        pooled_ref[...] = jnp.full(pooled_ref.shape, -jnp.inf, jnp.float32)

    # relu(bn1(conv1)) -> relu(bn2(conv2)) on a (TN, F) tile of batch b.
    x = x_ref[0]                                                # (TN, F) bf16
    h1 = jnp.dot(x, w1_ref[...], preferred_element_type=jnp.float32)
    h1 = jnp.maximum(h1 * s1_ref[...] + t1_ref[...], 0.0)      # (TN, 1024) f32
    h2 = jnp.dot(h1.astype(jnp.bfloat16), w2_ref[...],
                 preferred_element_type=jnp.float32)
    h2 = jnp.maximum(h2 * s2_ref[...] + t2_ref[...], 0.0)      # (TN, 256) f32

    # Mask rows past the true point count (only matters when N % TN != 0),
    # then fold this tile's max into the per-batch running max.
    row = n * tn + jax.lax.broadcasted_iota(jnp.int32, (tn, 1), 0)
    h2 = jnp.where(row < n_points, h2, -jnp.inf)
    tile_max = jnp.max(h2, axis=0, keepdims=True)               # (1, 256)

    batch_row = jax.lax.broadcasted_iota(jnp.int32, (nb, 1), 0)
    pooled = pooled_ref[...]
    pooled_ref[...] = jnp.where(batch_row == b,
                                jnp.maximum(pooled, tile_max), pooled)

    # Fused head on the pooled features, once, at the last grid step.
    @pl.when(jnp.logical_and(b == pl.num_programs(0) - 1,
                             n == pl.num_programs(1) - 1))
    def _head():
        g = pooled_ref[...].astype(jnp.bfloat16)                 # (B, 256)
        h3 = jnp.dot(g, w3_ref[...], preferred_element_type=jnp.float32)
        h3 = jnp.maximum(h3 * s3_ref[...] + t3_ref[...], 0.0)
        # TODO(synk): Dropout(0.2) is the identity in eval mode; train-mode
        # masking would use pltpu.prng_random_bits.
        o_ref[...] = (jnp.dot(h3.astype(jnp.bfloat16), w4_ref[...],
                              preferred_element_type=jnp.float32)
                      + b4_ref[...])                             # (B, Kp)


# ------------------------- parameter preparation -----------------------------

def _fold_bn(conv_bias, gamma, beta, mean, var, eps=1e-5):
    s = gamma / jnp.sqrt(var + eps)
    t = (conv_bias - mean) * s + beta
    return s, t


def prepare_params(raw):
    """One-time prep (outside the hot path): fold BN, cast weights to bf16,
    pad the head's output channels to a 128-lane multiple."""
    s1, t1 = _fold_bn(raw["b1"], *raw["bn1"])
    s2, t2 = _fold_bn(raw["b2"], *raw["bn2"])
    s3, t3 = _fold_bn(raw["b3"], *raw["bn3"])

    k = raw["w4"].shape[1]
    kp = ((k + 127) // 128) * 128
    w4 = jnp.pad(raw["w4"], ((0, 0), (0, kp - k)))
    b4 = jnp.pad(raw["b4"], (0, kp - k))

    f32, bf16 = jnp.float32, jnp.bfloat16
    return dict(
        w1=raw["w1"].astype(bf16), w2=raw["w2"].astype(bf16),
        w3=raw["w3"].astype(bf16), w4=w4.astype(bf16),
        s1=s1.reshape(1, -1).astype(f32), t1=t1.reshape(1, -1).astype(f32),
        s2=s2.reshape(1, -1).astype(f32), t2=t2.reshape(1, -1).astype(f32),
        s3=s3.reshape(1, -1).astype(f32), t3=t3.reshape(1, -1).astype(f32),
        b4=b4.reshape(1, -1).astype(f32),
    )


# ----------------------------- forward ---------------------------------------

@functools.partial(jax.jit, static_argnames=("k",))
def rot_red_forward(x_bcn, pp, *, k):
    """x_bcn: (B, F, N) float32 — same layout as the PyTorch module input."""
    B, F, N = x_bcn.shape
    C1 = pp["w1"].shape[1]          # 1024
    C2 = pp["w2"].shape[1]          # 256
    C3 = pp["w3"].shape[1]          # 256
    KP = pp["w4"].shape[1]          # k padded up to 128 lanes

    # Channels-last + bf16 for the MXU; the F reduction dim is NOT padded.
    x = jnp.transpose(x_bcn, (0, 2, 1)).astype(jnp.bfloat16)    # (B, N, F)

    TN = N if N <= 512 else 512     # N tile: keeps VMEM modest on v7x
    n_tiles = pl.cdiv(N, TN)

    const = lambda b, n: (0, 0)     # constant-index blocks: DMA'd once

    out = pl.pallas_call(
        functools.partial(_fused_kernel, n_points=N),
        out_shape=jax.ShapeDtypeStruct((B, KP), jnp.float32),
        grid_spec=pltpu.PrefetchScalarGridSpec(
            num_scalar_prefetch=0,
            grid=(B, n_tiles),
            in_specs=[
                pl.BlockSpec((1, TN, F), lambda b, n: (b, n, 0)),
                pl.BlockSpec((F, C1), const),
                pl.BlockSpec((1, C1), const),
                pl.BlockSpec((1, C1), const),
                pl.BlockSpec((C1, C2), const),
                pl.BlockSpec((1, C2), const),
                pl.BlockSpec((1, C2), const),
                pl.BlockSpec((C2, C3), const),
                pl.BlockSpec((1, C3), const),
                pl.BlockSpec((1, C3), const),
                pl.BlockSpec((C3, KP), const),
                pl.BlockSpec((1, KP), const),
            ],
            out_specs=pl.BlockSpec((B, KP), const),
            scratch_shapes=[pltpu.VMEM((B, C2), jnp.float32)],   # pooled max
        ),
        compiler_params=pltpu.CompilerParams(
            # Sequential on one core: the kernel is weight-DMA bound, so
            # sharding a tiny B across TensorCores would duplicate the
            # dominant w1 transfer (v7x review note).
            dimension_semantics=("arbitrary", "arbitrary"),
            vmem_limit_bytes=32 << 20,
        ),
    )(x, pp["w1"], pp["s1"], pp["t1"], pp["w2"], pp["s2"], pp["t2"],
      pp["w3"], pp["s3"], pp["t3"], pp["w4"], pp["b4"])

    return out[:, :k]                                            # (B, k) f32


# ----------------------------- test setup ------------------------------------

def init_params(key, F=1036, k=24):
    """Deterministic synthetic parameters matching Rot_red(k, F).__init__."""
    ks = jax.random.split(key, 16)

    def conv_w(kk, cin, cout, scale=0.02):
        # PyTorch Conv1d weight is (cout, cin, 1); we store the transposed
        # (cin, cout) matrix used for right-multiplication.
        return scale * jax.random.normal(kk, (cin, cout), jnp.float32)

    def bn(kk, c):
        k_g, k_b, k_m, k_v = jax.random.split(kk, 4)
        gamma = 1.0 + 0.1 * jax.random.normal(k_g, (c,), jnp.float32)
        beta = 0.1 * jax.random.normal(k_b, (c,), jnp.float32)
        mean = 0.1 * jax.random.normal(k_m, (c,), jnp.float32)
        var = 0.5 + jnp.abs(jax.random.normal(k_v, (c,), jnp.float32))
        return gamma, beta, mean, var

    return dict(
        w1=conv_w(ks[0], F, 1024), b1=0.01 * jax.random.normal(ks[1], (1024,)),
        w2=conv_w(ks[2], 1024, 256), b2=0.01 * jax.random.normal(ks[3], (256,)),
        w3=conv_w(ks[4], 256, 256), b3=0.01 * jax.random.normal(ks[5], (256,)),
        w4=conv_w(ks[6], 256, k), b4=0.01 * jax.random.normal(ks[7], (k,)),
        bn1=bn(ks[8], 1024), bn2=bn(ks[9], 256), bn3=bn(ks[10], 256),
    )


if __name__ == "__main__":
    key = jax.random.PRNGKey(0)
    k_x, k_p = jax.random.split(key)

    B, F, N, K = 2, 1036, 16, 24            # module-default F/k, small points
    x = jax.random.normal(k_x, (B, F, N), jnp.float32)   # PyTorch layout (B, C, N)
    raw = init_params(k_p, F=F, k=K)
    pp = prepare_params(raw)                # one-time: BN fold, bf16, pad head

    out = jax.block_until_ready(rot_red_forward(x, pp, k=K))
    assert out.shape == (B, K) and out.dtype == jnp.float32
    print("KERNEL_OK")
</pallas_src>

<mosaic_0001>
module attributes {stable_mosaic.version = 11 : i64} {
  func.func @_fused_kernel(%arg0: i32, %arg1: i32, %arg2: memref<1x16x1036xbf16, #tpu.memory_space<vmem>>, %arg3: memref<1036x1024xbf16, #tpu.memory_space<vmem>>, %arg4: memref<1x1024xf32, #tpu.memory_space<vmem>>, %arg5: memref<1x1024xf32, #tpu.memory_space<vmem>>, %arg6: memref<1024x256xbf16, #tpu.memory_space<vmem>>, %arg7: memref<1x256xf32, #tpu.memory_space<vmem>>, %arg8: memref<1x256xf32, #tpu.memory_space<vmem>>, %arg9: memref<256x256xbf16, #tpu.memory_space<vmem>>, %arg10: memref<1x256xf32, #tpu.memory_space<vmem>>, %arg11: memref<1x256xf32, #tpu.memory_space<vmem>>, %arg12: memref<256x128xbf16, #tpu.memory_space<vmem>>, %arg13: memref<1x128xf32, #tpu.memory_space<vmem>>, %arg14: memref<2x128xf32, #tpu.memory_space<vmem>>, %arg15: memref<2x256xf32, #tpu.memory_space<vmem>>) attributes {dimension_semantics = [#tpu.dimension_semantics<arbitrary>, #tpu.dimension_semantics<arbitrary>], iteration_bounds = array<i64: 2, 1>, scalar_prefetch = 0 : i64, scratch_operands = 1 : i64, tpu.core_type = #tpu.core_type<tc>, window_params = [{transform_indices = @transform_0, window_bounds = array<i64: 1, 16, 1036>}, {pipeline_mode = #tpu.pipeline_mode<synchronous>, transform_indices = @transform_1, window_bounds = array<i64: 1036, 1024>}, {pipeline_mode = #tpu.pipeline_mode<synchronous>, transform_indices = @transform_2, window_bounds = array<i64: 1, 1024>}, {pipeline_mode = #tpu.pipeline_mode<synchronous>, transform_indices = @transform_3, window_bounds = array<i64: 1, 1024>}, {pipeline_mode = #tpu.pipeline_mode<synchronous>, transform_indices = @transform_4, window_bounds = array<i64: 1024, 256>}, {pipeline_mode = #tpu.pipeline_mode<synchronous>, transform_indices = @transform_5, window_bounds = array<i64: 1, 256>}, {pipeline_mode = #tpu.pipeline_mode<synchronous>, transform_indices = @transform_6, window_bounds = array<i64: 1, 256>}, {pipeline_mode = #tpu.pipeline_mode<synchronous>, transform_indices = @transform_7, window_bounds = array<i64: 256, 256>}, {pipeline_mode = #tpu.pipeline_mode<synchronous>, transform_indices = @transform_8, window_bounds = array<i64: 1, 256>}, {pipeline_mode = #tpu.pipeline_mode<synchronous>, transform_indices = @transform_9, window_bounds = array<i64: 1, 256>}, {pipeline_mode = #tpu.pipeline_mode<synchronous>, transform_indices = @transform_10, window_bounds = array<i64: 256, 128>}, {pipeline_mode = #tpu.pipeline_mode<synchronous>, transform_indices = @transform_11, window_bounds = array<i64: 1, 128>}, {pipeline_mode = #tpu.pipeline_mode<synchronous>, transform_indices = @transform_12, window_bounds = array<i64: 2, 128>}]} {
    %c0_i32 = arith.constant 0 : i32
    %0 = arith.cmpi eq, %arg0, %c0_i32 : i32
    %c0_i32_0 = arith.constant 0 : i32
    %1 = arith.cmpi eq, %arg1, %c0_i32_0 : i32
    %2 = arith.andi %0, %1 : i1
    %3 = arith.extui %2 : i1 to i32
    %c0_i32_1 = arith.constant 0 : i32
    %4 = arith.cmpi ne, %3, %c0_i32_1 : i32
    scf.if %4 {
      %cst_28 = arith.constant 0xFF800000 : f32
      %55 = vector.broadcast %cst_28 : f32 to vector<2x256xf32>
      %c0_29 = arith.constant 0 : index
      %c0_30 = arith.constant 0 : index
      %56 = vector.load %arg15[%c0_29, %c0_30] : memref<2x256xf32, #tpu.memory_space<vmem>>, vector<2x256xf32>
      tpu.vector_store %arg15[%c0_29, %c0_30], %55 {strides = array<i32>} : memref<2x256xf32, #tpu.memory_space<vmem>>, vector<2x256xf32>,
    } else {
    }
    %c0 = arith.constant 0 : index
    %c0_2 = arith.constant 0 : index
    %c0_3 = arith.constant 0 : index
    %5 = vector.load %arg2[%c0, %c0_2, %c0_3] : memref<1x16x1036xbf16, #tpu.memory_space<vmem>>, vector<1x16x1036xbf16>
    %6 = vector.shape_cast %5 : vector<1x16x1036xbf16> to vector<16x1036xbf16>
    %c0_4 = arith.constant 0 : index
    %c0_5 = arith.constant 0 : index
    %7 = vector.load %arg3[%c0_4, %c0_5] : memref<1036x1024xbf16, #tpu.memory_space<vmem>>, vector<1036x1024xbf16>
    %cst = arith.constant dense<0.000000e+00> : vector<16x1024xf32>
    %8 = tpu.matmul %6, %7, %cst {dimension_numbers = #tpu.dot_dimension_numbers<[1], [0], [0], [1], [0, 0, 1, 1], [], []>} : vector<16x1036xbf16>, vector<1036x1024xbf16>, vector<16x1024xf32> -> vector<16x1024xf32>
    %c0_6 = arith.constant 0 : index
    %c0_7 = arith.constant 0 : index
    %9 = vector.load %arg4[%c0_6, %c0_7] : memref<1x1024xf32, #tpu.memory_space<vmem>>, vector<1x1024xf32>
    %10 = vector.broadcast %9 : vector<1x1024xf32> to vector<16x1024xf32>
    %11 = arith.mulf %8, %10 : vector<16x1024xf32>
    %c0_8 = arith.constant 0 : index
    %c0_9 = arith.constant 0 : index
    %12 = vector.load %arg5[%c0_8, %c0_9] : memref<1x1024xf32, #tpu.memory_space<vmem>>, vector<1x1024xf32>
    %13 = vector.broadcast %12 : vector<1x1024xf32> to vector<16x1024xf32>
    %14 = arith.addf %11, %13 : vector<16x1024xf32>
    %cst_10 = arith.constant 0.000000e+00 : f32
    %15 = vector.broadcast %cst_10 : f32 to vector<16x1024xf32>
    %16 = arith.maximumf %14, %15 : vector<16x1024xf32>
    %17 = arith.truncf %16 : vector<16x1024xf32> to vector<16x1024xbf16>
    %c0_11 = arith.constant 0 : index
    %c0_12 = arith.constant 0 : index
    %18 = vector.load %arg6[%c0_11, %c0_12] : memref<1024x256xbf16, #tpu.memory_space<vmem>>, vector<1024x256xbf16>
    %cst_13 = arith.constant dense<0.000000e+00> : vector<16x256xf32>
    %19 = tpu.matmul %17, %18, %cst_13 {dimension_numbers = #tpu.dot_dimension_numbers<[1], [0], [0], [1], [0, 0, 1, 1], [], []>} : vector<16x1024xbf16>, vector<1024x256xbf16>, vector<16x256xf32> -> vector<16x256xf32>
    %c0_14 = arith.constant 0 : index
    %c0_15 = arith.constant 0 : index
    %20 = vector.load %arg7[%c0_14, %c0_15] : memref<1x256xf32, #tpu.memory_space<vmem>>, vector<1x256xf32>
    %21 = vector.broadcast %20 : vector<1x256xf32> to vector<16x256xf32>
    %22 = arith.mulf %19, %21 : vector<16x256xf32>
    %c0_16 = arith.constant 0 : index
    %c0_17 = arith.constant 0 : index
    %23 = vector.load %arg8[%c0_16, %c0_17] : memref<1x256xf32, #tpu.memory_space<vmem>>, vector<1x256xf32>
    %24 = vector.broadcast %23 : vector<1x256xf32> to vector<16x256xf32>
    %25 = arith.addf %22, %24 : vector<16x256xf32>
    %cst_18 = arith.constant 0.000000e+00 : f32
    %26 = vector.broadcast %cst_18 : f32 to vector<16x256xf32>
    %27 = arith.maximumf %25, %26 : vector<16x256xf32>
    %c16_i32 = arith.constant 16 : i32
    %28 = arith.muli %arg1, %c16_i32 : i32
    %29 = tpu.iota {dimensions = array<i32: 0>} : vector<16x1xi32>
    %30 = vector.broadcast %28 : i32 to vector<16x1xi32>
    %31 = arith.addi %30, %29 : vector<16x1xi32>
    %c16_i32_19 = arith.constant 16 : i32
    %32 = vector.broadcast %c16_i32_19 : i32 to vector<16x1xi32>
    %33 = arith.cmpi slt, %31, %32 : vector<16x1xi32>
    %cst_20 = arith.constant 0xFF800000 : f32
    %34 = vector.shape_cast %33 : vector<16x1xi1> to vector<16x1xi1>
    %35 = vector.broadcast %34 : vector<16x1xi1> to vector<16x256xi1>
    %36 = vector.broadcast %cst_20 : f32 to vector<16x256xf32>
    %37 = arith.select %35, %27, %36 : vector<16x256xi1>, vector<16x256xf32>
    %cst_21 = arith.constant dense<0xFF800000> : vector<256xf32>
    %38 = vector.multi_reduction <maximumf>, %37, %cst_21 [0] : vector<16x256xf32> to vector<256xf32>
    %39 = vector.shape_cast %38 : vector<256xf32> to vector<1x256xf32>
    %40 = tpu.iota {dimensions = array<i32: 0>} : vector<2x1xi32>
    %c0_22 = arith.constant 0 : index
    %c0_23 = arith.constant 0 : index
    %41 = vector.load %arg15[%c0_22, %c0_23] : memref<2x256xf32, #tpu.memory_space<vmem>>, vector<2x256xf32>
    %42 = vector.broadcast %arg0 : i32 to vector<2x1xi32>
    %43 = arith.cmpi eq, %40, %42 : vector<2x1xi32>
    %44 = vector.broadcast %39 : vector<1x256xf32> to vector<2x256xf32>
    %45 = arith.maximumf %41, %44 : vector<2x256xf32>
    %46 = vector.shape_cast %43 : vector<2x1xi1> to vector<2x1xi1>
    %47 = vector.broadcast %46 : vector<2x1xi1> to vector<2x256xi1>
    %48 = arith.select %47, %45, %41 : vector<2x256xi1>, vector<2x256xf32>
    %c0_24 = arith.constant 0 : index
    %c0_25 = arith.constant 0 : index
    %49 = vector.load %arg15[%c0_24, %c0_25] : memref<2x256xf32, #tpu.memory_space<vmem>>, vector<2x256xf32>
    tpu.vector_store %arg15[%c0_24, %c0_25], %48 {strides = array<i32>} : memref<2x256xf32, #tpu.memory_space<vmem>>, vector<2x256xf32>,
    %c1_i32 = arith.constant 1 : i32
    %50 = arith.cmpi eq, %arg0, %c1_i32 : i32
    %c0_i32_26 = arith.constant 0 : i32
    %51 = arith.cmpi eq, %arg1, %c0_i32_26 : i32
    %52 = arith.andi %50, %51 : i1
    %53 = arith.extui %52 : i1 to i32
    %c0_i32_27 = arith.constant 0 : i32
    %54 = arith.cmpi ne, %53, %c0_i32_27 : i32
    scf.if %54 {
      %c0_28 = arith.constant 0 : index
      %c0_29 = arith.constant 0 : index
      %55 = vector.load %arg15[%c0_28, %c0_29] : memref<2x256xf32, #tpu.memory_space<vmem>>, vector<2x256xf32>
      %56 = arith.truncf %55 : vector<2x256xf32> to vector<2x256xbf16>
      %c0_30 = arith.constant 0 : index
      %c0_31 = arith.constant 0 : index
      %57 = vector.load %arg9[%c0_30, %c0_31] : memref<256x256xbf16, #tpu.memory_space<vmem>>, vector<256x256xbf16>
      %cst_32 = arith.constant dense<0.000000e+00> : vector<2x256xf32>
      %58 = tpu.matmul %56, %57, %cst_32 {dimension_numbers = #tpu.dot_dimension_numbers<[1], [0], [0], [1], [0, 0, 1, 1], [], []>} : vector<2x256xbf16>, vector<256x256xbf16>, vector<2x256xf32> -> vector<2x256xf32>
      %c0_33 = arith.constant 0 : index
      %c0_34 = arith.constant 0 : index
      %59 = vector.load %arg10[%c0_33, %c0_34] : memref<1x256xf32, #tpu.memory_space<vmem>>, vector<1x256xf32>
      %60 = vector.broadcast %59 : vector<1x256xf32> to vector<2x256xf32>
      %61 = arith.mulf %58, %60 : vector<2x256xf32>
      %c0_35 = arith.constant 0 : index
      %c0_36 = arith.constant 0 : index
      %62 = vector.load %arg11[%c0_35, %c0_36] : memref<1x256xf32, #tpu.memory_space<vmem>>, vector<1x256xf32>
      %63 = vector.broadcast %62 : vector<1x256xf32> to vector<2x256xf32>
      %64 = arith.addf %61, %63 : vector<2x256xf32>
      %cst_37 = arith.constant 0.000000e+00 : f32
      %65 = vector.broadcast %cst_37 : f32 to vector<2x256xf32>
      %66 = arith.maximumf %64, %65 : vector<2x256xf32>
      %67 = arith.truncf %66 : vector<2x256xf32> to vector<2x256xbf16>
      %c0_38 = arith.constant 0 : index
      %c0_39 = arith.constant 0 : index
      %68 = vector.load %arg12[%c0_38, %c0_39] : memref<256x128xbf16, #tpu.memory_space<vmem>>, vector<256x128xbf16>
      %cst_40 = arith.constant dense<0.000000e+00> : vector<2x128xf32>
      %69 = tpu.matmul %67, %68, %cst_40 {dimension_numbers = #tpu.dot_dimension_numbers<[1], [0], [0], [1], [0, 0, 1, 1], [], []>} : vector<2x256xbf16>, vector<256x128xbf16>, vector<2x128xf32> -> vector<2x128xf32>
      %c0_41 = arith.constant 0 : index
      %c0_42 = arith.constant 0 : index
      %70 = vector.load %arg13[%c0_41, %c0_42] : memref<1x128xf32, #tpu.memory_space<vmem>>, vector<1x128xf32>
      %71 = vector.broadcast %70 : vector<1x128xf32> to vector<2x128xf32>
      %72 = arith.addf %69, %71 : vector<2x128xf32>
      %c0_43 = arith.constant 0 : index
      %c0_44 = arith.constant 0 : index
      %73 = vector.load %arg14[%c0_43, %c0_44] : memref<2x128xf32, #tpu.memory_space<vmem>>, vector<2x128xf32>
      tpu.vector_store %arg14[%c0_43, %c0_44], %72 {strides = array<i32>} : memref<2x128xf32, #tpu.memory_space<vmem>>, vector<2x128xf32>,
    } else {
    }
    return
  }
  func.func @transform_0(%arg0: i32, %arg1: i32) -> (i32, i32, i32) {
    %c0_i32 = arith.constant 0 : i32
    %c0_i32_0 = arith.constant 0 : i32
    return %arg0, %arg1, %c0_i32 : i32, i32, i32
  }
  func.func @transform_1(%arg0: i32, %arg1: i32) -> (i32, i32) {
    %c0_i32 = arith.constant 0 : i32
    %c0_i32_0 = arith.constant 0 : i32
    %c0_i32_1 = arith.constant 0 : i32
    return %c0_i32, %c0_i32_0 : i32, i32
  }
  func.func @transform_2(%arg0: i32, %arg1: i32) -> (i32, i32) {
    %c0_i32 = arith.constant 0 : i32
    %c0_i32_0 = arith.constant 0 : i32
    %c0_i32_1 = arith.constant 0 : i32
    return %c0_i32, %c0_i32_0 : i32, i32
  }
  func.func @transform_3(%arg0: i32, %arg1: i32) -> (i32, i32) {
    %c0_i32 = arith.constant 0 : i32
    %c0_i32_0 = arith.constant 0 : i32
    %c0_i32_1 = arith.constant 0 : i32
    return %c0_i32, %c0_i32_0 : i32, i32
  }
  func.func @transform_4(%arg0: i32, %arg1: i32) -> (i32, i32) {
    %c0_i32 = arith.constant 0 : i32
    %c0_i32_0 = arith.constant 0 : i32
    %c0_i32_1 = arith.constant 0 : i32
    return %c0_i32, %c0_i32_0 : i32, i32
  }
  func.func @transform_5(%arg0: i32, %arg1: i32) -> (i32, i32) {
    %c0_i32 = arith.constant 0 : i32
    %c0_i32_0 = arith.constant 0 : i32
    %c0_i32_1 = arith.constant 0 : i32
    return %c0_i32, %c0_i32_0 : i32, i32
  }
  func.func @transform_6(%arg0: i32, %arg1: i32) -> (i32, i32) {
    %c0_i32 = arith.constant 0 : i32
    %c0_i32_0 = arith.constant 0 : i32
    %c0_i32_1 = arith.constant 0 : i32
    return %c0_i32, %c0_i32_0 : i32, i32
  }
  func.func @transform_7(%arg0: i32, %arg1: i32) -> (i32, i32) {
    %c0_i32 = arith.constant 0 : i32
    %c0_i32_0 = arith.constant 0 : i32
    %c0_i32_1 = arith.constant 0 : i32
    return %c0_i32, %c0_i32_0 : i32, i32
  }
  func.func @transform_8(%arg0: i32, %arg1: i32) -> (i32, i32) {
    %c0_i32 = arith.constant 0 : i32
    %c0_i32_0 = arith.constant 0 : i32
    %c0_i32_1 = arith.constant 0 : i32
    return %c0_i32, %c0_i32_0 : i32, i32
  }
  func.func @transform_9(%arg0: i32, %arg1: i32) -> (i32, i32) {
    %c0_i32 = arith.constant 0 : i32
    %c0_i32_0 = arith.constant 0 : i32
    %c0_i32_1 = arith.constant 0 : i32
    return %c0_i32, %c0_i32_0 : i32, i32
  }
  func.func @transform_10(%arg0: i32, %arg1: i32) -> (i32, i32) {
    %c0_i32 = arith.constant 0 : i32
    %c0_i32_0 = arith.constant 0 : i32
    %c0_i32_1 = arith.constant 0 : i32
    return %c0_i32, %c0_i32_0 : i32, i32
  }
  func.func @transform_11(%arg0: i32, %arg1: i32) -> (i32, i32) {
    %c0_i32 = arith.constant 0 : i32
    %c0_i32_0 = arith.constant 0 : i32
    %c0_i32_1 = arith.constant 0 : i32
    return %c0_i32, %c0_i32_0 : i32, i32
  }
  func.func @transform_12(%arg0: i32, %arg1: i32) -> (i32, i32) {
    %c0_i32 = arith.constant 0 : i32
    %c0_i32_0 = arith.constant 0 : i32
    %c0_i32_1 = arith.constant 0 : i32
    return %c0_i32, %c0_i32_0 : i32, i32
  }
}

</mosaic_0001>

<llo_original>
// kernel: rot_red_forward.1
$region0: #{rot_red_forward.1}
  #allocation0 [shape = 'u32[]', space=smem, size = 0x4, offset = 0x4, fixed_abs, tag = 'smem constant byte address 0x4 - core index']
  #allocation1 [shape = 'u32[144,128]{1,0:T(1,128)}', space=vmem, size = 0x12000, scoped, tag = 'internal scratch']
  #allocation2 [shape = 'f32[2,256]{1,0:T(2,128)}', space=vmem, size = 0x800, scoped, tag = 'scratch operand']
  %s0 = inlined_call_operand.vmem [shape: bf16[2,16,1036], index: 0, kind: input, shape index: {}]
  %s1 = inlined_call_operand.hbm [shape: bf16[1036,1024], index: 1, kind: input, shape index: {}]
  %s2 = inlined_call_operand.hbm [shape: f32[1,1024], index: 2, kind: input, shape index: {}]
  %s3 = inlined_call_operand.hbm [shape: f32[1,1024], index: 3, kind: input, shape index: {}]
  %s4 = inlined_call_operand.hbm [shape: bf16[1024,256], index: 4, kind: input, shape index: {}]
  %s5 = inlined_call_operand.hbm [shape: f32[1,256], index: 5, kind: input, shape index: {}]
  %s6 = inlined_call_operand.hbm [shape: f32[1,256], index: 6, kind: input, shape index: {}]
  %s7 = inlined_call_operand.hbm [shape: bf16[256,256], index: 7, kind: input, shape index: {}]
  %s8 = inlined_call_operand.hbm [shape: f32[1,256], index: 8, kind: input, shape index: {}]
  %s9 = inlined_call_operand.hbm [shape: f32[1,256], index: 9, kind: input, shape index: {}]
  %s10 = inlined_call_operand.hbm [shape: bf16[256,128], index: 10, kind: input, shape index: {}]
  %s11 = inlined_call_operand.hbm [shape: f32[1,128], index: 11, kind: input, shape index: {}]
  %s12 = inlined_call_operand.hbm [shape: f32[2,128], index: 12, kind: output, shape index: {}]
  %s13 = sld [smem:[#allocation0]]
  $region133: #{rot_red_forward.1} parent=0
    _
  %s15 = ssub.s32 1, %s13
  %s16 = scalar_select 0, %s15, %s13
  $region1: #{rot_red_forward.1} parent=0
    #allocation3 [shape = 'u8[2129920]{0}', space=vmem, size = 0x208000, scoped, tag = 'input window, operand 1, single buffered']
    #allocation4 [shape = 's32[2]{0}', space=sflag, size = 0x8, scoped, tag = 'scoped memory for rot_red_forward.1']
    #allocation5 [shape = 's32[2]{0}', space=sflag, size = 0x8, scoped, tag = 'scoped memory for rot_red_forward.1']
    #allocation6 [shape = 'u8[4096]{0}', space=vmem, size = 0x1000, scoped, tag = 'input window, operand 2, single buffered']
    #allocation7 [shape = 's32[1]{0}', space=sflag, size = 0x4, scoped, tag = 'scoped memory for rot_red_forward.1']
    #allocation8 [shape = 'u8[4096]{0}', space=vmem, size = 0x1000, scoped, tag = 'input window, operand 3, single buffered']
    #allocation9 [shape = 'u8[524288]{0}', space=vmem, size = 0x80000, scoped, tag = 'input window, operand 4, single buffered']
    #allocation10 [shape = 's32[1]{0}', space=sflag, size = 0x4, scoped, tag = 'scoped memory for rot_red_forward.1']
    #allocation11 [shape = 'u8[1024]{0}', space=vmem, size = 0x400, scoped, tag = 'input window, operand 5, single buffered']
    #allocation12 [shape = 'u8[1024]{0}', space=vmem, size = 0x400, scoped, tag = 'input window, operand 6, single buffered']
    #allocation13 [shape = 's32[1]{0}', space=sflag, size = 0x4, scoped, tag = 'scoped memory for rot_red_forward.1']
    #allocation14 [shape = 'u8[131072]{0}', space=vmem, size = 0x20000, scoped, tag = 'input window, operand 7, single buffered']
    #allocation15 [shape = 'u8[1024]{0}', space=vmem, size = 0x400, scoped, tag = 'input window, operand 8, single buffered']
    #allocation16 [shape = 's32[1]{0}', space=sflag, size = 0x4, scoped, tag = 'scoped memory for rot_red_forward.1']
    #allocation17 [shape = 'u8[1024]{0}', space=vmem, size = 0x400, scoped, tag = 'input window, operand 9, single buffered']
    #allocation18 [shape = 'u8[65536]{0}', space=vmem, size = 0x10000, scoped, tag = 'input window, operand 10, single buffered']
    #allocation19 [shape = 's32[1]{0}', space=sflag, size = 0x4, scoped, tag = 'scoped memory for rot_red_forward.1']
    #allocation20 [shape = 'u8[512]{0}', space=vmem, size = 0x400, scoped, tag = 'input window, operand 11, single buffered']
    #allocation21 [shape = 'u8[1024]{0}', space=vmem, size = 0x400, scoped, tag = 'output window, operand 0, single buffered']
    %17 = vsyncpa [#allocation4], 0
    %18 = vsyncpa [#allocation7], 0
    %19 = vsyncpa [#allocation10], 0
    %20 = vsyncpa [#allocation13], 0
    %21 = vsyncpa [#allocation16], 0
    %22 = vsyncpa [#allocation19], 0
    %23 = vsyncpa [#allocation5], 0
    loop: start=0, step=1, limit=4
    $region2: #{rot_red_forward.1} parent=1 // loop_pre_header
      _
    $region3: #{rot_red_forward.1} parent=1 // loop_header
      %s25 = sphi 0, %s29
      %p26 = scmp.ge.s32.totalorder %s25, 4
      %s32 = sphi 0, %s44
      %s33 = sphi 0, %s40
      %s34 = sphi 0, %s32
      %s35 = sphi 0, %s33
      %s36 = sphi 0, %s34
      %s37 = sphi 0, %s35
      %s49 = sphi 0, %s51
      %s52 = sphi 0, %s49
      %s53 = sphi 0, %s52
      %s69 = sphi 0, %s53
      %s73 = sphi 0, %s73
      %s75 = sphi 0, %s73
      %s76 = sphi 0, %s75
      %s90 = sphi 0, %s76
      %s94 = sphi 0, %s94
      %s96 = sphi 0, %s94
      %s97 = sphi 0, %s96
      %s111 = sphi 0, %s97
      %s115 = sphi 0, %s115
      %s117 = sphi 0, %s115
      %s118 = sphi 0, %s117
      %s132 = sphi 0, %s118
      %s136 = sphi 0, %s136
      %s138 = sphi 0, %s136
      %s139 = sphi 0, %s138
      %s153 = sphi 0, %s139
      %s157 = sphi 0, %s157
      %s159 = sphi 0, %s157
      %s160 = sphi 0, %s159
      %s174 = sphi 0, %s160
      %s178 = sphi 0, %s178
      %s180 = sphi 0, %s178
      %s181 = sphi 0, %s180
      %s195 = sphi 0, %s181
      %s199 = sphi 0, %s199
      %s201 = sphi 0, %s199
      %s202 = sphi 0, %s201
      %s216 = sphi 0, %s202
      %s220 = sphi 0, %s220
      %s222 = sphi 0, %s220
      %s223 = sphi 0, %s222
      %s237 = sphi 0, %s223
      %s241 = sphi 0, %s241
      %s243 = sphi 0, %s241
      %s244 = sphi 0, %s243
      %s258 = sphi 0, %s244
      %s262 = sphi 0, %s262
      %s264 = sphi 0, %s262
      %s265 = sphi 0, %s264
      %s279 = sphi 0, %s265
      %s283 = sphi 0, %s283
      %s285 = sphi 0, %s283
      %s286 = sphi 0, %s285
      %s300 = sphi 0, %s286
      %s304 = sphi 0, %s304
      %s306 = sphi 0, %s304
      %s307 = sphi 0, %s306
      %s321 = sphi 0, %s307
    $region4: #{rot_red_forward.1} parent=1 // loop_header_branch
      %28 = sbr.rel (%p26) target = $region8
    $region5: #{rot_red_forward.1} parent=1 // loop_body
      %s30 = ssub.s32 %s25, 1
      %s31 = ssub.s32 %s25, 2
      %s38 = sadd.s32 1, %s33
      %p39 = scmp.ge.s32.totalorder %s38, 1
      %s40 = scalar_select %p39, 0, %s38
      %s41 = sadd.s32 1, %s32
      %s42 = scalar_select %p39, %s41, %s32
      %p43 = scmp.ge.s32.totalorder %s42, 2
      %s44 = scalar_select %p43, 0, %s42
      %s45 = ssub.s32 %s32, %s44
      %s46 = ssub.s32 %s33, %s40
      %s47 = sor.u32 %s45, %s46
      %p48 = scmp.eq.s32.totalorder %s47, 0
      %s50 = sadd.s32 %s49, 1
      %s51 = scalar_select %p48, %s49, %s50
      %p54 = pneg %p48
      %p55 = scmp.eq.s32.totalorder %s25, 1
      %p56 = por %p54, %p55
      %p57 = scmp.ne.s32.totalorder %s49, %s52
      %p58 = scmp.eq.s32.totalorder %s25, 0
      %p59 = por %p57, %p58
      %p60 = scmp.ne.s32.totalorder %s49, %s52
      %p61 = scmp.eq.s32.totalorder %s30, 1
      %p62 = por %p60, %p61
      %p63 = scmp.ne.s32.totalorder %s52, %s53
      %p64 = scmp.eq.s32.totalorder %s30, 0
      %p65 = por %p63, %p64
      %p66 = scmp.ne.s32.totalorder %s52, %s53
      %p67 = scmp.eq.s32.totalorder %s31, 1
      %p68 = por %p66, %p67
      %p70 = scmp.ne.s32.totalorder %s53, %s69
      %p71 = scmp.eq.s32.totalorder %s31, 0
      %p72 = por %p70, %p71
      %s74 = sadd.s32 %s73, 1
      %p77 = scmp.eq.s32.totalorder %s25, 1
      %p78 = scmp.ne.s32.totalorder %s73, %s75
      %p79 = scmp.eq.s32.totalorder %s25, 0
      %p80 = por %p78, %p79
      %p81 = scmp.ne.s32.totalorder %s73, %s75
      %p82 = scmp.eq.s32.totalorder %s30, 1
      %p83 = por %p81, %p82
      %p84 = scmp.ne.s32.totalorder %s75, %s76
      %p85 = scmp.eq.s32.totalorder %s30, 0
      %p86 = por %p84, %p85
      %p87 = scmp.ne.s32.totalorder %s75, %s76
      %p88 = scmp.eq.s32.totalorder %s31, 1
      %p89 = por %p87, %p88
      %p91 = scmp.ne.s32.totalorder %s76, %s90
      %p92 = scmp.eq.s32.totalorder %s31, 0
      %p93 = por %p91, %p92
      %s95 = sadd.s32 %s94, 1
      %p98 = scmp.eq.s32.totalorder %s25, 1
      %p99 = scmp.ne.s32.totalorder %s94, %s96
      %p100 = scmp.eq.s32.totalorder %s25, 0
      %p101 = por %p99, %p100
      %p102 = scmp.ne.s32.totalorder %s94, %s96
      %p103 = scmp.eq.s32.totalorder %s30, 1
      %p104 = por %p102, %p103
      %p105 = scmp.ne.s32.totalorder %s96, %s97
      %p106 = scmp.eq.s32.totalorder %s30, 0
      %p107 = por %p105, %p106
      %p108 = scmp.ne.s32.totalorder %s96, %s97
      %p109 = scmp.eq.s32.totalorder %s31, 1
      %p110 = por %p108, %p109
      %p112 = scmp.ne.s32.totalorder %s97, %s111
      %p113 = scmp.eq.s32.totalorder %s31, 0
      %p114 = por %p112, %p113
      %s116 = sadd.s32 %s115, 1
      %p119 = scmp.eq.s32.totalorder %s25, 1
      %p120 = scmp.ne.s32.totalorder %s115, %s117
      %p121 = scmp.eq.s32.totalorder %s25, 0
      %p122 = por %p120, %p121
      %p123 = scmp.ne.s32.totalorder %s115, %s117
      %p124 = scmp.eq.s32.totalorder %s30, 1
      %p125 = por %p123, %p124
      %p126 = scmp.ne.s32.totalorder %s117, %s118
      %p127 = scmp.eq.s32.totalorder %s30, 0
      %p128 = por %p126, %p127
      %p129 = scmp.ne.s32.totalorder %s117, %s118
      %p130 = scmp.eq.s32.totalorder %s31, 1
      %p131 = por %p129, %p130
      %p133 = scmp.ne.s32.totalorder %s118, %s132
      %p134 = scmp.eq.s32.totalorder %s31, 0
      %p135 = por %p133, %p134
      %s137 = sadd.s32 %s136, 1
      %p140 = scmp.eq.s32.totalorder %s25, 1
      %p141 = scmp.ne.s32.totalorder %s136, %s138
      %p142 = scmp.eq.s32.totalorder %s25, 0
      %p143 = por %p141, %p142
      %p144 = scmp.ne.s32.totalorder %s136, %s138
      %p145 = scmp.eq.s32.totalorder %s30, 1
      %p146 = por %p144, %p145
      %p147 = scmp.ne.s32.totalorder %s138, %s139
      %p148 = scmp.eq.s32.totalorder %s30, 0
      %p149 = por %p147, %p148
      %p150 = scmp.ne.s32.totalorder %s138, %s139
      %p151 = scmp.eq.s32.totalorder %s31, 1
      %p152 = por %p150, %p151
      %p154 = scmp.ne.s32.totalorder %s139, %s153
      %p155 = scmp.eq.s32.totalorder %s31, 0
      %p156 = por %p154, %p155
      %s158 = sadd.s32 %s157, 1
      %p161 = scmp.eq.s32.totalorder %s25, 1
      %p162 = scmp.ne.s32.totalorder %s157, %s159
      %p163 = scmp.eq.s32.totalorder %s25, 0
      %p164 = por %p162, %p163
      %p165 = scmp.ne.s32.totalorder %s157, %s159
      %p166 = scmp.eq.s32.totalorder %s30, 1
      %p167 = por %p165, %p166
      %p168 = scmp.ne.s32.totalorder %s159, %s160
      %p169 = scmp.eq.s32.totalorder %s30, 0
      %p170 = por %p168, %p169
      %p171 = scmp.ne.s32.totalorder %s159, %s160
      %p172 = scmp.eq.s32.totalorder %s31, 1
      %p173 = por %p171, %p172
      %p175 = scmp.ne.s32.totalorder %s160, %s174
      %p176 = scmp.eq.s32.totalorder %s31, 0
      %p177 = por %p175, %p176
      %s179 = sadd.s32 %s178, 1
      %p182 = scmp.eq.s32.totalorder %s25, 1
      %p183 = scmp.ne.s32.totalorder %s178, %s180
      %p184 = scmp.eq.s32.totalorder %s25, 0
      %p185 = por %p183, %p184
      %p186 = scmp.ne.s32.totalorder %s178, %s180
      %p187 = scmp.eq.s32.totalorder %s30, 1
      %p188 = por %p186, %p187
      %p189 = scmp.ne.s32.totalorder %s180, %s181
      %p190 = scmp.eq.s32.totalorder %s30, 0
      %p191 = por %p189, %p190
      %p192 = scmp.ne.s32.totalorder %s180, %s181
      %p193 = scmp.eq.s32.totalorder %s31, 1
      %p194 = por %p192, %p193
      %p196 = scmp.ne.s32.totalorder %s181, %s195
      %p197 = scmp.eq.s32.totalorder %s31, 0
      %p198 = por %p196, %p197
      %s200 = sadd.s32 %s199, 1
      %p203 = scmp.eq.s32.totalorder %s25, 1
      %p204 = scmp.ne.s32.totalorder %s199, %s201
      %p205 = scmp.eq.s32.totalorder %s25, 0
      %p206 = por %p204, %p205
      %p207 = scmp.ne.s32.totalorder %s199, %s201
      %p208 = scmp.eq.s32.totalorder %s30, 1
      %p209 = por %p207, %p208
      %p210 = scmp.ne.s32.totalorder %s201, %s202
      %p211 = scmp.eq.s32.totalorder %s30, 0
      %p212 = por %p210, %p211
      %p213 = scmp.ne.s32.totalorder %s201, %s202
      %p214 = scmp.eq.s32.totalorder %s31, 1
      %p215 = por %p213, %p214
      %p217 = scmp.ne.s32.totalorder %s202, %s216
      %p218 = scmp.eq.s32.totalorder %s31, 0
      %p219 = por %p217, %p218
      %s221 = sadd.s32 %s220, 1
      %p224 = scmp.eq.s32.totalorder %s25, 1
      %p225 = scmp.ne.s32.totalorder %s220, %s222
      %p226 = scmp.eq.s32.totalorder %s25, 0
      %p227 = por %p225, %p226
      %p228 = scmp.ne.s32.totalorder %s220, %s222
      %p229 = scmp.eq.s32.totalorder %s30, 1
      %p230 = por %p228, %p229
      %p231 = scmp.ne.s32.totalorder %s222, %s223
      %p232 = scmp.eq.s32.totalorder %s30, 0
      %p233 = por %p231, %p232
      %p234 = scmp.ne.s32.totalorder %s222, %s223
      %p235 = scmp.eq.s32.totalorder %s31, 1
      %p236 = por %p234, %p235
      %p238 = scmp.ne.s32.totalorder %s223, %s237
      %p239 = scmp.eq.s32.totalorder %s31, 0
      %p240 = por %p238, %p239
      %s242 = sadd.s32 %s241, 1
      %p245 = scmp.eq.s32.totalorder %s25, 1
      %p246 = scmp.ne.s32.totalorder %s241, %s243
      %p247 = scmp.eq.s32.totalorder %s25, 0
      %p248 = por %p246, %p247
      %p249 = scmp.ne.s32.totalorder %s241, %s243
      %p250 = scmp.eq.s32.totalorder %s30, 1
      %p251 = por %p249, %p250
      %p252 = scmp.ne.s32.totalorder %s243, %s244
      %p253 = scmp.eq.s32.totalorder %s30, 0
      %p254 = por %p252, %p253
      %p255 = scmp.ne.s32.totalorder %s243, %s244
      %p256 = scmp.eq.s32.totalorder %s31, 1
      %p257 = por %p255, %p256
      %p259 = scmp.ne.s32.totalorder %s244, %s258
      %p260 = scmp.eq.s32.totalorder %s31, 0
      %p261 = por %p259, %p260
      %s263 = sadd.s32 %s262, 1
      %p266 = scmp.eq.s32.totalorder %s25, 1
      %p267 = scmp.ne.s32.totalorder %s262, %s264
      %p268 = scmp.eq.s32.totalorder %s25, 0
      %p269 = por %p267, %p268
      %p270 = scmp.ne.s32.totalorder %s262, %s264
      %p271 = scmp.eq.s32.totalorder %s30, 1
      %p272 = por %p270, %p271
      %p273 = scmp.ne.s32.totalorder %s264, %s265
      %p274 = scmp.eq.s32.totalorder %s30, 0
      %p275 = por %p273, %p274
      %p276 = scmp.ne.s32.totalorder %s264, %s265
      %p277 = scmp.eq.s32.totalorder %s31, 1
      %p278 = por %p276, %p277
      %p280 = scmp.ne.s32.totalorder %s265, %s279
      %p281 = scmp.eq.s32.totalorder %s31, 0
      %p282 = por %p280, %p281
      %s284 = sadd.s32 %s283, 1
      %p287 = scmp.eq.s32.totalorder %s25, 1
      %p288 = scmp.ne.s32.totalorder %s283, %s285
      %p289 = scmp.eq.s32.totalorder %s25, 0
      %p290 = por %p288, %p289
      %p291 = scmp.ne.s32.totalorder %s283, %s285
      %p292 = scmp.eq.s32.totalorder %s30, 1
      %p293 = por %p291, %p292
      %p294 = scmp.ne.s32.totalorder %s285, %s286
      %p295 = scmp.eq.s32.totalorder %s30, 0
      %p296 = por %p294, %p295
      %p297 = scmp.ne.s32.totalorder %s285, %s286
      %p298 = scmp.eq.s32.totalorder %s31, 1
      %p299 = por %p297, %p298
      %p301 = scmp.ne.s32.totalorder %s286, %s300
      %p302 = scmp.eq.s32.totalorder %s31, 0
      %p303 = por %p301, %p302
      %s305 = sadd.s32 %s304, 1
      %p308 = scmp.eq.s32.totalorder %s25, 1
      %p309 = scmp.ne.s32.totalorder %s304, %s306
      %p310 = scmp.eq.s32.totalorder %s25, 0
      %p311 = por %p309, %p310
      %p312 = scmp.ne.s32.totalorder %s304, %s306
      %p313 = scmp.eq.s32.totalorder %s30, 1
      %p314 = por %p312, %p313
      %p315 = scmp.ne.s32.totalorder %s306, %s307
      %p316 = scmp.eq.s32.totalorder %s30, 0
      %p317 = por %p315, %p316
      %p318 = scmp.ne.s32.totalorder %s306, %s307
      %p319 = scmp.eq.s32.totalorder %s31, 1
      %p320 = por %p318, %p319
      %p322 = scmp.ne.s32.totalorder %s307, %s321
      %p323 = scmp.eq.s32.totalorder %s31, 0
      %p324 = por %p322, %p323
      %p325 = scmp.le.s32.totalorder 1, %s25
      %p326 = scmp.lt.s32.totalorder %s25, 3
      %p327 = pnand %p325, %p326
      %p328 = pneg %p327
      // Predicated region
      $region9: #{rot_red_forward.1} parent=5 // pred_check
        _
      $region10: #{rot_red_forward.1} parent=5 // pred_check_branch
        %330 = sbr.rel (%p327) target = $region12
      $region11: #{rot_red_forward.1} parent=5 // pred_region
        %s331 = ssub.s32 %s25, 1
        // Predicated region
        $region13: #{rot_red_forward.1} parent=11 // pred_check
          %p332 = pneg %p86
        $region14: #{rot_red_forward.1} parent=11 // pred_check_branch
          %334 = sbr.rel (%p332) target = $region16
        $region15: #{rot_red_forward.1} parent=11 // pred_region
          %s336 = ssub.s32 66560, 66560
          %337 = vsyncadd [#allocation4], %s336
          %s338 = sshll.u32 [#allocation3], 4
          %s339 = int_to_ptr.vmem [resolvable:$true] %s338
          %344 = dma.hbm_to_vmem [thread:$0]  %s1, 66560, %s339, [#allocation4], 512, 512, 32
        $region16: #{rot_red_forward.1} parent=11 // pred_fallthru
          _
        // Predicated region
        $region17: #{rot_red_forward.1} parent=11 // pred_check
          %p345 = pneg %p107
        $region18: #{rot_red_forward.1} parent=11 // pred_check_branch
          %347 = sbr.rel (%p345) target = $region20
        $region19: #{rot_red_forward.1} parent=11 // pred_region
          %s349 = ssub.s32 128, 128
          %350 = vsyncadd [#allocation7], %s349
          %s352 = sshll.u32 [#allocation6], 4
          %s353 = int_to_ptr.vmem [resolvable:$true] %s352
          %355 = dma.hbm_to_vmem [thread:$0]  %s2, 128, %s353, [#allocation7]
        $region20: #{rot_red_forward.1} parent=11 // pred_fallthru
          _
        // Predicated region
        $region21: #{rot_red_forward.1} parent=11 // pred_check
          %p356 = pneg %p128
        $region22: #{rot_red_forward.1} parent=11 // pred_check_branch
          %358 = sbr.rel (%p356) target = $region24
        $region23: #{rot_red_forward.1} parent=11 // pred_region
          %s360 = ssub.s32 128, 128
          %361 = vsyncadd [#allocation7], %s360
          %s363 = sshll.u32 [#allocation8], 4
          %s364 = int_to_ptr.vmem [resolvable:$true] %s363
          %366 = dma.hbm_to_vmem [thread:$0]  %s3, 128, %s364, [#allocation7]
        $region24: #{rot_red_forward.1} parent=11 // pred_fallthru
          _
        // Predicated region
        $region25: #{rot_red_forward.1} parent=11 // pred_check
          %p367 = pneg %p149
        $region26: #{rot_red_forward.1} parent=11 // pred_check_branch
          %369 = sbr.rel (%p367) target = $region28
        $region27: #{rot_red_forward.1} parent=11 // pred_region
          %s371 = ssub.s32 16384, 16384
          %372 = vsyncadd [#allocation10], %s371
          %s373 = sshll.u32 [#allocation9], 4
          %s374 = int_to_ptr.vmem [resolvable:$true] %s373
          %379 = dma.hbm_to_vmem [thread:$0]  %s4, 16384, %s374, [#allocation10], 128, 128, 8
        $region28: #{rot_red_forward.1} parent=11 // pred_fallthru
          _
        // Predicated region
        $region29: #{rot_red_forward.1} parent=11 // pred_check
          %p380 = pneg %p170
        $region30: #{rot_red_forward.1} parent=11 // pred_check_branch
          %382 = sbr.rel (%p380) target = $region32
        $region31: #{rot_red_forward.1} parent=11 // pred_region
          %s384 = ssub.s32 32, 32
          %385 = vsyncadd [#allocation10], %s384
          %s387 = sshll.u32 [#allocation11], 4
          %s388 = int_to_ptr.vmem [resolvable:$true] %s387
          %390 = dma.hbm_to_vmem [thread:$0]  %s5, 32, %s388, [#allocation10]
        $region32: #{rot_red_forward.1} parent=11 // pred_fallthru
          _
        // Predicated region
        $region33: #{rot_red_forward.1} parent=11 // pred_check
          %p391 = pneg %p191
        $region34: #{rot_red_forward.1} parent=11 // pred_check_branch
          %393 = sbr.rel (%p391) target = $region36
        $region35: #{rot_red_forward.1} parent=11 // pred_region
          %s395 = ssub.s32 32, 32
          %396 = vsyncadd [#allocation13], %s395
          %s398 = sshll.u32 [#allocation12], 4
          %s399 = int_to_ptr.vmem [resolvable:$true] %s398
          %401 = dma.hbm_to_vmem [thread:$0]  %s6, 32, %s399, [#allocation13]
        $region36: #{rot_red_forward.1} parent=11 // pred_fallthru
          _
        // Predicated region
        $region37: #{rot_red_forward.1} parent=11 // pred_check
          %p402 = pneg %p212
        $region38: #{rot_red_forward.1} parent=11 // pred_check_branch
          %404 = sbr.rel (%p402) target = $region40
        $region39: #{rot_red_forward.1} parent=11 // pred_region
          %s406 = ssub.s32 4096, 4096
          %407 = vsyncadd [#allocation13], %s406
          %s408 = sshll.u32 [#allocation14], 4
          %s409 = int_to_ptr.vmem [resolvable:$true] %s408
          %414 = dma.hbm_to_vmem [thread:$0]  %s7, 4096, %s409, [#allocation13], 128, 128, 8
        $region40: #{rot_red_forward.1} parent=11 // pred_fallthru
          _
        // Predicated region
        $region41: #{rot_red_forward.1} parent=11 // pred_check
          %p415 = pneg %p233
        $region42: #{rot_red_forward.1} parent=11 // pred_check_branch
          %417 = sbr.rel (%p415) target = $region44
        $region43: #{rot_red_forward.1} parent=11 // pred_region
          %s419 = ssub.s32 32, 32
          %420 = vsyncadd [#allocation16], %s419
          %s422 = sshll.u32 [#allocation15], 4
          %s423 = int_to_ptr.vmem [resolvable:$true] %s422
          %425 = dma.hbm_to_vmem [thread:$0]  %s8, 32, %s423, [#allocation16]
        $region44: #{rot_red_forward.1} parent=11 // pred_fallthru
          _
        // Predicated region
        $region45: #{rot_red_forward.1} parent=11 // pred_check
          %p426 = pneg %p254
        $region46: #{rot_red_forward.1} parent=11 // pred_check_branch
          %428 = sbr.rel (%p426) target = $region48
        $region47: #{rot_red_forward.1} parent=11 // pred_region
          %s430 = ssub.s32 32, 32
          %431 = vsyncadd [#allocation16], %s430
          %s433 = sshll.u32 [#allocation17], 4
          %s434 = int_to_ptr.vmem [resolvable:$true] %s433
          %436 = dma.hbm_to_vmem [thread:$0]  %s9, 32, %s434, [#allocation16]
        $region48: #{rot_red_forward.1} parent=11 // pred_fallthru
          _
        // Predicated region
        $region49: #{rot_red_forward.1} parent=11 // pred_check
          %p437 = pneg %p275
        $region50: #{rot_red_forward.1} parent=11 // pred_check_branch
          %439 = sbr.rel (%p437) target = $region52
        $region51: #{rot_red_forward.1} parent=11 // pred_region
          %s441 = ssub.s32 2048, 2048
          %442 = vsyncadd [#allocation19], %s441
          %s443 = sshll.u32 [#allocation18], 4
          %s444 = int_to_ptr.vmem [resolvable:$true] %s443
          %449 = dma.hbm_to_vmem [thread:$0]  %s10, 2048, %s444, [#allocation19], 64, 64, 4
        $region52: #{rot_red_forward.1} parent=11 // pred_fallthru
          _
        // Predicated region
        $region53: #{rot_red_forward.1} parent=11 // pred_check
          %p450 = pneg %p296
        $region54: #{rot_red_forward.1} parent=11 // pred_check_branch
          %452 = sbr.rel (%p450) target = $region56
        $region55: #{rot_red_forward.1} parent=11 // pred_region
          %s454 = ssub.s32 16, 16
          %455 = vsyncadd [#allocation19], %s454
          %s457 = sshll.u32 [#allocation20], 4
          %s458 = int_to_ptr.vmem [resolvable:$true] %s457
          %460 = dma.hbm_to_vmem [thread:$0]  %s11, 16, %s458, [#allocation19]
        $region56: #{rot_red_forward.1} parent=11 // pred_fallthru
          _
      $region12: #{rot_red_forward.1} parent=5 // pred_fallthru
        _
      %p461 = scmp.lt.s32.totalorder %s25, 2
      // Predicated region
      $region57: #{rot_red_forward.1} parent=5 // pred_check
        %p462 = pneg %p461
      $region58: #{rot_red_forward.1} parent=5 // pred_check_branch
        %464 = sbr.rel (%p462) target = $region60
      $region59: #{rot_red_forward.1} parent=5 // pred_region
        // Predicated region
        $region61: #{rot_red_forward.1} parent=59 // pred_check
          %p465 = pneg %p59
        $region62: #{rot_red_forward.1} parent=59 // pred_check_branch
          %467 = sbr.rel (%p465) target = $region64
        $region63: #{rot_red_forward.1} parent=59 // pred_region
          %s468 = smul.u32 2, %s33
          %p469 = scmp.lt.s32.totalorder %s32, 1
          %s470 = scalar_select %p469, %s32, 1
          %p471 = scmp.lt.s32.totalorder %s468, 1
          %s472 = scalar_select %p471, %s468, 1
          %s473 = smul.addr %s472, 9
          %s474 = smul.addr %s470, 18
          %s475 = sadd.s32 %s473, %s474
          %s476 = smul.addr %s475, 4
          %s477 = scalar_lea.vmem %s0, %s476
          %s478 = smul.u32 2, %s33
        $region64: #{rot_red_forward.1} parent=59 // pred_fallthru
          _
      $region60: #{rot_red_forward.1} parent=5 // pred_fallthru
        _
      %p479 = scmp.le.s32.totalorder 1, %s25
      %p480 = scmp.lt.s32.totalorder %s25, 3
      %p481 = pnand %p479, %p480
      %p482 = pneg %p481
      // Predicated region
      $region65: #{rot_red_forward.1} parent=5 // pred_check
        _
      $region66: #{rot_red_forward.1} parent=5 // pred_check_branch
        %484 = sbr.rel (%p481) target = $region68
      $region67: #{rot_red_forward.1} parent=5 // pred_region
        %s485 = ssub.s32 %s25, 1
        // Predicated region
        $region69: #{rot_red_forward.1} parent=67 // pred_check
          %p486 = pneg %p86
        $region70: #{rot_red_forward.1} parent=67 // pred_check_branch
          %488 = sbr.rel (%p486) target = $region72
        $region71: #{rot_red_forward.1} parent=67 // pred_region
          %489 = dma.done [#allocation4], 66560
        $region72: #{rot_red_forward.1} parent=67 // pred_fallthru
          _
        // Predicated region
        $region73: #{rot_red_forward.1} parent=67 // pred_check
          %p490 = pneg %p107
        $region74: #{rot_red_forward.1} parent=67 // pred_check_branch
          %492 = sbr.rel (%p490) target = $region76
        $region75: #{rot_red_forward.1} parent=67 // pred_region
          %493 = dma.done [#allocation7], 128
        $region76: #{rot_red_forward.1} parent=67 // pred_fallthru
          _
        // Predicated region
        $region77: #{rot_red_forward.1} parent=67 // pred_check
          %p494 = pneg %p128
        $region78: #{rot_red_forward.1} parent=67 // pred_check_branch
          %496 = sbr.rel (%p494) target = $region80
        $region79: #{rot_red_forward.1} parent=67 // pred_region
          %497 = dma.done [#allocation7], 128
        $region80: #{rot_red_forward.1} parent=67 // pred_fallthru
          _
        // Predicated region
        $region81: #{rot_red_forward.1} parent=67 // pred_check
          %p498 = pneg %p149
        $region82: #{rot_red_forward.1} parent=67 // pred_check_branch
          %500 = sbr.rel (%p498) target = $region84
        $region83: #{rot_red_forward.1} parent=67 // pred_region
          %501 = dma.done [#allocation10], 16384
        $region84: #{rot_red_forward.1} parent=67 // pred_fallthru
          _
        // Predicated region
        $region85: #{rot_red_forward.1} parent=67 // pred_check
          %p502 = pneg %p170
        $region86: #{rot_red_forward.1} parent=67 // pred_check_branch
          %504 = sbr.rel (%p502) target = $region88
        $region87: #{rot_red_forward.1} parent=67 // pred_region
          %505 = dma.done [#allocation10], 32
        $region88: #{rot_red_forward.1} parent=67 // pred_fallthru
          _
        // Predicated region
        $region89: #{rot_red_forward.1} parent=67 // pred_check
          %p506 = pneg %p191
        $region90: #{rot_red_forward.1} parent=67 // pred_check_branch
          %508 = sbr.rel (%p506) target = $region92
        $region91: #{rot_red_forward.1} parent=67 // pred_region
          %509 = dma.done [#allocation13], 32
        $region92: #{rot_red_forward.1} parent=67 // pred_fallthru
          _
        // Predicated region
        $region93: #{rot_red_forward.1} parent=67 // pred_check
          %p510 = pneg %p212
        $region94: #{rot_red_forward.1} parent=67 // pred_check_branch
          %512 = sbr.rel (%p510) target = $region96
        $region95: #{rot_red_forward.1} parent=67 // pred_region
          %513 = dma.done [#allocation13], 4096
        $region96: #{rot_red_forward.1} parent=67 // pred_fallthru
          _
        // Predicated region
        $region97: #{rot_red_forward.1} parent=67 // pred_check
          %p514 = pneg %p233
        $region98: #{rot_red_forward.1} parent=67 // pred_check_branch
          %516 = sbr.rel (%p514) target = $region100
        $region99: #{rot_red_forward.1} parent=67 // pred_region
          %517 = dma.done [#allocation16], 32
        $region100: #{rot_red_forward.1} parent=67 // pred_fallthru
          _
        // Predicated region
        $region101: #{rot_red_forward.1} parent=67 // pred_check
          %p518 = pneg %p254
        $region102: #{rot_red_forward.1} parent=67 // pred_check_branch
          %520 = sbr.rel (%p518) target = $region104
        $region103: #{rot_red_forward.1} parent=67 // pred_region
          %521 = dma.done [#allocation16], 32
        $region104: #{rot_red_forward.1} parent=67 // pred_fallthru
          _
        // Predicated region
        $region105: #{rot_red_forward.1} parent=67 // pred_check
          %p522 = pneg %p275
        $region106: #{rot_red_forward.1} parent=67 // pred_check_branch
          %524 = sbr.rel (%p522) target = $region108
        $region107: #{rot_red_forward.1} parent=67 // pred_region
          %525 = dma.done [#allocation19], 2048
        $region108: #{rot_red_forward.1} parent=67 // pred_fallthru
          _
        // Predicated region
        $region109: #{rot_red_forward.1} parent=67 // pred_check
          %p526 = pneg %p296
        $region110: #{rot_red_forward.1} parent=67 // pred_check_branch
          %528 = sbr.rel (%p526) target = $region112
        $region111: #{rot_red_forward.1} parent=67 // pred_region
          %529 = dma.done [#allocation19], 16
        $region112: #{rot_red_forward.1} parent=67 // pred_fallthru
          _
        %s530 = smul.u32 2, %s35
        %p531 = scmp.lt.s32.totalorder %s34, 1
        %s532 = scalar_select %p531, %s34, 1
        %p533 = scmp.lt.s32.totalorder %s530, 1
        %s534 = scalar_select %p533, %s530, 1
        %s535 = smul.addr %s534, 9
        %s536 = smul.addr %s532, 18
        %s537 = sadd.s32 %s535, %s536
        %s538 = smul.addr %s537, 4
        %s539 = scalar_lea.vmem %s0, %s538
        %p540 = pneg %p65
        %p541 = pneg %p62
        %p542 = pneg %p86
        %p543 = pneg %p83
        %p544 = pneg %p107
        %p545 = pneg %p104
        %p546 = pneg %p128
        %p547 = pneg %p125
        %p548 = pneg %p149
        %p549 = pneg %p146
        %p550 = pneg %p170
        %p551 = pneg %p167
        %p552 = pneg %p191
        %p553 = pneg %p188
        %p554 = pneg %p212
        %p555 = pneg %p209
        %p556 = pneg %p233
        %p557 = pneg %p230
        %p558 = pneg %p254
        %p559 = pneg %p251
        %p560 = pneg %p275
        %p561 = pneg %p272
        %p562 = pneg %p296
        %p563 = pneg %p293
        %p564 = pneg %p317
        %p565 = pneg %p314
        %s566 = smul.u32 2, %s35
        %p567 = scmp.lt.s32.totalorder %s34, 1
        %s568 = scalar_select %p567, %s34, 1
        %p569 = scmp.lt.s32.totalorder %s566, 1
        %s570 = scalar_select %p569, %s566, 1
        %s571 = smul.addr %s570, 9
        %s572 = smul.addr %s568, 18
        %s573 = sadd.s32 %s571, %s572
        %s574 = smul.addr %s573, 4
        %s575 = scalar_lea.vmem %s0, %s574
        %s576 = smul.u32 2, %s35
        %p578 = scmp.eq.s32.totalorder %s34, 0
        %p579 = scmp.eq.s32.totalorder %s35, 0
        %p580 = pnand %p578, %p579
        %p581 = pneg %p580
        // Predicated region
        $region113: #{rot_red_forward.1} parent=67 // pred_check
          _
        $region114: #{rot_red_forward.1} parent=67 // pred_check_branch
          %583 = sbr.rel (%p580) target = $region116
        $region115: #{rot_red_forward.1} parent=67 // pred_region
          %584 = vst [vmem:[#allocation2] sm:$0xf] -inf
        $region116: #{rot_red_forward.1} parent=67 // pred_fallthru
          _
        %v585 = vld [vmem:[%s575] sm:$0xff]
        %v586 = vld [vmem:[%s575 + $0x8] sm:$0xff]
        %v587 = vld [vmem:[%s575 + $0x10] sm:$0xff]
        %v588 = vld [vmem:[%s575 + $0x18] sm:$0xff]
        %v589 = vld [vmem:[%s575 + $0x20] sm:$0xf]
        %v590 = vld [vmem:[%s575 + $0x24] sm:$0xff]
        %v591 = vld [vmem:[%s575 + $0x2c] sm:$0xff]
        %v592 = vld [vmem:[%s575 + $0x34] sm:$0xff]
        %v593 = vld [vmem:[%s575 + $0x3c] sm:$0xff]
        %v594 = vld [vmem:[%s575 + $0x44] sm:$0xf]
        %v595 = vld [vmem:[#allocation3] sm:$0xff]
        %v596 = vld [vmem:[#allocation3 + $0x8] sm:$0xff]
        %v597 = vld [vmem:[#allocation3 + $0x10] sm:$0xff]
        %v598 = vld [vmem:[#allocation3 + $0x18] sm:$0xff]
        %v599 = vld [vmem:[#allocation3 + $0x20] sm:$0xff]
        %v600 = vld [vmem:[#allocation3 + $0x28] sm:$0xff]
        %v601 = vld [vmem:[#allocation3 + $0x30] sm:$0xff]
        %v602 = vld [vmem:[#allocation3 + $0x38] sm:$0xff]
        %v603 = vld [vmem:[#allocation3 + $0x40] sm:$0xff]
        %v604 = vld [vmem:[#allocation3 + $0x48] sm:$0xff]
        %v605 = vld [vmem:[#allocation3 + $0x50] sm:$0xff]
        %v606 = vld [vmem:[#allocation3 + $0x58] sm:$0xff]
        %v607 = vld [vmem:[#allocation3 + $0x60] sm:$0xff]
        %v608 = vld [vmem:[#allocation3 + $0x68] sm:$0xff]
        %v609 = vld [vmem:[#allocation3 + $0x70] sm:$0xff]
        %v610 = vld [vmem:[#allocation3 + $0x78] sm:$0xff]
        %v611 = vld [vmem:[#allocation3 + $0x80] sm:$0xff]
        %v612 = vld [vmem:[#allocation3 + $0x88] sm:$0xff]
        %v613 = vld [vmem:[#allocation3 + $0x90] sm:$0xff]
        %v614 = vld [vmem:[#allocation3 + $0x98] sm:$0xff]
        %v615 = vld [vmem:[#allocation3 + $0xa0] sm:$0xff]
        %v616 = vld [vmem:[#allocation3 + $0xa8] sm:$0xff]
        %v617 = vld [vmem:[#allocation3 + $0xb0] sm:$0xff]
        %v618 = vld [vmem:[#allocation3 + $0xb8] sm:$0xff]
        %v619 = vld [vmem:[#allocation3 + $0xc0] sm:$0xff]
        %v620 = vld [vmem:[#allocation3 + $0xc8] sm:$0xff]
        %v621 = vld [vmem:[#allocation3 + $0xd0] sm:$0xff]
        %v622 = vld [vmem:[#allocation3 + $0xd8] sm:$0xff]
        %v623 = vld [vmem:[#allocation3 + $0xe0] sm:$0xff]
        %v624 = vld [vmem:[#allocation3 + $0xe8] sm:$0xff]
        %v625 = vld [vmem:[#allocation3 + $0xf0] sm:$0xff]
        %v626 = vld [vmem:[#allocation3 + $0xf8] sm:$0xff]
        %v627 = vld [vmem:[#allocation3 + $0x100] sm:$0xff]
        %v628 = vld [vmem:[#allocation3 + $0x108] sm:$0xff]
        %v629 = vld [vmem:[#allocation3 + $0x110] sm:$0xff]
        %v630 = vld [vmem:[#allocation3 + $0x118] sm:$0xff]
        %v631 = vld [vmem:[#allocation3 + $0x120] sm:$0xff]
        %v632 = vld [vmem:[#allocation3 + $0x128] sm:$0xff]
        %v633 = vld [vmem:[#allocation3 + $0x130] sm:$0xff]
        %v634 = vld [vmem:[#allocation3 + $0x138] sm:$0xff]
        %v635 = vld [vmem:[#allocation3 + $0x140] sm:$0xff]
        %v636 = vld [vmem:[#allocation3 + $0x148] sm:$0xff]
        %v637 = vld [vmem:[#allocation3 + $0x150] sm:$0xff]
        %v638 = vld [vmem:[#allocation3 + $0x158] sm:$0xff]
        %v639 = vld [vmem:[#allocation3 + $0x160] sm:$0xff]
        %v640 = vld [vmem:[#allocation3 + $0x168] sm:$0xff]
        %v641 = vld [vmem:[#allocation3 + $0x170] sm:$0xff]
        %v642 = vld [vmem:[#allocation3 + $0x178] sm:$0xff]
        %v643 = vld [vmem:[#allocation3 + $0x180] sm:$0xff]
        %v644 = vld [vmem:[#allocation3 + $0x188] sm:$0xff]
        %v645 = vld [vmem:[#allocation3 + $0x190] sm:$0xff]
        %v646 = vld [vmem:[#allocation3 + $0x198] sm:$0xff]
        %v647 = vld [vmem:[#allocation3 + $0x1a0] sm:$0xff]
        %v648 = vld [vmem:[#allocation3 + $0x1a8] sm:$0xff]
        %v649 = vld [vmem:[#allocation3 + $0x1b0] sm:$0xff]
        %v650 = vld [vmem:[#allocation3 + $0x1b8] sm:$0xff]
        %v651 = vld [vmem:[#allocation3 + $0x1c0] sm:$0xff]
        %v652 = vld [vmem:[#allocation3 + $0x1c8] sm:$0xff]
        %v653 = vld [vmem:[#allocation3 + $0x1d0] sm:$0xff]
        %v654 = vld [vmem:[#allocation3 + $0x1d8] sm:$0xff]
        %v655 = vld [vmem:[#allocation3 + $0x1e0] sm:$0xff]
        %v656 = vld [vmem:[#allocation3 + $0x1e8] sm:$0xff]
        %v657 = vld [vmem:[#allocation3 + $0x1f0] sm:$0xff]
        %v658 = vld [vmem:[#allocation3 + $0x1f8] sm:$0xff]
        %v659 = vld [vmem:[#allocation3 + $0x200] sm:$0xff]
        %v660 = vld [vmem:[#allocation3 + $0x208] sm:$0xff]
        %v661 = vld [vmem:[#allocation3 + $0x210] sm:$0xff]
        %v662 = vld [vmem:[#allocation3 + $0x218] sm:$0xff]
        %v663 = vld [vmem:[#allocation3 + $0x220] sm:$0xff]
        %v664 = vld [vmem:[#allocation3 + $0x228] sm:$0xff]
        %v665 = vld [vmem:[#allocation3 + $0x230] sm:$0xff]
        %v666 = vld [vmem:[#allocation3 + $0x238] sm:$0xff]
        %v667 = vld [vmem:[#allocation3 + $0x240] sm:$0xff]
        %v668 = vld [vmem:[#allocation3 + $0x248] sm:$0xff]
        %v669 = vld [vmem:[#allocation3 + $0x250] sm:$0xff]
        %v670 = vld [vmem:[#allocation3 + $0x258] sm:$0xff]
        %v671 = vld [vmem:[#allocation3 + $0x260] sm:$0xff]
        %v672 = vld [vmem:[#allocation3 + $0x268] sm:$0xff]
        %v673 = vld [vmem:[#allocation3 + $0x270] sm:$0xff]
        %v674 = vld [vmem:[#allocation3 + $0x278] sm:$0xff]
        %v675 = vld [vmem:[#allocation3 + $0x280] sm:$0xff]
        %v676 = vld [vmem:[#allocation3 + $0x288] sm:$0xff]
        %v677 = vld [vmem:[#allocation3 + $0x290] sm:$0xff]
        %v678 = vld [vmem:[#allocation3 + $0x298] sm:$0xff]
        %v679 = vld [vmem:[#allocation3 + $0x2a0] sm:$0xff]
        %v680 = vld [vmem:[#allocation3 + $0x2a8] sm:$0xff]
        %v681 = vld [vmem:[#allocation3 + $0x2b0] sm:$0xff]
        %v682 = vld [vmem:[#allocation3 + $0x2b8] sm:$0xff]
        %v683 = vld [vmem:[#allocation3 + $0x2c0] sm:$0xff]
        %v684 = vld [vmem:[#allocation3 + $0x2c8] sm:$0xff]
        %v685 = vld [vmem:[#allocation3 + $0x2d0] sm:$0xff]
        %v686 = vld [vmem:[#allocation3 + $0x2d8] sm:$0xff]
        %v687 = vld [vmem:[#allocation3 + $0x2e0] sm:$0xff]
        %v688 = vld [vmem:[#allocation3 + $0x2e8] sm:$0xff]
        %v689 = vld [vmem:[#allocation3 + $0x2f0] sm:$0xff]
        %v690 = vld [vmem:[#allocation3 + $0x2f8] sm:$0xff]
        %v691 = vld [vmem:[#allocation3 + $0x300] sm:$0xff]
        %v692 = vld [vmem:[#allocation3 + $0x308] sm:$0xff]
        %v693 = vld [vmem:[#allocation3 + $0x310] sm:$0xff]
        %v694 = vld [vmem:[#allocation3 + $0x318] sm:$0xff]
        %v695 = vld [vmem:[#allocation3 + $0x320] sm:$0xff]
        %v696 = vld [vmem:[#allocation3 + $0x328] sm:$0xff]
        %v697 = vld [vmem:[#allocation3 + $0x330] sm:$0xff]
        %v698 = vld [vmem:[#allocation3 + $0x338] sm:$0xff]
        %v699 = vld [vmem:[#allocation3 + $0x340] sm:$0xff]
        %v700 = vld [vmem:[#allocation3 + $0x348] sm:$0xff]
        %v701 = vld [vmem:[#allocation3 + $0x350] sm:$0xff]
        %v702 = vld [vmem:[#allocation3 + $0x358] sm:$0xff]
        %v703 = vld [vmem:[#allocation3 + $0x360] sm:$0xff]
        %v704 = vld [vmem:[#allocation3 + $0x368] sm:$0xff]
        %v705 = vld [vmem:[#allocation3 + $0x370] sm:$0xff]
        %v706 = vld [vmem:[#allocation3 + $0x378] sm:$0xff]
        %v707 = vld [vmem:[#allocation3 + $0x380] sm:$0xff]
        %v708 = vld [vmem:[#allocation3 + $0x388] sm:$0xff]
        %v709 = vld [vmem:[#allocation3 + $0x390] sm:$0xff]
        %v710 = vld [vmem:[#allocation3 + $0x398] sm:$0xff]
        %v711 = vld [vmem:[#allocation3 + $0x3a0] sm:$0xff]
        %v712 = vld [vmem:[#allocation3 + $0x3a8] sm:$0xff]
        %v713 = vld [vmem:[#allocation3 + $0x3b0] sm:$0xff]
        %v714 = vld [vmem:[#allocation3 + $0x3b8] sm:$0xff]
        %v715 = vld [vmem:[#allocation3 + $0x3c0] sm:$0xff]
        %v716 = vld [vmem:[#allocation3 + $0x3c8] sm:$0xff]
        %v717 = vld [vmem:[#allocation3 + $0x3d0] sm:$0xff]
        %v718 = vld [vmem:[#allocation3 + $0x3d8] sm:$0xff]
        %v719 = vld [vmem:[#allocation3 + $0x3e0] sm:$0xff]
        %v720 = vld [vmem:[#allocation3 + $0x3e8] sm:$0xff]
        %v721 = vld [vmem:[#allocation3 + $0x3f0] sm:$0xff]
        %v722 = vld [vmem:[#allocation3 + $0x3f8] sm:$0xff]
        %v723 = vld [vmem:[#allocation3 + $0x400] sm:$0xff]
        %v724 = vld [vmem:[#allocation3 + $0x408] sm:$0xff]
        %v725 = vld [vmem:[#allocation3 + $0x410] sm:$0xff]
        %v726 = vld [vmem:[#allocation3 + $0x418] sm:$0xff]
        %v727 = vld [vmem:[#allocation3 + $0x420] sm:$0xff]
        %v728 = vld [vmem:[#allocation3 + $0x428] sm:$0xff]
        %v729 = vld [vmem:[#allocation3 + $0x430] sm:$0xff]
        %v730 = vld [vmem:[#allocation3 + $0x438] sm:$0xff]
        %v731 = vld [vmem:[#allocation3 + $0x440] sm:$0xff]
        %v732 = vld [vmem:[#allocation3 + $0x448] sm:$0xff]
        %v733 = vld [vmem:[#allocation3 + $0x450] sm:$0xff]
        %v734 = vld [vmem:[#allocation3 + $0x458] sm:$0xff]
        %v735 = vld [vmem:[#allocation3 + $0x460] sm:$0xff]
        %v736 = vld [vmem:[#allocation3 + $0x468] sm:$0xff]
        %v737 = vld [vmem:[#allocation3 + $0x470] sm:$0xff]
        %v738 = vld [vmem:[#allocation3 + $0x478] sm:$0xff]
        %v739 = vld [vmem:[#allocation3 + $0x480] sm:$0xff]
        %v740 = vld [vmem:[#allocation3 + $0x488] sm:$0xff]
        %v741 = vld [vmem:[#allocation3 + $0x490] sm:$0xff]
        %v742 = vld [vmem:[#allocation3 + $0x498] sm:$0xff]
        %v743 = vld [vmem:[#allocation3 + $0x4a0] sm:$0xff]
        %v744 = vld [vmem:[#allocation3 + $0x4a8] sm:$0xff]
        %v745 = vld [vmem:[#allocation3 + $0x4b0] sm:$0xff]
        %v746 = vld [vmem:[#allocation3 + $0x4b8] sm:$0xff]
        %v747 = vld [vmem:[#allocation3 + $0x4c0] sm:$0xff]
        %v748 = vld [vmem:[#allocation3 + $0x4c8] sm:$0xff]
        %v749 = vld [vmem:[#allocation3 + $0x4d0] sm:$0xff]
        %v750 = vld [vmem:[#allocation3 + $0x4d8] sm:$0xff]
        %v751 = vld [vmem:[#allocation3 + $0x4e0] sm:$0xff]
        %v752 = vld [vmem:[#allocation3 + $0x4e8] sm:$0xff]
        %v753 = vld [vmem:[#allocation3 + $0x4f0] sm:$0xff]
        %v754 = vld [vmem:[#allocation3 + $0x4f8] sm:$0xff]
        %v755 = vld [vmem:[#allocation3 + $0x500] sm:$0xff]
        %v756 = vld [vmem:[#allocation3 + $0x508] sm:$0xff]
        %v757 = vld [vmem:[#allocation3 + $0x510] sm:$0xff]
        %v758 = vld [vmem:[#allocation3 + $0x518] sm:$0xff]
        %v759 = vld [vmem:[#allocation3 + $0x520] sm:$0xff]
        %v760 = vld [vmem:[#allocation3 + $0x528] sm:$0xff]
        %v761 = vld [vmem:[#allocation3 + $0x530] sm:$0xff]
        %v762 = vld [vmem:[#allocation3 + $0x538] sm:$0xff]
        %v763 = vld [vmem:[#allocation3 + $0x540] sm:$0xff]
        %v764 = vld [vmem:[#allocation3 + $0x548] sm:$0xff]
        %v765 = vld [vmem:[#allocation3 + $0x550] sm:$0xff]
        %v766 = vld [vmem:[#allocation3 + $0x558] sm:$0xff]
        %v767 = vld [vmem:[#allocation3 + $0x560] sm:$0xff]
        %v768 = vld [vmem:[#allocation3 + $0x568] sm:$0xff]
        %v769 = vld [vmem:[#allocation3 + $0x570] sm:$0xff]
        %v770 = vld [vmem:[#allocation3 + $0x578] sm:$0xff]
        %v771 = vld [vmem:[#allocation3 + $0x580] sm:$0xff]
        %v772 = vld [vmem:[#allocation3 + $0x588] sm:$0xff]
        %v773 = vld [vmem:[#allocation3 + $0x590] sm:$0xff]
        %v774 = vld [vmem:[#allocation3 + $0x598] sm:$0xff]
        %v775 = vld [vmem:[#allocation3 + $0x5a0] sm:$0xff]
        %v776 = vld [vmem:[#allocation3 + $0x5a8] sm:$0xff]
        %v777 = vld [vmem:[#allocation3 + $0x5b0] sm:$0xff]
        %v778 = vld [vmem:[#allocation3 + $0x5b8] sm:$0xff]
        %v779 = vld [vmem:[#allocation3 + $0x5c0] sm:$0xff]
        %v780 = vld [vmem:[#allocation3 + $0x5c8] sm:$0xff]
        %v781 = vld [vmem:[#allocation3 + $0x5d0] sm:$0xff]
        %v782 = vld [vmem:[#allocation3 + $0x5d8] sm:$0xff]
        %v783 = vld [vmem:[#allocation3 + $0x5e0] sm:$0xff]
        %v784 = vld [vmem:[#allocation3 + $0x5e8] sm:$0xff]
        %v785 = vld [vmem:[#allocation3 + $0x5f0] sm:$0xff]
        %v786 = vld [vmem:[#allocation3 + $0x5f8] sm:$0xff]
        %v787 = vld [vmem:[#allocation3 + $0x600] sm:$0xff]
        %v788 = vld [vmem:[#allocation3 + $0x608] sm:$0xff]
        %v789 = vld [vmem:[#allocation3 + $0x610] sm:$0xff]
        %v790 = vld [vmem:[#allocation3 + $0x618] sm:$0xff]
        %v791 = vld [vmem:[#allocation3 + $0x620] sm:$0xff]
        %v792 = vld [vmem:[#allocation3 + $0x628] sm:$0xff]
        %v793 = vld [vmem:[#allocation3 + $0x630] sm:$0xff]
        %v794 = vld [vmem:[#allocation3 + $0x638] sm:$0xff]
        %v795 = vld [vmem:[#allocation3 + $0x640] sm:$0xff]
        %v796 = vld [vmem:[#allocation3 + $0x648] sm:$0xff]
        %v797 = vld [vmem:[#allocation3 + $0x650] sm:$0xff]
        %v798 = vld [vmem:[#allocation3 + $0x658] sm:$0xff]
        %v799 = vld [vmem:[#allocation3 + $0x660] sm:$0xff]
        %v800 = vld [vmem:[#allocation3 + $0x668] sm:$0xff]
        %v801 = vld [vmem:[#allocation3 + $0x670] sm:$0xff]
        %v802 = vld [vmem:[#allocation3 + $0x678] sm:$0xff]
        %v803 = vld [vmem:[#allocation3 + $0x680] sm:$0xff]
        %v804 = vld [vmem:[#allocation3 + $0x688] sm:$0xff]
        %v805 = vld [vmem:[#allocation3 + $0x690] sm:$0xff]
        %v806 = vld [vmem:[#allocation3 + $0x698] sm:$0xff]
        %v807 = vld [vmem:[#allocation3 + $0x6a0] sm:$0xff]
        %v808 = vld [vmem:[#allocation3 + $0x6a8] sm:$0xff]
        %v809 = vld [vmem:[#allocation3 + $0x6b0] sm:$0xff]
        %v810 = vld [vmem:[#allocation3 + $0x6b8] sm:$0xff]
        %v811 = vld [vmem:[#allocation3 + $0x6c0] sm:$0xff]
        %v812 = vld [vmem:[#allocation3 + $0x6c8] sm:$0xff]
        %v813 = vld [vmem:[#allocation3 + $0x6d0] sm:$0xff]
        %v814 = vld [vmem:[#allocation3 + $0x6d8] sm:$0xff]
        %v815 = vld [vmem:[#allocation3 + $0x6e0] sm:$0xff]
        %v816 = vld [vmem:[#allocation3 + $0x6e8] sm:$0xff]
        %v817 = vld [vmem:[#allocation3 + $0x6f0] sm:$0xff]
        %v818 = vld [vmem:[#allocation3 + $0x6f8] sm:$0xff]
        %v819 = vld [vmem:[#allocation3 + $0x700] sm:$0xff]
        %v820 = vld [vmem:[#allocation3 + $0x708] sm:$0xff]
        %v821 = vld [vmem:[#allocation3 + $0x710] sm:$0xff]
        %v822 = vld [vmem:[#allocation3 + $0x718] sm:$0xff]
        %v823 = vld [vmem:[#allocation3 + $0x720] sm:$0xff]
        %v824 = vld [vmem:[#allocation3 + $0x728] sm:$0xff]
        %v825 = vld [vmem:[#allocation3 + $0x730] sm:$0xff]
        %v826 = vld [vmem:[#allocation3 + $0x738] sm:$0xff]
        %v827 = vld [vmem:[#allocation3 + $0x740] sm:$0xff]
        %v828 = vld [vmem:[#allocation3 + $0x748] sm:$0xff]
        %v829 = vld [vmem:[#allocation3 + $0x750] sm:$0xff]
        %v830 = vld [vmem:[#allocation3 + $0x758] sm:$0xff]
        %v831 = vld [vmem:[#allocation3 + $0x760] sm:$0xff]
        %v832 = vld [vmem:[#allocation3 + $0x768] sm:$0xff]
        %v833 = vld [vmem:[#allocation3 + $0x770] sm:$0xff]
        %v834 = vld [vmem:[#allocation3 + $0x778] sm:$0xff]
        %v835 = vld [vmem:[#allocation3 + $0x780] sm:$0xff]
        %v836 = vld [vmem:[#allocation3 + $0x788] sm:$0xff]
        %v837 = vld [vmem:[#allocation3 + $0x790] sm:$0xff]
        %v838 = vld [vmem:[#allocation3 + $0x798] sm:$0xff]
        %v839 = vld [vmem:[#allocation3 + $0x7a0] sm:$0xff]
        %v840 = vld [vmem:[#allocation3 + $0x7a8] sm:$0xff]
        %v841 = vld [vmem:[#allocation3 + $0x7b0] sm:$0xff]
        %v842 = vld [vmem:[#allocation3 + $0x7b8] sm:$0xff]
        %v843 = vld [vmem:[#allocation3 + $0x7c0] sm:$0xff]
        %v844 = vld [vmem:[#allocation3 + $0x7c8] sm:$0xff]
        %v845 = vld [vmem:[#allocation3 + $0x7d0] sm:$0xff]
        %v846 = vld [vmem:[#allocation3 + $0x7d8] sm:$0xff]
        %v847 = vld [vmem:[#allocation3 + $0x7e0] sm:$0xff]
        %v848 = vld [vmem:[#allocation3 + $0x7e8] sm:$0xff]
        %v849 = vld [vmem:[#allocation3 + $0x7f0] sm:$0xff]
        %v850 = vld [vmem:[#allocation3 + $0x7f8] sm:$0xff]
        %v851 = vld [vmem:[#allocation3 + $0x800] sm:$0xff]
        %v852 = vld [vmem:[#allocation3 + $0x808] sm:$0xff]
        %v853 = vld [vmem:[#allocation3 + $0x810] sm:$0xff]
        %v854 = vld [vmem:[#allocation3 + $0x818] sm:$0xff]
        %v855 = vld [vmem:[#allocation3 + $0x820] sm:$0xff]
        %v856 = vld [vmem:[#allocation3 + $0x828] sm:$0xff]
        %v857 = vld [vmem:[#allocation3 + $0x830] sm:$0xff]
        %v858 = vld [vmem:[#allocation3 + $0x838] sm:$0xff]
        %v859 = vld [vmem:[#allocation3 + $0x840] sm:$0xff]
        %v860 = vld [vmem:[#allocation3 + $0x848] sm:$0xff]
        %v861 = vld [vmem:[#allocation3 + $0x850] sm:$0xff]
        %v862 = vld [vmem:[#allocation3 + $0x858] sm:$0xff]
        %v863 = vld [vmem:[#allocation3 + $0x860] sm:$0xff]
        %v864 = vld [vmem:[#allocation3 + $0x868] sm:$0xff]
        %v865 = vld [vmem:[#allocation3 + $0x870] sm:$0xff]
        %v866 = vld [vmem:[#allocation3 + $0x878] sm:$0xff]
        %v867 = vld [vmem:[#allocation3 + $0x880] sm:$0xff]
        %v868 = vld [vmem:[#allocation3 + $0x888] sm:$0xff]
        %v869 = vld [vmem:[#allocation3 + $0x890] sm:$0xff]
        %v870 = vld [vmem:[#allocation3 + $0x898] sm:$0xff]
        %v871 = vld [vmem:[#allocation3 + $0x8a0] sm:$0xff]
        %v872 = vld [vmem:[#allocation3 + $0x8a8] sm:$0xff]
        %v873 = vld [vmem:[#allocation3 + $0x8b0] sm:$0xff]
        %v874 = vld [vmem:[#allocation3 + $0x8b8] sm:$0xff]
        %v875 = vld [vmem:[#allocation3 + $0x8c0] sm:$0xff]
        %v876 = vld [vmem:[#allocation3 + $0x8c8] sm:$0xff]
        %v877 = vld [vmem:[#allocation3 + $0x8d0] sm:$0xff]
        %v878 = vld [vmem:[#allocation3 + $0x8d8] sm:$0xff]
        %v879 = vld [vmem:[#allocation3 + $0x8e0] sm:$0xff]
        %v880 = vld [vmem:[#allocation3 + $0x8e8] sm:$0xff]
        %v881 = vld [vmem:[#allocation3 + $0x8f0] sm:$0xff]
        %v882 = vld [vmem:[#allocation3 + $0x8f8] sm:$0xff]
        %v883 = vld [vmem:[#allocation3 + $0x900] sm:$0xff]
        %v884 = vld [vmem:[#allocation3 + $0x908] sm:$0xff]
        %v885 = vld [vmem:[#allocation3 + $0x910] sm:$0xff]
        %v886 = vld [vmem:[#allocation3 + $0x918] sm:$0xff]
        %v887 = vld [vmem:[#allocation3 + $0x920] sm:$0xff]
        %v888 = vld [vmem:[#allocation3 + $0x928] sm:$0xff]
        %v889 = vld [vmem:[#allocation3 + $0x930] sm:$0xff]
        %v890 = vld [vmem:[#allocation3 + $0x938] sm:$0xff]
        %v891 = vld [vmem:[#allocation3 + $0x940] sm:$0xff]
        %v892 = vld [vmem:[#allocation3 + $0x948] sm:$0xff]
        %v893 = vld [vmem:[#allocation3 + $0x950] sm:$0xff]
        %v894 = vld [vmem:[#allocation3 + $0x958] sm:$0xff]
        %v895 = vld [vmem:[#allocation3 + $0x960] sm:$0xff]
        %v896 = vld [vmem:[#allocation3 + $0x968] sm:$0xff]
        %v897 = vld [vmem:[#allocation3 + $0x970] sm:$0xff]
        %v898 = vld [vmem:[#allocation3 + $0x978] sm:$0xff]
        %v899 = vld [vmem:[#allocation3 + $0x980] sm:$0xff]
        %v900 = vld [vmem:[#allocation3 + $0x988] sm:$0xff]
        %v901 = vld [vmem:[#allocation3 + $0x990] sm:$0xff]
        %v902 = vld [vmem:[#allocation3 + $0x998] sm:$0xff]
        %v903 = vld [vmem:[#allocation3 + $0x9a0] sm:$0xff]
        %v904 = vld [vmem:[#allocation3 + $0x9a8] sm:$0xff]
        %v905 = vld [vmem:[#allocation3 + $0x9b0] sm:$0xff]
        %v906 = vld [vmem:[#allocation3 + $0x9b8] sm:$0xff]
        %v907 = vld [vmem:[#allocation3 + $0x9c0] sm:$0xff]
        %v908 = vld [vmem:[#allocation3 + $0x9c8] sm:$0xff]
        %v909 = vld [vmem:[#allocation3 + $0x9d0] sm:$0xff]
        %v910 = vld [vmem:[#allocation3 + $0x9d8] sm:$0xff]
        %v911 = vld [vmem:[#allocation3 + $0x9e0] sm:$0xff]
        %v912 = vld [vmem:[#allocation3 + $0x9e8] sm:$0xff]
        %v913 = vld [vmem:[#allocation3 + $0x9f0] sm:$0xff]
        %v914 = vld [vmem:[#allocation3 + $0x9f8] sm:$0xff]
        %v915 = vld [vmem:[#allocation3 + $0xa00] sm:$0xff]
        %v916 = vld [vmem:[#allocation3 + $0xa08] sm:$0xff]
        %v917 = vld [vmem:[#allocation3 + $0xa10] sm:$0xff]
        %v918 = vld [vmem:[#allocation3 + $0xa18] sm:$0xff]
        %v919 = vld [vmem:[#allocation3 + $0xa20] sm:$0xff]
        %v920 = vld [vmem:[#allocation3 + $0xa28] sm:$0xff]
        %v921 = vld [vmem:[#allocation3 + $0xa30] sm:$0xff]
        %v922 = vld [vmem:[#allocation3 + $0xa38] sm:$0xff]
        %v923 = vld [vmem:[#allocation3 + $0xa40] sm:$0xff]
        %v924 = vld [vmem:[#allocation3 + $0xa48] sm:$0xff]
        %v925 = vld [vmem:[#allocation3 + $0xa50] sm:$0xff]
        %v926 = vld [vmem:[#allocation3 + $0xa58] sm:$0xff]
        %v927 = vld [vmem:[#allocation3 + $0xa60] sm:$0xff]
        %v928 = vld [vmem:[#allocation3 + $0xa68] sm:$0xff]
        %v929 = vld [vmem:[#allocation3 + $0xa70] sm:$0xff]
        %v930 = vld [vmem:[#allocation3 + $0xa78] sm:$0xff]
        %v931 = vld [vmem:[#allocation3 + $0xa80] sm:$0xff]
        %v932 = vld [vmem:[#allocation3 + $0xa88] sm:$0xff]
        %v933 = vld [vmem:[#allocation3 + $0xa90] sm:$0xff]
        %v934 = vld [vmem:[#allocation3 + $0xa98] sm:$0xff]
        %v935 = vld [vmem:[#allocation3 + $0xaa0] sm:$0xff]
        %v936 = vld [vmem:[#allocation3 + $0xaa8] sm:$0xff]
        %v937 = vld [vmem:[#allocation3 + $0xab0] sm:$0xff]
        %v938 = vld [vmem:[#allocation3 + $0xab8] sm:$0xff]
        %v939 = vld [vmem:[#allocation3 + $0xac0] sm:$0xff]
        %v940 = vld [vmem:[#allocation3 + $0xac8] sm:$0xff]
        %v941 = vld [vmem:[#allocation3 + $0xad0] sm:$0xff]
        %v942 = vld [vmem:[#allocation3 + $0xad8] sm:$0xff]
        %v943 = vld [vmem:[#allocation3 + $0xae0] sm:$0xff]
        %v944 = vld [vmem:[#allocation3 + $0xae8] sm:$0xff]
        %v945 = vld [vmem:[#allocation3 + $0xaf0] sm:$0xff]
        %v946 = vld [vmem:[#allocation3 + $0xaf8] sm:$0xff]
        %v947 = vld [vmem:[#allocation3 + $0xb00] sm:$0xff]
        %v948 = vld [vmem:[#allocation3 + $0xb08] sm:$0xff]
        %v949 = vld [vmem:[#allocation3 + $0xb10] sm:$0xff]
        %v950 = vld [vmem:[#allocation3 + $0xb18] sm:$0xff]
        %v951 = vld [vmem:[#allocation3 + $0xb20] sm:$0xff]
        %v952 = vld [vmem:[#allocation3 + $0xb28] sm:$0xff]
        %v953 = vld [vmem:[#allocation3 + $0xb30] sm:$0xff]
        %v954 = vld [vmem:[#allocation3 + $0xb38] sm:$0xff]
        %v955 = vld [vmem:[#allocation3 + $0xb40] sm:$0xff]
        %v956 = vld [vmem:[#allocation3 + $0xb48] sm:$0xff]
        %v957 = vld [vmem:[#allocation3 + $0xb50] sm:$0xff]
        %v958 = vld [vmem:[#allocation3 + $0xb58] sm:$0xff]
        %v959 = vld [vmem:[#allocation3 + $0xb60] sm:$0xff]
        %v960 = vld [vmem:[#allocation3 + $0xb68] sm:$0xff]
        %v961 = vld [vmem:[#allocation3 + $0xb70] sm:$0xff]
        %v962 = vld [vmem:[#allocation3 + $0xb78] sm:$0xff]
        %v963 = vld [vmem:[#allocation3 + $0xb80] sm:$0xff]
        %v964 = vld [vmem:[#allocation3 + $0xb88] sm:$0xff]
        %v965 = vld [vmem:[#allocation3 + $0xb90] sm:$0xff]
        %v966 = vld [vmem:[#allocation3 + $0xb98] sm:$0xff]
        %v967 = vld [vmem:[#allocation3 + $0xba0] sm:$0xff]
        %v968 = vld [vmem:[#allocation3 + $0xba8] sm:$0xff]
        %v969 = vld [vmem:[#allocation3 + $0xbb0] sm:$0xff]
        %v970 = vld [vmem:[#allocation3 + $0xbb8] sm:$0xff]
        %v971 = vld [vmem:[#allocation3 + $0xbc0] sm:$0xff]
        %v972 = vld [vmem:[#allocation3 + $0xbc8] sm:$0xff]
        %v973 = vld [vmem:[#allocation3 + $0xbd0] sm:$0xff]
        %v974 = vld [vmem:[#allocation3 + $0xbd8] sm:$0xff]
        %v975 = vld [vmem:[#allocation3 + $0xbe0] sm:$0xff]
        %v976 = vld [vmem:[#allocation3 + $0xbe8] sm:$0xff]
        %v977 = vld [vmem:[#allocation3 + $0xbf0] sm:$0xff]
        %v978 = vld [vmem:[#allocation3 + $0xbf8] sm:$0xff]
        %v979 = vld [vmem:[#allocation3 + $0xc00] sm:$0xff]
        %v980 = vld [vmem:[#allocation3 + $0xc08] sm:$0xff]
        %v981 = vld [vmem:[#allocation3 + $0xc10] sm:$0xff]
        %v982 = vld [vmem:[#allocation3 + $0xc18] sm:$0xff]
        %v983 = vld [vmem:[#allocation3 + $0xc20] sm:$0xff]
        %v984 = vld [vmem:[#allocation3 + $0xc28] sm:$0xff]
        %v985 = vld [vmem:[#allocation3 + $0xc30] sm:$0xff]
        %v986 = vld [vmem:[#allocation3 + $0xc38] sm:$0xff]
        %v987 = vld [vmem:[#allocation3 + $0xc40] sm:$0xff]
        %v988 = vld [vmem:[#allocation3 + $0xc48] sm:$0xff]
        %v989 = vld [vmem:[#allocation3 + $0xc50] sm:$0xff]
        %v990 = vld [vmem:[#allocation3 + $0xc58] sm:$0xff]
        %v991 = vld [vmem:[#allocation3 + $0xc60] sm:$0xff]
        %v992 = vld [vmem:[#allocation3 + $0xc68] sm:$0xff]
        %v993 = vld [vmem:[#allocation3 + $0xc70] sm:$0xff]
        %v994 = vld [vmem:[#allocation3 + $0xc78] sm:$0xff]
        %v995 = vld [vmem:[#allocation3 + $0xc80] sm:$0xff]
        %v996 = vld [vmem:[#allocation3 + $0xc88] sm:$0xff]
        %v997 = vld [vmem:[#allocation3 + $0xc90] sm:$0xff]
        %v998 = vld [vmem:[#allocation3 + $0xc98] sm:$0xff]
        %v999 = vld [vmem:[#allocation3 + $0xca0] sm:$0xff]
        %v1000 = vld [vmem:[#allocation3 + $0xca8] sm:$0xff]
        %v1001 = vld [vmem:[#allocation3 + $0xcb0] sm:$0xff]
        %v1002 = vld [vmem:[#allocation3 + $0xcb8] sm:$0xff]
        %v1003 = vld [vmem:[#allocation3 + $0xcc0] sm:$0xff]
        %v1004 = vld [vmem:[#allocation3 + $0xcc8] sm:$0xff]
        %v1005 = vld [vmem:[#allocation3 + $0xcd0] sm:$0xff]
        %v1006 = vld [vmem:[#allocation3 + $0xcd8] sm:$0xff]
        %v1007 = vld [vmem:[#allocation3 + $0xce0] sm:$0xff]
        %v1008 = vld [vmem:[#allocation3 + $0xce8] sm:$0xff]
        %v1009 = vld [vmem:[#allocation3 + $0xcf0] sm:$0xff]
        %v1010 = vld [vmem:[#allocation3 + $0xcf8] sm:$0xff]
        %v1011 = vld [vmem:[#allocation3 + $0xd00] sm:$0xff]
        %v1012 = vld [vmem:[#allocation3 + $0xd08] sm:$0xff]
        %v1013 = vld [vmem:[#allocation3 + $0xd10] sm:$0xff]
        %v1014 = vld [vmem:[#allocation3 + $0xd18] sm:$0xff]
        %v1015 = vld [vmem:[#allocation3 + $0xd20] sm:$0xff]
        %v1016 = vld [vmem:[#allocation3 + $0xd28] sm:$0xff]
        %v1017 = vld [vmem:[#allocation3 + $0xd30] sm:$0xff]
        %v1018 = vld [vmem:[#allocation3 + $0xd38] sm:$0xff]
        %v1019 = vld [vmem:[#allocation3 + $0xd40] sm:$0xff]
        %v1020 = vld [vmem:[#allocation3 + $0xd48] sm:$0xff]
        %v1021 = vld [vmem:[#allocation3 + $0xd50] sm:$0xff]
        %v1022 = vld [vmem:[#allocation3 + $0xd58] sm:$0xff]
        %v1023 = vld [vmem:[#allocation3 + $0xd60] sm:$0xff]
        %v1024 = vld [vmem:[#allocation3 + $0xd68] sm:$0xff]
        %v1025 = vld [vmem:[#allocation3 + $0xd70] sm:$0xff]
        %v1026 = vld [vmem:[#allocation3 + $0xd78] sm:$0xff]
        %v1027 = vld [vmem:[#allocation3 + $0xd80] sm:$0xff]
        %v1028 = vld [vmem:[#allocation3 + $0xd88] sm:$0xff]
        %v1029 = vld [vmem:[#allocation3 + $0xd90] sm:$0xff]
        %v1030 = vld [vmem:[#allocation3 + $0xd98] sm:$0xff]
        %v1031 = vld [vmem:[#allocation3 + $0xda0] sm:$0xff]
        %v1032 = vld [vmem:[#allocation3 + $0xda8] sm:$0xff]
        %v1033 = vld [vmem:[#allocation3 + $0xdb0] sm:$0xff]
        %v1034 = vld [vmem:[#allocation3 + $0xdb8] sm:$0xff]
        %v1035 = vld [vmem:[#allocation3 + $0xdc0] sm:$0xff]
        %v1036 = vld [vmem:[#allocation3 + $0xdc8] sm:$0xff]
        %v1037 = vld [vmem:[#allocation3 + $0xdd0] sm:$0xff]
        %v1038 = vld [vmem:[#allocation3 + $0xdd8] sm:$0xff]
        %v1039 = vld [vmem:[#allocation3 + $0xde0] sm:$0xff]
        %v1040 = vld [vmem:[#allocation3 + $0xde8] sm:$0xff]
        %v1041 = vld [vmem:[#allocation3 + $0xdf0] sm:$0xff]
        %v1042 = vld [vmem:[#allocation3 + $0xdf8] sm:$0xff]
        %v1043 = vld [vmem:[#allocation3 + $0xe00] sm:$0xff]
        %v1044 = vld [vmem:[#allocation3 + $0xe08] sm:$0xff]
        %v1045 = vld [vmem:[#allocation3 + $0xe10] sm:$0xff]
        %v1046 = vld [vmem:[#allocation3 + $0xe18] sm:$0xff]
        %v1047 = vld [vmem:[#allocation3 + $0xe20] sm:$0xff]
        %v1048 = vld [vmem:[#allocation3 + $0xe28] sm:$0xff]
        %v1049 = vld [vmem:[#allocation3 + $0xe30] sm:$0xff]
        %v1050 = vld [vmem:[#allocation3 + $0xe38] sm:$0xff]
        %v1051 = vld [vmem:[#allocation3 + $0xe40] sm:$0xff]
        %v1052 = vld [vmem:[#allocation3 + $0xe48] sm:$0xff]
        %v1053 = vld [vmem:[#allocation3 + $0xe50] sm:$0xff]
        %v1054 = vld [vmem:[#allocation3 + $0xe58] sm:$0xff]
        %v1055 = vld [vmem:[#allocation3 + $0xe60] sm:$0xff]
        %v1056 = vld [vmem:[#allocation3 + $0xe68] sm:$0xff]
        %v1057 = vld [vmem:[#allocation3 + $0xe70] sm:$0xff]
        %v1058 = vld [vmem:[#allocation3 + $0xe78] sm:$0xff]
        %v1059 = vld [vmem:[#allocation3 + $0xe80] sm:$0xff]
        %v1060 = vld [vmem:[#allocation3 + $0xe88] sm:$0xff]
        %v1061 = vld [vmem:[#allocation3 + $0xe90] sm:$0xff]
        %v1062 = vld [vmem:[#allocation3 + $0xe98] sm:$0xff]
        %v1063 = vld [vmem:[#allocation3 + $0xea0] sm:$0xff]
        %v1064 = vld [vmem:[#allocation3 + $0xea8] sm:$0xff]
        %v1065 = vld [vmem:[#allocation3 + $0xeb0] sm:$0xff]
        %v1066 = vld [vmem:[#allocation3 + $0xeb8] sm:$0xff]
        %v1067 = vld [vmem:[#allocation3 + $0xec0] sm:$0xff]
        %v1068 = vld [vmem:[#allocation3 + $0xec8] sm:$0xff]
        %v1069 = vld [vmem:[#allocation3 + $0xed0] sm:$0xff]
        %v1070 = vld [vmem:[#allocation3 + $0xed8] sm:$0xff]
        %v1071 = vld [vmem:[#allocation3 + $0xee0] sm:$0xff]
        %v1072 = vld [vmem:[#allocation3 + $0xee8] sm:$0xff]
        %v1073 = vld [vmem:[#allocation3 + $0xef0] sm:$0xff]
        %v1074 = vld [vmem:[#allocation3 + $0xef8] sm:$0xff]
        %v1075 = vld [vmem:[#allocation3 + $0xf00] sm:$0xff]
        %v1076 = vld [vmem:[#allocation3 + $0xf08] sm:$0xff]
        %v1077 = vld [vmem:[#allocation3 + $0xf10] sm:$0xff]
        %v1078 = vld [vmem:[#allocation3 + $0xf18] sm:$0xff]
        %v1079 = vld [vmem:[#allocation3 + $0xf20] sm:$0xff]
        %v1080 = vld [vmem:[#allocation3 + $0xf28] sm:$0xff]
        %v1081 = vld [vmem:[#allocation3 + $0xf30] sm:$0xff]
        %v1082 = vld [vmem:[#allocation3 + $0xf38] sm:$0xff]
        %v1083 = vld [vmem:[#allocation3 + $0xf40] sm:$0xff]
        %v1084 = vld [vmem:[#allocation3 + $0xf48] sm:$0xff]
        %v1085 = vld [vmem:[#allocation3 + $0xf50] sm:$0xff]
        %v1086 = vld [vmem:[#allocation3 + $0xf58] sm:$0xff]
        %v1087 = vld [vmem:[#allocation3 + $0xf60] sm:$0xff]
        %v1088 = vld [vmem:[#allocation3 + $0xf68] sm:$0xff]
        %v1089 = vld [vmem:[#allocation3 + $0xf70] sm:$0xff]
        %v1090 = vld [vmem:[#allocation3 + $0xf78] sm:$0xff]
        %v1091 = vld [vmem:[#allocation3 + $0xf80] sm:$0xff]
        %v1092 = vld [vmem:[#allocation3 + $0xf88] sm:$0xff]
        %v1093 = vld [vmem:[#allocation3 + $0xf90] sm:$0xff]
        %v1094 = vld [vmem:[#allocation3 + $0xf98] sm:$0xff]
        %v1095 = vld [vmem:[#allocation3 + $0xfa0] sm:$0xff]
        %v1096 = vld [vmem:[#allocation3 + $0xfa8] sm:$0xff]
        %v1097 = vld [vmem:[#allocation3 + $0xfb0] sm:$0xff]
        %v1098 = vld [vmem:[#allocation3 + $0xfb8] sm:$0xff]
        %v1099 = vld [vmem:[#allocation3 + $0xfc0] sm:$0xff]
        %v1100 = vld [vmem:[#allocation3 + $0xfc8] sm:$0xff]
        %v1101 = vld [vmem:[#allocation3 + $0xfd0] sm:$0xff]
        %v1102 = vld [vmem:[#allocation3 + $0xfd8] sm:$0xff]
        %v1103 = vld [vmem:[#allocation3 + $0xfe0] sm:$0xff]
        %v1104 = vld [vmem:[#allocation3 + $0xfe8] sm:$0xff]
        %v1105 = vld [vmem:[#allocation3 + $0xff0] sm:$0xff]
        %v1106 = vld [vmem:[#allocation3 + $0xff8] sm:$0xff]
        %v1107 = vld [vmem:[#allocation3 + $0x1000] sm:$0xff]
        %v1108 = vld [vmem:[#allocation3 + $0x1008] sm:$0xff]
        %v1109 = vld [vmem:[#allocation3 + $0x1010] sm:$0xff]
        %v1110 = vld [vmem:[#allocation3 + $0x1018] sm:$0xff]
        %v1111 = vld [vmem:[#allocation3 + $0x1020] sm:$0x33]
        %v1112 = vld [vmem:[#allocation3 + $0x1028] sm:$0x33]
        %v1113 = vld [vmem:[#allocation3 + $0x1030] sm:$0x33]
        %v1114 = vld [vmem:[#allocation3 + $0x1038] sm:$0x33]
        %v1125 = vunpack.c.l.b16 %v585
        %v1126 = vunpack.c.h.b16 %v585
        %v1127 = vunpack.c.l.b16 %v586
        %v1128 = vunpack.c.h.b16 %v586
        %v1129 = vunpack.c.l.b16 %v587
        %v1130 = vunpack.c.h.b16 %v587
        %v1131 = vunpack.c.l.b16 %v588
        %v1132 = vunpack.c.h.b16 %v588
        %v1133 = vunpack.c.l.b16 %v589
        %v1134 = vunpack.c.l.b16 %v590
        %v1135 = vunpack.c.h.b16 %v590
        %v1136 = vunpack.c.l.b16 %v591
        %v1137 = vunpack.c.h.b16 %v591
        %v1138 = vunpack.c.l.b16 %v592
        %v1139 = vunpack.c.h.b16 %v592
        %v1140 = vunpack.c.l.b16 %v593
        %v1141 = vunpack.c.h.b16 %v593
        %v1142 = vunpack.c.l.b16 %v594
        %v1143 = vpack.c.b16 %v1134, %v1125
        %v1144 = vpack.c.b16 %v1135, %v1126
        %v1145 = vpack.c.b16 %v1136, %v1127
        %v1146 = vpack.c.b16 %v1137, %v1128
        %v1147 = vpack.c.b16 %v1138, %v1129
        %v1148 = vpack.c.b16 %v1139, %v1130
        %v1149 = vpack.c.b16 %v1140, %v1131
        %v1150 = vpack.c.b16 %v1141, %v1132
        %v1151 = vpack.c.b16 %v1142, %v1133
        %v1680 = vunpack.c.l.b16 %v595
        %v1681 = vunpack.c.h.b16 %v595
        %v1682 = vunpack.c.l.b16 %v596
        %v1683 = vunpack.c.h.b16 %v596
        %v1684 = vunpack.c.l.b16 %v597
        %v1685 = vunpack.c.h.b16 %v597
        %v1686 = vunpack.c.l.b16 %v598
        %v1687 = vunpack.c.h.b16 %v598
        %v1688 = vunpack.c.l.b16 %v599
        %v1689 = vunpack.c.h.b16 %v599
        %v1690 = vunpack.c.l.b16 %v600
        %v1691 = vunpack.c.h.b16 %v600
        %v1692 = vunpack.c.l.b16 %v601
        %v1693 = vunpack.c.h.b16 %v601
        %v1694 = vunpack.c.l.b16 %v602
        %v1695 = vunpack.c.h.b16 %v602
        %v1696 = vunpack.c.l.b16 %v603
        %v1697 = vunpack.c.h.b16 %v603
        %v1698 = vunpack.c.l.b16 %v604
        %v1699 = vunpack.c.h.b16 %v604
        %v1700 = vunpack.c.l.b16 %v605
        %v1701 = vunpack.c.h.b16 %v605
        %v1702 = vunpack.c.l.b16 %v606
        %v1703 = vunpack.c.h.b16 %v606
        %v1704 = vunpack.c.l.b16 %v607
        %v1705 = vunpack.c.h.b16 %v607
        %v1706 = vunpack.c.l.b16 %v608
        %v1707 = vunpack.c.h.b16 %v608
        %v1708 = vunpack.c.l.b16 %v609
        %v1709 = vunpack.c.h.b16 %v609
        %v1710 = vunpack.c.l.b16 %v610
        %v1711 = vunpack.c.h.b16 %v610
        %v1712 = vunpack.c.l.b16 %v611
        %v1713 = vunpack.c.h.b16 %v611
        %v1714 = vunpack.c.l.b16 %v612
        %v1715 = vunpack.c.h.b16 %v612
        %v1716 = vunpack.c.l.b16 %v613
        %v1717 = vunpack.c.h.b16 %v613
        %v1718 = vunpack.c.l.b16 %v614
        %v1719 = vunpack.c.h.b16 %v614
        %v1720 = vunpack.c.l.b16 %v615
        %v1721 = vunpack.c.h.b16 %v615
        %v1722 = vunpack.c.l.b16 %v616
        %v1723 = vunpack.c.h.b16 %v616
        %v1724 = vunpack.c.l.b16 %v617
        %v1725 = vunpack.c.h.b16 %v617
        %v1726 = vunpack.c.l.b16 %v618
        %v1727 = vunpack.c.h.b16 %v618
        %v1728 = vunpack.c.l.b16 %v619
        %v1729 = vunpack.c.h.b16 %v619
        %v1730 = vunpack.c.l.b16 %v620
        %v1731 = vunpack.c.h.b16 %v620
        %v1732 = vunpack.c.l.b16 %v621
        %v1733 = vunpack.c.h.b16 %v621
        %v1734 = vunpack.c.l.b16 %v622
        %v1735 = vunpack.c.h.b16 %v622
        %v1736 = vunpack.c.l.b16 %v623
        %v1737 = vunpack.c.h.b16 %v623
        %v1738 = vunpack.c.l.b16 %v624
        %v1739 = vunpack.c.h.b16 %v624
        %v1740 = vunpack.c.l.b16 %v625
        %v1741 = vunpack.c.h.b16 %v625
        %v1742 = vunpack.c.l.b16 %v626
        %v1743 = vunpack.c.h.b16 %v626
        %v1744 = vunpack.c.l.b16 %v627
        %v1745 = vunpack.c.h.b16 %v627
        %v1746 = vunpack.c.l.b16 %v628
        %v1747 = vunpack.c.h.b16 %v628
        %v1748 = vunpack.c.l.b16 %v629
        %v1749 = vunpack.c.h.b16 %v629
        %v1750 = vunpack.c.l.b16 %v630
        %v1751 = vunpack.c.h.b16 %v630
        %v1752 = vunpack.c.l.b16 %v631
        %v1753 = vunpack.c.h.b16 %v631
        %v1754 = vunpack.c.l.b16 %v632
        %v1755 = vunpack.c.h.b16 %v632
        %v1756 = vunpack.c.l.b16 %v633
        %v1757 = vunpack.c.h.b16 %v633
        %v1758 = vunpack.c.l.b16 %v634
        %v1759 = vunpack.c.h.b16 %v634
        %v1760 = vunpack.c.l.b16 %v635
        %v1761 = vunpack.c.h.b16 %v635
        %v1762 = vunpack.c.l.b16 %v636
        %v1763 = vunpack.c.h.b16 %v636
        %v1764 = vunpack.c.l.b16 %v637
        %v1765 = vunpack.c.h.b16 %v637
        %v1766 = vunpack.c.l.b16 %v638
        %v1767 = vunpack.c.h.b16 %v638
        %v1768 = vunpack.c.l.b16 %v639
        %v1769 = vunpack.c.h.b16 %v639
        %v1770 = vunpack.c.l.b16 %v640
        %v1771 = vunpack.c.h.b16 %v640
        %v1772 = vunpack.c.l.b16 %v641
        %v1773 = vunpack.c.h.b16 %v641
        %v1774 = vunpack.c.l.b16 %v642
        %v1775 = vunpack.c.h.b16 %v642
        %v1776 = vunpack.c.l.b16 %v643
        %v1777 = vunpack.c.h.b16 %v643
        %v1778 = vunpack.c.l.b16 %v644
        %v1779 = vunpack.c.h.b16 %v644
        %v1780 = vunpack.c.l.b16 %v645
        %v1781 = vunpack.c.h.b16 %v645
        %v1782 = vunpack.c.l.b16 %v646
        %v1783 = vunpack.c.h.b16 %v646
        %v1784 = vunpack.c.l.b16 %v647
        %v1785 = vunpack.c.h.b16 %v647
        %v1786 = vunpack.c.l.b16 %v648
        %v1787 = vunpack.c.h.b16 %v648
        %v1788 = vunpack.c.l.b16 %v649
        %v1789 = vunpack.c.h.b16 %v649
        %v1790 = vunpack.c.l.b16 %v650
        %v1791 = vunpack.c.h.b16 %v650
        %v1792 = vunpack.c.l.b16 %v651
        %v1793 = vunpack.c.h.b16 %v651
        %v1794 = vunpack.c.l.b16 %v652
        %v1795 = vunpack.c.h.b16 %v652
        %v1796 = vunpack.c.l.b16 %v653
        %v1797 = vunpack.c.h.b16 %v653
        %v1798 = vunpack.c.l.b16 %v654
        %v1799 = vunpack.c.h.b16 %v654
        %v1800 = vunpack.c.l.b16 %v655
        %v1801 = vunpack.c.h.b16 %v655
        %v1802 = vunpack.c.l.b16 %v656
        %v1803 = vunpack.c.h.b16 %v656
        %v1804 = vunpack.c.l.b16 %v657
        %v1805 = vunpack.c.h.b16 %v657
        %v1806 = vunpack.c.l.b16 %v658
        %v1807 = vunpack.c.h.b16 %v658
        %v1808 = vunpack.c.l.b16 %v659
        %v1809 = vunpack.c.h.b16 %v659
        %v1810 = vunpack.c.l.b16 %v660
        %v1811 = vunpack.c.h.b16 %v660
        %v1812 = vunpack.c.l.b16 %v661
        %v1813 = vunpack.c.h.b16 %v661
        %v1814 = vunpack.c.l.b16 %v662
        %v1815 = vunpack.c.h.b16 %v662
        %v1816 = vunpack.c.l.b16 %v663
        %v1817 = vunpack.c.h.b16 %v663
        %v1818 = vunpack.c.l.b16 %v664
        %v1819 = vunpack.c.h.b16 %v664
        %v1820 = vunpack.c.l.b16 %v665
        %v1821 = vunpack.c.h.b16 %v665
        %v1822 = vunpack.c.l.b16 %v666
        %v1823 = vunpack.c.h.b16 %v666
        %v1824 = vunpack.c.l.b16 %v667
        %v1825 = vunpack.c.h.b16 %v667
        %v1826 = vunpack.c.l.b16 %v668
        %v1827 = vunpack.c.h.b16 %v668
        %v1828 = vunpack.c.l.b16 %v669
        %v1829 = vunpack.c.h.b16 %v669
        %v1830 = vunpack.c.l.b16 %v670
        %v1831 = vunpack.c.h.b16 %v670
        %v1832 = vunpack.c.l.b16 %v671
        %v1833 = vunpack.c.h.b16 %v671
        %v1834 = vunpack.c.l.b16 %v672
        %v1835 = vunpack.c.h.b16 %v672
        %v1836 = vunpack.c.l.b16 %v673
        %v1837 = vunpack.c.h.b16 %v673
        %v1838 = vunpack.c.l.b16 %v674
        %v1839 = vunpack.c.h.b16 %v674
        %v1840 = vunpack.c.l.b16 %v675
        %v1841 = vunpack.c.h.b16 %v675
        %v1842 = vunpack.c.l.b16 %v676
        %v1843 = vunpack.c.h.b16 %v676
        %v1844 = vunpack.c.l.b16 %v677
        %v1845 = vunpack.c.h.b16 %v677
        %v1846 = vunpack.c.l.b16 %v678
        %v1847 = vunpack.c.h.b16 %v678
        %v1848 = vunpack.c.l.b16 %v679
        %v1849 = vunpack.c.h.b16 %v679
        %v1850 = vunpack.c.l.b16 %v680
        %v1851 = vunpack.c.h.b16 %v680
        %v1852 = vunpack.c.l.b16 %v681
        %v1853 = vunpack.c.h.b16 %v681
        %v1854 = vunpack.c.l.b16 %v682
        %v1855 = vunpack.c.h.b16 %v682
        %v1856 = vunpack.c.l.b16 %v683
        %v1857 = vunpack.c.h.b16 %v683
        %v1858 = vunpack.c.l.b16 %v684
        %v1859 = vunpack.c.h.b16 %v684
        %v1860 = vunpack.c.l.b16 %v685
        %v1861 = vunpack.c.h.b16 %v685
        %v1862 = vunpack.c.l.b16 %v686
        %v1863 = vunpack.c.h.b16 %v686
        %v1864 = vunpack.c.l.b16 %v687
        %v1865 = vunpack.c.h.b16 %v687
        %v1866 = vunpack.c.l.b16 %v688
        %v1867 = vunpack.c.h.b16 %v688
        %v1868 = vunpack.c.l.b16 %v689
        %v1869 = vunpack.c.h.b16 %v689
        %v1870 = vunpack.c.l.b16 %v690
        %v1871 = vunpack.c.h.b16 %v690
        %v1872 = vunpack.c.l.b16 %v691
        %v1873 = vunpack.c.h.b16 %v691
        %v1874 = vunpack.c.l.b16 %v692
        %v1875 = vunpack.c.h.b16 %v692
        %v1876 = vunpack.c.l.b16 %v693
        %v1877 = vunpack.c.h.b16 %v693
        %v1878 = vunpack.c.l.b16 %v694
        %v1879 = vunpack.c.h.b16 %v694
        %v1880 = vunpack.c.l.b16 %v695
        %v1881 = vunpack.c.h.b16 %v695
        %v1882 = vunpack.c.l.b16 %v696
        %v1883 = vunpack.c.h.b16 %v696
        %v1884 = vunpack.c.l.b16 %v697
        %v1885 = vunpack.c.h.b16 %v697
        %v1886 = vunpack.c.l.b16 %v698
        %v1887 = vunpack.c.h.b16 %v698
        %v1888 = vunpack.c.l.b16 %v699
        %v1889 = vunpack.c.h.b16 %v699
        %v1890 = vunpack.c.l.b16 %v700
        %v1891 = vunpack.c.h.b16 %v700
        %v1892 = vunpack.c.l.b16 %v701
        %v1893 = vunpack.c.h.b16 %v701
        %v1894 = vunpack.c.l.b16 %v702
        %v1895 = vunpack.c.h.b16 %v702
        %v1896 = vunpack.c.l.b16 %v703
        %v1897 = vunpack.c.h.b16 %v703
        %v1898 = vunpack.c.l.b16 %v704
        %v1899 = vunpack.c.h.b16 %v704
        %v1900 = vunpack.c.l.b16 %v705
        %v1901 = vunpack.c.h.b16 %v705
        %v1902 = vunpack.c.l.b16 %v706
        %v1903 = vunpack.c.h.b16 %v706
        %v1904 = vunpack.c.l.b16 %v707
        %v1905 = vunpack.c.h.b16 %v707
        %v1906 = vunpack.c.l.b16 %v708
        %v1907 = vunpack.c.h.b16 %v708
        %v1908 = vunpack.c.l.b16 %v709
        %v1909 = vunpack.c.h.b16 %v709
        %v1910 = vunpack.c.l.b16 %v710
        %v1911 = vunpack.c.h.b16 %v710
        %v1912 = vunpack.c.l.b16 %v711
        %v1913 = vunpack.c.h.b16 %v711
        %v1914 = vunpack.c.l.b16 %v712
        %v1915 = vunpack.c.h.b16 %v712
        %v1916 = vunpack.c.l.b16 %v713
        %v1917 = vunpack.c.h.b16 %v713
        %v1918 = vunpack.c.l.b16 %v714
        %v1919 = vunpack.c.h.b16 %v714
        %v1920 = vunpack.c.l.b16 %v715
        %v1921 = vunpack.c.h.b16 %v715
        %v1922 = vunpack.c.l.b16 %v716
        %v1923 = vunpack.c.h.b16 %v716
        %v1924 = vunpack.c.l.b16 %v717
        %v1925 = vunpack.c.h.b16 %v717
        %v1926 = vunpack.c.l.b16 %v718
        %v1927 = vunpack.c.h.b16 %v718
        %v1928 = vunpack.c.l.b16 %v719
        %v1929 = vunpack.c.h.b16 %v719
        %v1930 = vunpack.c.l.b16 %v720
        %v1931 = vunpack.c.h.b16 %v720
        %v1932 = vunpack.c.l.b16 %v721
        %v1933 = vunpack.c.h.b16 %v721
        %v1934 = vunpack.c.l.b16 %v722
        %v1935 = vunpack.c.h.b16 %v722
        %v1936 = vunpack.c.l.b16 %v723
        %v1937 = vunpack.c.h.b16 %v723
        %v1938 = vunpack.c.l.b16 %v724
        %v1939 = vunpack.c.h.b16 %v724
        %v1940 = vunpack.c.l.b16 %v725
        %v1941 = vunpack.c.h.b16 %v725
        %v1942 = vunpack.c.l.b16 %v726
        %v1943 = vunpack.c.h.b16 %v726
        %v1944 = vunpack.c.l.b16 %v727
        %v1945 = vunpack.c.h.b16 %v727
        %v1946 = vunpack.c.l.b16 %v728
        %v1947 = vunpack.c.h.b16 %v728
        %v1948 = vunpack.c.l.b16 %v729
        %v1949 = vunpack.c.h.b16 %v729
        %v1950 = vunpack.c.l.b16 %v730
        %v1951 = vunpack.c.h.b16 %v730
        %v1952 = vunpack.c.l.b16 %v731
        %v1953 = vunpack.c.h.b16 %v731
        %v1954 = vunpack.c.l.b16 %v732
        %v1955 = vunpack.c.h.b16 %v732
        %v1956 = vunpack.c.l.b16 %v733
        %v1957 = vunpack.c.h.b16 %v733
        %v1958 = vunpack.c.l.b16 %v734
        %v1959 = vunpack.c.h.b16 %v734
        %v1960 = vunpack.c.l.b16 %v735
        %v1961 = vunpack.c.h.b16 %v735
        %v1962 = vunpack.c.l.b16 %v736
        %v1963 = vunpack.c.h.b16 %v736
        %v1964 = vunpack.c.l.b16 %v737
        %v1965 = vunpack.c.h.b16 %v737
        %v1966 = vunpack.c.l.b16 %v738
        %v1967 = vunpack.c.h.b16 %v738
        %v1968 = vunpack.c.l.b16 %v739
        %v1969 = vunpack.c.h.b16 %v739
        %v1970 = vunpack.c.l.b16 %v740
        %v1971 = vunpack.c.h.b16 %v740
        %v1972 = vunpack.c.l.b16 %v741
        %v1973 = vunpack.c.h.b16 %v741
        %v1974 = vunpack.c.l.b16 %v742
        %v1975 = vunpack.c.h.b16 %v742
        %v1976 = vunpack.c.l.b16 %v743
        %v1977 = vunpack.c.h.b16 %v743
        %v1978 = vunpack.c.l.b16 %v744
        %v1979 = vunpack.c.h.b16 %v744
        %v1980 = vunpack.c.l.b16 %v745
        %v1981 = vunpack.c.h.b16 %v745
        %v1982 = vunpack.c.l.b16 %v746
        %v1983 = vunpack.c.h.b16 %v746
        %v1984 = vunpack.c.l.b16 %v747
        %v1985 = vunpack.c.h.b16 %v747
        %v1986 = vunpack.c.l.b16 %v748
        %v1987 = vunpack.c.h.b16 %v748
        %v1988 = vunpack.c.l.b16 %v749
        %v1989 = vunpack.c.h.b16 %v749
        %v1990 = vunpack.c.l.b16 %v750
        %v1991 = vunpack.c.h.b16 %v750
        %v1992 = vunpack.c.l.b16 %v751
        %v1993 = vunpack.c.h.b16 %v751
        %v1994 = vunpack.c.l.b16 %v752
        %v1995 = vunpack.c.h.b16 %v752
        %v1996 = vunpack.c.l.b16 %v753
        %v1997 = vunpack.c.h.b16 %v753
        %v1998 = vunpack.c.l.b16 %v754
        %v1999 = vunpack.c.h.b16 %v754
        %v2000 = vunpack.c.l.b16 %v755
        %v2001 = vunpack.c.h.b16 %v755
        %v2002 = vunpack.c.l.b16 %v756
        %v2003 = vunpack.c.h.b16 %v756
        %v2004 = vunpack.c.l.b16 %v757
        %v2005 = vunpack.c.h.b16 %v757
        %v2006 = vunpack.c.l.b16 %v758
        %v2007 = vunpack.c.h.b16 %v758
        %v2008 = vunpack.c.l.b16 %v759
        %v2009 = vunpack.c.h.b16 %v759
        %v2010 = vunpack.c.l.b16 %v760
        %v2011 = vunpack.c.h.b16 %v760
        %v2012 = vunpack.c.l.b16 %v761
        %v2013 = vunpack.c.h.b16 %v761
        %v2014 = vunpack.c.l.b16 %v762
        %v2015 = vunpack.c.h.b16 %v762
        %v2016 = vunpack.c.l.b16 %v763
        %v2017 = vunpack.c.h.b16 %v763
        %v2018 = vunpack.c.l.b16 %v764
        %v2019 = vunpack.c.h.b16 %v764
        %v2020 = vunpack.c.l.b16 %v765
        %v2021 = vunpack.c.h.b16 %v765
        %v2022 = vunpack.c.l.b16 %v766
        %v2023 = vunpack.c.h.b16 %v766
        %v2024 = vunpack.c.l.b16 %v767
        %v2025 = vunpack.c.h.b16 %v767
        %v2026 = vunpack.c.l.b16 %v768
        %v2027 = vunpack.c.h.b16 %v768
        %v2028 = vunpack.c.l.b16 %v769
        %v2029 = vunpack.c.h.b16 %v769
        %v2030 = vunpack.c.l.b16 %v770
        %v2031 = vunpack.c.h.b16 %v770
        %v2032 = vunpack.c.l.b16 %v771
        %v2033 = vunpack.c.h.b16 %v771
        %v2034 = vunpack.c.l.b16 %v772
        %v2035 = vunpack.c.h.b16 %v772
        %v2036 = vunpack.c.l.b16 %v773
        %v2037 = vunpack.c.h.b16 %v773
        %v2038 = vunpack.c.l.b16 %v774
        %v2039 = vunpack.c.h.b16 %v774
        %v2040 = vunpack.c.l.b16 %v775
        %v2041 = vunpack.c.h.b16 %v775
        %v2042 = vunpack.c.l.b16 %v776
        %v2043 = vunpack.c.h.b16 %v776
        %v2044 = vunpack.c.l.b16 %v777
        %v2045 = vunpack.c.h.b16 %v777
        %v2046 = vunpack.c.l.b16 %v778
        %v2047 = vunpack.c.h.b16 %v778
        %v2048 = vunpack.c.l.b16 %v779
        %v2049 = vunpack.c.h.b16 %v779
        %v2050 = vunpack.c.l.b16 %v780
        %v2051 = vunpack.c.h.b16 %v780
        %v2052 = vunpack.c.l.b16 %v781
        %v2053 = vunpack.c.h.b16 %v781
        %v2054 = vunpack.c.l.b16 %v782
        %v2055 = vunpack.c.h.b16 %v782
        %v2056 = vunpack.c.l.b16 %v783
        %v2057 = vunpack.c.h.b16 %v783
        %v2058 = vunpack.c.l.b16 %v784
        %v2059 = vunpack.c.h.b16 %v784
        %v2060 = vunpack.c.l.b16 %v785
        %v2061 = vunpack.c.h.b16 %v785
        %v2062 = vunpack.c.l.b16 %v786
        %v2063 = vunpack.c.h.b16 %v786
        %v2064 = vunpack.c.l.b16 %v787
        %v2065 = vunpack.c.h.b16 %v787
        %v2066 = vunpack.c.l.b16 %v788
        %v2067 = vunpack.c.h.b16 %v788
        %v2068 = vunpack.c.l.b16 %v789
        %v2069 = vunpack.c.h.b16 %v789
        %v2070 = vunpack.c.l.b16 %v790
        %v2071 = vunpack.c.h.b16 %v790
        %v2072 = vunpack.c.l.b16 %v791
        %v2073 = vunpack.c.h.b16 %v791
        %v2074 = vunpack.c.l.b16 %v792
        %v2075 = vunpack.c.h.b16 %v792
        %v2076 = vunpack.c.l.b16 %v793
        %v2077 = vunpack.c.h.b16 %v793
        %v2078 = vunpack.c.l.b16 %v794
        %v2079 = vunpack.c.h.b16 %v794
        %v2080 = vunpack.c.l.b16 %v795
        %v2081 = vunpack.c.h.b16 %v795
        %v2082 = vunpack.c.l.b16 %v796
        %v2083 = vunpack.c.h.b16 %v796
        %v2084 = vunpack.c.l.b16 %v797
        %v2085 = vunpack.c.h.b16 %v797
        %v2086 = vunpack.c.l.b16 %v798
        %v2087 = vunpack.c.h.b16 %v798
        %v2088 = vunpack.c.l.b16 %v799
        %v2089 = vunpack.c.h.b16 %v799
        %v2090 = vunpack.c.l.b16 %v800
        %v2091 = vunpack.c.h.b16 %v800
        %v2092 = vunpack.c.l.b16 %v801
        %v2093 = vunpack.c.h.b16 %v801
        %v2094 = vunpack.c.l.b16 %v802
        %v2095 = vunpack.c.h.b16 %v802
        %v2096 = vunpack.c.l.b16 %v803
        %v2097 = vunpack.c.h.b16 %v803
        %v2098 = vunpack.c.l.b16 %v804
        %v2099 = vunpack.c.h.b16 %v804
        %v2100 = vunpack.c.l.b16 %v805
        %v2101 = vunpack.c.h.b16 %v805
        %v2102 = vunpack.c.l.b16 %v806
        %v2103 = vunpack.c.h.b16 %v806
        %v2104 = vunpack.c.l.b16 %v807
        %v2105 = vunpack.c.h.b16 %v807
        %v2106 = vunpack.c.l.b16 %v808
        %v2107 = vunpack.c.h.b16 %v808
        %v2108 = vunpack.c.l.b16 %v809
        %v2109 = vunpack.c.h.b16 %v809
        %v2110 = vunpack.c.l.b16 %v810
        %v2111 = vunpack.c.h.b16 %v810
        %v2112 = vunpack.c.l.b16 %v811
        %v2113 = vunpack.c.h.b16 %v811
        %v2114 = vunpack.c.l.b16 %v812
        %v2115 = vunpack.c.h.b16 %v812
        %v2116 = vunpack.c.l.b16 %v813
        %v2117 = vunpack.c.h.b16 %v813
        %v2118 = vunpack.c.l.b16 %v814
        %v2119 = vunpack.c.h.b16 %v814
        %v2120 = vunpack.c.l.b16 %v815
        %v2121 = vunpack.c.h.b16 %v815
        %v2122 = vunpack.c.l.b16 %v816
        %v2123 = vunpack.c.h.b16 %v816
        %v2124 = vunpack.c.l.b16 %v817
        %v2125 = vunpack.c.h.b16 %v817
        %v2126 = vunpack.c.l.b16 %v818
        %v2127 = vunpack.c.h.b16 %v818
        %v2128 = vunpack.c.l.b16 %v819
        %v2129 = vunpack.c.h.b16 %v819
        %v2130 = vunpack.c.l.b16 %v820
        %v2131 = vunpack.c.h.b16 %v820
        %v2132 = vunpack.c.l.b16 %v821
        %v2133 = vunpack.c.h.b16 %v821
        %v2134 = vunpack.c.l.b16 %v822
        %v2135 = vunpack.c.h.b16 %v822
        %v2136 = vunpack.c.l.b16 %v823
        %v2137 = vunpack.c.h.b16 %v823
        %v2138 = vunpack.c.l.b16 %v824
        %v2139 = vunpack.c.h.b16 %v824
        %v2140 = vunpack.c.l.b16 %v825
        %v2141 = vunpack.c.h.b16 %v825
        %v2142 = vunpack.c.l.b16 %v826
        %v2143 = vunpack.c.h.b16 %v826
        %v2144 = vunpack.c.l.b16 %v827
        %v2145 = vunpack.c.h.b16 %v827
        %v2146 = vunpack.c.l.b16 %v828
        %v2147 = vunpack.c.h.b16 %v828
        %v2148 = vunpack.c.l.b16 %v829
        %v2149 = vunpack.c.h.b16 %v829
        %v2150 = vunpack.c.l.b16 %v830
        %v2151 = vunpack.c.h.b16 %v830
        %v2152 = vunpack.c.l.b16 %v831
        %v2153 = vunpack.c.h.b16 %v831
        %v2154 = vunpack.c.l.b16 %v832
        %v2155 = vunpack.c.h.b16 %v832
        %v2156 = vunpack.c.l.b16 %v833
        %v2157 = vunpack.c.h.b16 %v833
        %v2158 = vunpack.c.l.b16 %v834
        %v2159 = vunpack.c.h.b16 %v834
        %v2160 = vunpack.c.l.b16 %v835
        %v2161 = vunpack.c.h.b16 %v835
        %v2162 = vunpack.c.l.b16 %v836
        %v2163 = vunpack.c.h.b16 %v836
        %v2164 = vunpack.c.l.b16 %v837
        %v2165 = vunpack.c.h.b16 %v837
        %v2166 = vunpack.c.l.b16 %v838
        %v2167 = vunpack.c.h.b16 %v838
        %v2168 = vunpack.c.l.b16 %v839
        %v2169 = vunpack.c.h.b16 %v839
        %v2170 = vunpack.c.l.b16 %v840
        %v2171 = vunpack.c.h.b16 %v840
        %v2172 = vunpack.c.l.b16 %v841
        %v2173 = vunpack.c.h.b16 %v841
        %v2174 = vunpack.c.l.b16 %v842
        %v2175 = vunpack.c.h.b16 %v842
        %v2176 = vunpack.c.l.b16 %v843
        %v2177 = vunpack.c.h.b16 %v843
        %v2178 = vunpack.c.l.b16 %v844
        %v2179 = vunpack.c.h.b16 %v844
        %v2180 = vunpack.c.l.b16 %v845
        %v2181 = vunpack.c.h.b16 %v845
        %v2182 = vunpack.c.l.b16 %v846
        %v2183 = vunpack.c.h.b16 %v846
        %v2184 = vunpack.c.l.b16 %v847
        %v2185 = vunpack.c.h.b16 %v847
        %v2186 = vunpack.c.l.b16 %v848
        %v2187 = vunpack.c.h.b16 %v848
        %v2188 = vunpack.c.l.b16 %v849
        %v2189 = vunpack.c.h.b16 %v849
        %v2190 = vunpack.c.l.b16 %v850
        %v2191 = vunpack.c.h.b16 %v850
        %v2192 = vunpack.c.l.b16 %v851
        %v2193 = vunpack.c.h.b16 %v851
        %v2194 = vunpack.c.l.b16 %v852
        %v2195 = vunpack.c.h.b16 %v852
        %v2196 = vunpack.c.l.b16 %v853
        %v2197 = vunpack.c.h.b16 %v853
        %v2198 = vunpack.c.l.b16 %v854
        %v2199 = vunpack.c.h.b16 %v854
        %v2200 = vunpack.c.l.b16 %v855
        %v2201 = vunpack.c.h.b16 %v855
        %v2202 = vunpack.c.l.b16 %v856
        %v2203 = vunpack.c.h.b16 %v856
        %v2204 = vunpack.c.l.b16 %v857
        %v2205 = vunpack.c.h.b16 %v857
        %v2206 = vunpack.c.l.b16 %v858
        %v2207 = vunpack.c.h.b16 %v858
        %v2208 = vunpack.c.l.b16 %v859
        %v2209 = vunpack.c.h.b16 %v859
        %v2210 = vunpack.c.l.b16 %v860
        %v2211 = vunpack.c.h.b16 %v860
        %v2212 = vunpack.c.l.b16 %v861
        %v2213 = vunpack.c.h.b16 %v861
        %v2214 = vunpack.c.l.b16 %v862
        %v2215 = vunpack.c.h.b16 %v862
        %v2216 = vunpack.c.l.b16 %v863
        %v2217 = vunpack.c.h.b16 %v863
        %v2218 = vunpack.c.l.b16 %v864
        %v2219 = vunpack.c.h.b16 %v864
        %v2220 = vunpack.c.l.b16 %v865
        %v2221 = vunpack.c.h.b16 %v865
        %v2222 = vunpack.c.l.b16 %v866
        %v2223 = vunpack.c.h.b16 %v866
        %v2224 = vunpack.c.l.b16 %v867
        %v2225 = vunpack.c.h.b16 %v867
        %v2226 = vunpack.c.l.b16 %v868
        %v2227 = vunpack.c.h.b16 %v868
        %v2228 = vunpack.c.l.b16 %v869
        %v2229 = vunpack.c.h.b16 %v869
        %v2230 = vunpack.c.l.b16 %v870
        %v2231 = vunpack.c.h.b16 %v870
        %v2232 = vunpack.c.l.b16 %v871
        %v2233 = vunpack.c.h.b16 %v871
        %v2234 = vunpack.c.l.b16 %v872
        %v2235 = vunpack.c.h.b16 %v872
        %v2236 = vunpack.c.l.b16 %v873
        %v2237 = vunpack.c.h.b16 %v873
        %v2238 = vunpack.c.l.b16 %v874
        %v2239 = vunpack.c.h.b16 %v874
        %v2240 = vunpack.c.l.b16 %v875
        %v2241 = vunpack.c.h.b16 %v875
        %v2242 = vunpack.c.l.b16 %v876
        %v2243 = vunpack.c.h.b16 %v876
        %v2244 = vunpack.c.l.b16 %v877
        %v2245 = vunpack.c.h.b16 %v877
        %v2246 = vunpack.c.l.b16 %v878
        %v2247 = vunpack.c.h.b16 %v878
        %v2248 = vunpack.c.l.b16 %v879
        %v2249 = vunpack.c.h.b16 %v879
        %v2250 = vunpack.c.l.b16 %v880
        %v2251 = vunpack.c.h.b16 %v880
        %v2252 = vunpack.c.l.b16 %v881
        %v2253 = vunpack.c.h.b16 %v881
        %v2254 = vunpack.c.l.b16 %v882
        %v2255 = vunpack.c.h.b16 %v882
        %v2256 = vunpack.c.l.b16 %v883
        %v2257 = vunpack.c.h.b16 %v883
        %v2258 = vunpack.c.l.b16 %v884
        %v2259 = vunpack.c.h.b16 %v884
        %v2260 = vunpack.c.l.b16 %v885
        %v2261 = vunpack.c.h.b16 %v885
        %v2262 = vunpack.c.l.b16 %v886
        %v2263 = vunpack.c.h.b16 %v886
        %v2264 = vunpack.c.l.b16 %v887
        %v2265 = vunpack.c.h.b16 %v887
        %v2266 = vunpack.c.l.b16 %v888
        %v2267 = vunpack.c.h.b16 %v888
        %v2268 = vunpack.c.l.b16 %v889
        %v2269 = vunpack.c.h.b16 %v889
        %v2270 = vunpack.c.l.b16 %v890
        %v2271 = vunpack.c.h.b16 %v890
        %v2272 = vunpack.c.l.b16 %v891
        %v2273 = vunpack.c.h.b16 %v891
        %v2274 = vunpack.c.l.b16 %v892
        %v2275 = vunpack.c.h.b16 %v892
        %v2276 = vunpack.c.l.b16 %v893
        %v2277 = vunpack.c.h.b16 %v893
        %v2278 = vunpack.c.l.b16 %v894
        %v2279 = vunpack.c.h.b16 %v894
        %v2280 = vunpack.c.l.b16 %v895
        %v2281 = vunpack.c.h.b16 %v895
        %v2282 = vunpack.c.l.b16 %v896
        %v2283 = vunpack.c.h.b16 %v896
        %v2284 = vunpack.c.l.b16 %v897
        %v2285 = vunpack.c.h.b16 %v897
        %v2286 = vunpack.c.l.b16 %v898
        %v2287 = vunpack.c.h.b16 %v898
        %v2288 = vunpack.c.l.b16 %v899
        %v2289 = vunpack.c.h.b16 %v899
        %v2290 = vunpack.c.l.b16 %v900
        %v2291 = vunpack.c.h.b16 %v900
        %v2292 = vunpack.c.l.b16 %v901
        %v2293 = vunpack.c.h.b16 %v901
        %v2294 = vunpack.c.l.b16 %v902
        %v2295 = vunpack.c.h.b16 %v902
        %v2296 = vunpack.c.l.b16 %v903
        %v2297 = vunpack.c.h.b16 %v903
        %v2298 = vunpack.c.l.b16 %v904
        %v2299 = vunpack.c.h.b16 %v904
        %v2300 = vunpack.c.l.b16 %v905
        %v2301 = vunpack.c.h.b16 %v905
        %v2302 = vunpack.c.l.b16 %v906
        %v2303 = vunpack.c.h.b16 %v906
        %v2304 = vunpack.c.l.b16 %v907
        %v2305 = vunpack.c.h.b16 %v907
        %v2306 = vunpack.c.l.b16 %v908
        %v2307 = vunpack.c.h.b16 %v908
        %v2308 = vunpack.c.l.b16 %v909
        %v2309 = vunpack.c.h.b16 %v909
        %v2310 = vunpack.c.l.b16 %v910
        %v2311 = vunpack.c.h.b16 %v910
        %v2312 = vunpack.c.l.b16 %v911
        %v2313 = vunpack.c.h.b16 %v911
        %v2314 = vunpack.c.l.b16 %v912
        %v2315 = vunpack.c.h.b16 %v912
        %v2316 = vunpack.c.l.b16 %v913
        %v2317 = vunpack.c.h.b16 %v913
        %v2318 = vunpack.c.l.b16 %v914
        %v2319 = vunpack.c.h.b16 %v914
        %v2320 = vunpack.c.l.b16 %v915
        %v2321 = vunpack.c.h.b16 %v915
        %v2322 = vunpack.c.l.b16 %v916
        %v2323 = vunpack.c.h.b16 %v916
        %v2324 = vunpack.c.l.b16 %v917
        %v2325 = vunpack.c.h.b16 %v917
        %v2326 = vunpack.c.l.b16 %v918
        %v2327 = vunpack.c.h.b16 %v918
        %v2328 = vunpack.c.l.b16 %v919
        %v2329 = vunpack.c.h.b16 %v919
        %v2330 = vunpack.c.l.b16 %v920
        %v2331 = vunpack.c.h.b16 %v920
        %v2332 = vunpack.c.l.b16 %v921
        %v2333 = vunpack.c.h.b16 %v921
        %v2334 = vunpack.c.l.b16 %v922
        %v2335 = vunpack.c.h.b16 %v922
        %v2336 = vunpack.c.l.b16 %v923
        %v2337 = vunpack.c.h.b16 %v923
        %v2338 = vunpack.c.l.b16 %v924
        %v2339 = vunpack.c.h.b16 %v924
        %v2340 = vunpack.c.l.b16 %v925
        %v2341 = vunpack.c.h.b16 %v925
        %v2342 = vunpack.c.l.b16 %v926
        %v2343 = vunpack.c.h.b16 %v926
        %v2344 = vunpack.c.l.b16 %v927
        %v2345 = vunpack.c.h.b16 %v927
        %v2346 = vunpack.c.l.b16 %v928
        %v2347 = vunpack.c.h.b16 %v928
        %v2348 = vunpack.c.l.b16 %v929
        %v2349 = vunpack.c.h.b16 %v929
        %v2350 = vunpack.c.l.b16 %v930
        %v2351 = vunpack.c.h.b16 %v930
        %v2352 = vunpack.c.l.b16 %v931
        %v2353 = vunpack.c.h.b16 %v931
        %v2354 = vunpack.c.l.b16 %v932
        %v2355 = vunpack.c.h.b16 %v932
        %v2356 = vunpack.c.l.b16 %v933
        %v2357 = vunpack.c.h.b16 %v933
        %v2358 = vunpack.c.l.b16 %v934
        %v2359 = vunpack.c.h.b16 %v934
        %v2360 = vunpack.c.l.b16 %v935
        %v2361 = vunpack.c.h.b16 %v935
        %v2362 = vunpack.c.l.b16 %v936
        %v2363 = vunpack.c.h.b16 %v936
        %v2364 = vunpack.c.l.b16 %v937
        %v2365 = vunpack.c.h.b16 %v937
        %v2366 = vunpack.c.l.b16 %v938
        %v2367 = vunpack.c.h.b16 %v938
        %v2368 = vunpack.c.l.b16 %v939
        %v2369 = vunpack.c.h.b16 %v939
        %v2370 = vunpack.c.l.b16 %v940
        %v2371 = vunpack.c.h.b16 %v940
        %v2372 = vunpack.c.l.b16 %v941
        %v2373 = vunpack.c.h.b16 %v941
        %v2374 = vunpack.c.l.b16 %v942
        %v2375 = vunpack.c.h.b16 %v942
        %v2376 = vunpack.c.l.b16 %v943
        %v2377 = vunpack.c.h.b16 %v943
        %v2378 = vunpack.c.l.b16 %v944
        %v2379 = vunpack.c.h.b16 %v944
        %v2380 = vunpack.c.l.b16 %v945
        %v2381 = vunpack.c.h.b16 %v945
        %v2382 = vunpack.c.l.b16 %v946
        %v2383 = vunpack.c.h.b16 %v946
        %v2384 = vunpack.c.l.b16 %v947
        %v2385 = vunpack.c.h.b16 %v947
        %v2386 = vunpack.c.l.b16 %v948
        %v2387 = vunpack.c.h.b16 %v948
        %v2388 = vunpack.c.l.b16 %v949
        %v2389 = vunpack.c.h.b16 %v949
        %v2390 = vunpack.c.l.b16 %v950
        %v2391 = vunpack.c.h.b16 %v950
        %v2392 = vunpack.c.l.b16 %v951
        %v2393 = vunpack.c.h.b16 %v951
        %v2394 = vunpack.c.l.b16 %v952
        %v2395 = vunpack.c.h.b16 %v952
        %v2396 = vunpack.c.l.b16 %v953
        %v2397 = vunpack.c.h.b16 %v953
        %v2398 = vunpack.c.l.b16 %v954
        %v2399 = vunpack.c.h.b16 %v954
        %v2400 = vunpack.c.l.b16 %v955
        %v2401 = vunpack.c.h.b16 %v955
        %v2402 = vunpack.c.l.b16 %v956
        %v2403 = vunpack.c.h.b16 %v956
        %v2404 = vunpack.c.l.b16 %v957
        %v2405 = vunpack.c.h.b16 %v957
        %v2406 = vunpack.c.l.b16 %v958
        %v2407 = vunpack.c.h.b16 %v958
        %v2408 = vunpack.c.l.b16 %v959
        %v2409 = vunpack.c.h.b16 %v959
        %v2410 = vunpack.c.l.b16 %v960
        %v2411 = vunpack.c.h.b16 %v960
        %v2412 = vunpack.c.l.b16 %v961
        %v2413 = vunpack.c.h.b16 %v961
        %v2414 = vunpack.c.l.b16 %v962
        %v2415 = vunpack.c.h.b16 %v962
        %v2416 = vunpack.c.l.b16 %v963
        %v2417 = vunpack.c.h.b16 %v963
        %v2418 = vunpack.c.l.b16 %v964
        %v2419 = vunpack.c.h.b16 %v964
        %v2420 = vunpack.c.l.b16 %v965
        %v2421 = vunpack.c.h.b16 %v965
        %v2422 = vunpack.c.l.b16 %v966
        %v2423 = vunpack.c.h.b16 %v966
        %v2424 = vunpack.c.l.b16 %v967
        %v2425 = vunpack.c.h.b16 %v967
        %v2426 = vunpack.c.l.b16 %v968
        %v2427 = vunpack.c.h.b16 %v968
        %v2428 = vunpack.c.l.b16 %v969
        %v2429 = vunpack.c.h.b16 %v969
        %v2430 = vunpack.c.l.b16 %v970
        %v2431 = vunpack.c.h.b16 %v970
        %v2432 = vunpack.c.l.b16 %v971
        %v2433 = vunpack.c.h.b16 %v971
        %v2434 = vunpack.c.l.b16 %v972
        %v2435 = vunpack.c.h.b16 %v972
        %v2436 = vunpack.c.l.b16 %v973
        %v2437 = vunpack.c.h.b16 %v973
        %v2438 = vunpack.c.l.b16 %v974
        %v2439 = vunpack.c.h.b16 %v974
        %v2440 = vunpack.c.l.b16 %v975
        %v2441 = vunpack.c.h.b16 %v975
        %v2442 = vunpack.c.l.b16 %v976
        %v2443 = vunpack.c.h.b16 %v976
        %v2444 = vunpack.c.l.b16 %v977
        %v2445 = vunpack.c.h.b16 %v977
        %v2446 = vunpack.c.l.b16 %v978
        %v2447 = vunpack.c.h.b16 %v978
        %v2448 = vunpack.c.l.b16 %v979
        %v2449 = vunpack.c.h.b16 %v979
        %v2450 = vunpack.c.l.b16 %v980
        %v2451 = vunpack.c.h.b16 %v980
        %v2452 = vunpack.c.l.b16 %v981
        %v2453 = vunpack.c.h.b16 %v981
        %v2454 = vunpack.c.l.b16 %v982
        %v2455 = vunpack.c.h.b16 %v982
        %v2456 = vunpack.c.l.b16 %v983
        %v2457 = vunpack.c.h.b16 %v983
        %v2458 = vunpack.c.l.b16 %v984
        %v2459 = vunpack.c.h.b16 %v984
        %v2460 = vunpack.c.l.b16 %v985
        %v2461 = vunpack.c.h.b16 %v985
        %v2462 = vunpack.c.l.b16 %v986
        %v2463 = vunpack.c.h.b16 %v986
        %v2464 = vunpack.c.l.b16 %v987
        %v2465 = vunpack.c.h.b16 %v987
        %v2466 = vunpack.c.l.b16 %v988
        %v2467 = vunpack.c.h.b16 %v988
        %v2468 = vunpack.c.l.b16 %v989
        %v2469 = vunpack.c.h.b16 %v989
        %v2470 = vunpack.c.l.b16 %v990
        %v2471 = vunpack.c.h.b16 %v990
        %v2472 = vunpack.c.l.b16 %v991
        %v2473 = vunpack.c.h.b16 %v991
        %v2474 = vunpack.c.l.b16 %v992
        %v2475 = vunpack.c.h.b16 %v992
        %v2476 = vunpack.c.l.b16 %v993
        %v2477 = vunpack.c.h.b16 %v993
        %v2478 = vunpack.c.l.b16 %v994
        %v2479 = vunpack.c.h.b16 %v994
        %v2480 = vunpack.c.l.b16 %v995
        %v2481 = vunpack.c.h.b16 %v995
        %v2482 = vunpack.c.l.b16 %v996
        %v2483 = vunpack.c.h.b16 %v996
        %v2484 = vunpack.c.l.b16 %v997
        %v2485 = vunpack.c.h.b16 %v997
        %v2486 = vunpack.c.l.b16 %v998
        %v2487 = vunpack.c.h.b16 %v998
        %v2488 = vunpack.c.l.b16 %v999
        %v2489 = vunpack.c.h.b16 %v999
        %v2490 = vunpack.c.l.b16 %v1000
        %v2491 = vunpack.c.h.b16 %v1000
        %v2492 = vunpack.c.l.b16 %v1001
        %v2493 = vunpack.c.h.b16 %v1001
        %v2494 = vunpack.c.l.b16 %v1002
        %v2495 = vunpack.c.h.b16 %v1002
        %v2496 = vunpack.c.l.b16 %v1003
        %v2497 = vunpack.c.h.b16 %v1003
        %v2498 = vunpack.c.l.b16 %v1004
        %v2499 = vunpack.c.h.b16 %v1004
        %v2500 = vunpack.c.l.b16 %v1005
        %v2501 = vunpack.c.h.b16 %v1005
        %v2502 = vunpack.c.l.b16 %v1006
        %v2503 = vunpack.c.h.b16 %v1006
        %v2504 = vunpack.c.l.b16 %v1007
        %v2505 = vunpack.c.h.b16 %v1007
        %v2506 = vunpack.c.l.b16 %v1008
        %v2507 = vunpack.c.h.b16 %v1008
        %v2508 = vunpack.c.l.b16 %v1009
        %v2509 = vunpack.c.h.b16 %v1009
        %v2510 = vunpack.c.l.b16 %v1010
        %v2511 = vunpack.c.h.b16 %v1010
        %v2512 = vunpack.c.l.b16 %v1011
        %v2513 = vunpack.c.h.b16 %v1011
        %v2514 = vunpack.c.l.b16 %v1012
        %v2515 = vunpack.c.h.b16 %v1012
        %v2516 = vunpack.c.l.b16 %v1013
        %v2517 = vunpack.c.h.b16 %v1013
        %v2518 = vunpack.c.l.b16 %v1014
        %v2519 = vunpack.c.h.b16 %v1014
        %v2520 = vunpack.c.l.b16 %v1015
        %v2521 = vunpack.c.h.b16 %v1015
        %v2522 = vunpack.c.l.b16 %v1016
        %v2523 = vunpack.c.h.b16 %v1016
        %v2524 = vunpack.c.l.b16 %v1017
        %v2525 = vunpack.c.h.b16 %v1017
        %v2526 = vunpack.c.l.b16 %v1018
        %v2527 = vunpack.c.h.b16 %v1018
        %v2528 = vunpack.c.l.b16 %v1019
        %v2529 = vunpack.c.h.b16 %v1019
        %v2530 = vunpack.c.l.b16 %v1020
        %v2531 = vunpack.c.h.b16 %v1020
        %v2532 = vunpack.c.l.b16 %v1021
        %v2533 = vunpack.c.h.b16 %v1021
        %v2534 = vunpack.c.l.b16 %v1022
        %v2535 = vunpack.c.h.b16 %v1022
        %v2536 = vunpack.c.l.b16 %v1023
        %v2537 = vunpack.c.h.b16 %v1023
        %v2538 = vunpack.c.l.b16 %v1024
        %v2539 = vunpack.c.h.b16 %v1024
        %v2540 = vunpack.c.l.b16 %v1025
        %v2541 = vunpack.c.h.b16 %v1025
        %v2542 = vunpack.c.l.b16 %v1026
        %v2543 = vunpack.c.h.b16 %v1026
        %v2544 = vunpack.c.l.b16 %v1027
        %v2545 = vunpack.c.h.b16 %v1027
        %v2546 = vunpack.c.l.b16 %v1028
        %v2547 = vunpack.c.h.b16 %v1028
        %v2548 = vunpack.c.l.b16 %v1029
        %v2549 = vunpack.c.h.b16 %v1029
        %v2550 = vunpack.c.l.b16 %v1030
        %v2551 = vunpack.c.h.b16 %v1030
        %v2552 = vunpack.c.l.b16 %v1031
        %v2553 = vunpack.c.h.b16 %v1031
        %v2554 = vunpack.c.l.b16 %v1032
        %v2555 = vunpack.c.h.b16 %v1032
        %v2556 = vunpack.c.l.b16 %v1033
        %v2557 = vunpack.c.h.b16 %v1033
        %v2558 = vunpack.c.l.b16 %v1034
        %v2559 = vunpack.c.h.b16 %v1034
        %v2560 = vunpack.c.l.b16 %v1035
        %v2561 = vunpack.c.h.b16 %v1035
        %v2562 = vunpack.c.l.b16 %v1036
        %v2563 = vunpack.c.h.b16 %v1036
        %v2564 = vunpack.c.l.b16 %v1037
        %v2565 = vunpack.c.h.b16 %v1037
        %v2566 = vunpack.c.l.b16 %v1038
        %v2567 = vunpack.c.h.b16 %v1038
        %v2568 = vunpack.c.l.b16 %v1039
        %v2569 = vunpack.c.h.b16 %v1039
        %v2570 = vunpack.c.l.b16 %v1040
        %v2571 = vunpack.c.h.b16 %v1040
        %v2572 = vunpack.c.l.b16 %v1041
        %v2573 = vunpack.c.h.b16 %v1041
        %v2574 = vunpack.c.l.b16 %v1042
        %v2575 = vunpack.c.h.b16 %v1042
        %v2576 = vunpack.c.l.b16 %v1043
        %v2577 = vunpack.c.h.b16 %v1043
        %v2578 = vunpack.c.l.b16 %v1044
        %v2579 = vunpack.c.h.b16 %v1044
        %v2580 = vunpack.c.l.b16 %v1045
        %v2581 = vunpack.c.h.b16 %v1045
        %v2582 = vunpack.c.l.b16 %v1046
        %v2583 = vunpack.c.h.b16 %v1046
        %v2584 = vunpack.c.l.b16 %v1047
        %v2585 = vunpack.c.h.b16 %v1047
        %v2586 = vunpack.c.l.b16 %v1048
        %v2587 = vunpack.c.h.b16 %v1048
        %v2588 = vunpack.c.l.b16 %v1049
        %v2589 = vunpack.c.h.b16 %v1049
        %v2590 = vunpack.c.l.b16 %v1050
        %v2591 = vunpack.c.h.b16 %v1050
        %v2592 = vunpack.c.l.b16 %v1051
        %v2593 = vunpack.c.h.b16 %v1051
        %v2594 = vunpack.c.l.b16 %v1052
        %v2595 = vunpack.c.h.b16 %v1052
        %v2596 = vunpack.c.l.b16 %v1053
        %v2597 = vunpack.c.h.b16 %v1053
        %v2598 = vunpack.c.l.b16 %v1054
        %v2599 = vunpack.c.h.b16 %v1054
        %v2600 = vunpack.c.l.b16 %v1055
        %v2601 = vunpack.c.h.b16 %v1055
        %v2602 = vunpack.c.l.b16 %v1056
        %v2603 = vunpack.c.h.b16 %v1056
        %v2604 = vunpack.c.l.b16 %v1057
        %v2605 = vunpack.c.h.b16 %v1057
        %v2606 = vunpack.c.l.b16 %v1058
        %v2607 = vunpack.c.h.b16 %v1058
        %v2608 = vunpack.c.l.b16 %v1059
        %v2609 = vunpack.c.h.b16 %v1059
        %v2610 = vunpack.c.l.b16 %v1060
        %v2611 = vunpack.c.h.b16 %v1060
        %v2612 = vunpack.c.l.b16 %v1061
        %v2613 = vunpack.c.h.b16 %v1061
        %v2614 = vunpack.c.l.b16 %v1062
        %v2615 = vunpack.c.h.b16 %v1062
        %v2616 = vunpack.c.l.b16 %v1063
        %v2617 = vunpack.c.h.b16 %v1063
        %v2618 = vunpack.c.l.b16 %v1064
        %v2619 = vunpack.c.h.b16 %v1064
        %v2620 = vunpack.c.l.b16 %v1065
        %v2621 = vunpack.c.h.b16 %v1065
        %v2622 = vunpack.c.l.b16 %v1066
        %v2623 = vunpack.c.h.b16 %v1066
        %v2624 = vunpack.c.l.b16 %v1067
        %v2625 = vunpack.c.h.b16 %v1067
        %v2626 = vunpack.c.l.b16 %v1068
        %v2627 = vunpack.c.h.b16 %v1068
        %v2628 = vunpack.c.l.b16 %v1069
        %v2629 = vunpack.c.h.b16 %v1069
        %v2630 = vunpack.c.l.b16 %v1070
        %v2631 = vunpack.c.h.b16 %v1070
        %v2632 = vunpack.c.l.b16 %v1071
        %v2633 = vunpack.c.h.b16 %v1071
        %v2634 = vunpack.c.l.b16 %v1072
        %v2635 = vunpack.c.h.b16 %v1072
        %v2636 = vunpack.c.l.b16 %v1073
        %v2637 = vunpack.c.h.b16 %v1073
        %v2638 = vunpack.c.l.b16 %v1074
        %v2639 = vunpack.c.h.b16 %v1074
        %v2640 = vunpack.c.l.b16 %v1075
        %v2641 = vunpack.c.h.b16 %v1075
        %v2642 = vunpack.c.l.b16 %v1076
        %v2643 = vunpack.c.h.b16 %v1076
        %v2644 = vunpack.c.l.b16 %v1077
        %v2645 = vunpack.c.h.b16 %v1077
        %v2646 = vunpack.c.l.b16 %v1078
        %v2647 = vunpack.c.h.b16 %v1078
        %v2648 = vunpack.c.l.b16 %v1079
        %v2649 = vunpack.c.h.b16 %v1079
        %v2650 = vunpack.c.l.b16 %v1080
        %v2651 = vunpack.c.h.b16 %v1080
        %v2652 = vunpack.c.l.b16 %v1081
        %v2653 = vunpack.c.h.b16 %v1081
        %v2654 = vunpack.c.l.b16 %v1082
        %v2655 = vunpack.c.h.b16 %v1082
        %v2656 = vunpack.c.l.b16 %v1083
        %v2657 = vunpack.c.h.b16 %v1083
        %v2658 = vunpack.c.l.b16 %v1084
        %v2659 = vunpack.c.h.b16 %v1084
        %v2660 = vunpack.c.l.b16 %v1085
        %v2661 = vunpack.c.h.b16 %v1085
        %v2662 = vunpack.c.l.b16 %v1086
        %v2663 = vunpack.c.h.b16 %v1086
        %v2664 = vunpack.c.l.b16 %v1087
        %v2665 = vunpack.c.h.b16 %v1087
        %v2666 = vunpack.c.l.b16 %v1088
        %v2667 = vunpack.c.h.b16 %v1088
        %v2668 = vunpack.c.l.b16 %v1089
        %v2669 = vunpack.c.h.b16 %v1089
        %v2670 = vunpack.c.l.b16 %v1090
        %v2671 = vunpack.c.h.b16 %v1090
        %v2672 = vunpack.c.l.b16 %v1091
        %v2673 = vunpack.c.h.b16 %v1091
        %v2674 = vunpack.c.l.b16 %v1092
        %v2675 = vunpack.c.h.b16 %v1092
        %v2676 = vunpack.c.l.b16 %v1093
        %v2677 = vunpack.c.h.b16 %v1093
        %v2678 = vunpack.c.l.b16 %v1094
        %v2679 = vunpack.c.h.b16 %v1094
        %v2680 = vunpack.c.l.b16 %v1095
        %v2681 = vunpack.c.h.b16 %v1095
        %v2682 = vunpack.c.l.b16 %v1096
        %v2683 = vunpack.c.h.b16 %v1096
        %v2684 = vunpack.c.l.b16 %v1097
        %v2685 = vunpack.c.h.b16 %v1097
        %v2686 = vunpack.c.l.b16 %v1098
        %v2687 = vunpack.c.h.b16 %v1098
        %v2688 = vunpack.c.l.b16 %v1099
        %v2689 = vunpack.c.h.b16 %v1099
        %v2690 = vunpack.c.l.b16 %v1100
        %v2691 = vunpack.c.h.b16 %v1100
        %v2692 = vunpack.c.l.b16 %v1101
        %v2693 = vunpack.c.h.b16 %v1101
        %v2694 = vunpack.c.l.b16 %v1102
        %v2695 = vunpack.c.h.b16 %v1102
        %v2696 = vunpack.c.l.b16 %v1103
        %v2697 = vunpack.c.h.b16 %v1103
        %v2698 = vunpack.c.l.b16 %v1104
        %v2699 = vunpack.c.h.b16 %v1104
        %v2700 = vunpack.c.l.b16 %v1105
        %v2701 = vunpack.c.h.b16 %v1105
        %v2702 = vunpack.c.l.b16 %v1106
        %v2703 = vunpack.c.h.b16 %v1106
        %v2704 = vunpack.c.l.b16 %v1107
        %v2705 = vunpack.c.h.b16 %v1107
        %v2706 = vunpack.c.l.b16 %v1108
        %v2707 = vunpack.c.h.b16 %v1108
        %v2708 = vunpack.c.l.b16 %v1109
        %v2709 = vunpack.c.h.b16 %v1109
        %v2710 = vunpack.c.l.b16 %v1110
        %v2711 = vunpack.c.h.b16 %v1110
        %v2712 = vunpack.c.l.b16 %v1111
        %v2713 = vunpack.c.h.b16 %v1111
        %v2714 = vunpack.c.l.b16 %v1112
        %v2715 = vunpack.c.h.b16 %v1112
        %v2716 = vunpack.c.l.b16 %v1113
        %v2717 = vunpack.c.h.b16 %v1113
        %v2718 = vunpack.c.l.b16 %v1114
        %v2719 = vunpack.c.h.b16 %v1114
        %v2720 = vpack.c.b16 %v1688, %v1680
        %v2721 = vpack.c.b16 %v1689, %v1681
        %v2722 = vpack.c.b16 %v1690, %v1682
        %v2723 = vpack.c.b16 %v1691, %v1683
        %v2724 = vpack.c.b16 %v1692, %v1684
        %v2725 = vpack.c.b16 %v1693, %v1685
        %v2726 = vpack.c.b16 %v1694, %v1686
        %v2727 = vpack.c.b16 %v1695, %v1687
        %v2728 = vpack.c.b16 %v1704, %v1696
        %v2729 = vpack.c.b16 %v1705, %v1697
        %v2730 = vpack.c.b16 %v1706, %v1698
        %v2731 = vpack.c.b16 %v1707, %v1699
        %v2732 = vpack.c.b16 %v1708, %v1700
        %v2733 = vpack.c.b16 %v1709, %v1701
        %v2734 = vpack.c.b16 %v1710, %v1702
        %v2735 = vpack.c.b16 %v1711, %v1703
        %v2736 = vpack.c.b16 %v1720, %v1712
        %v2737 = vpack.c.b16 %v1721, %v1713
        %v2738 = vpack.c.b16 %v1722, %v1714
        %v2739 = vpack.c.b16 %v1723, %v1715
        %v2740 = vpack.c.b16 %v1724, %v1716
        %v2741 = vpack.c.b16 %v1725, %v1717
        %v2742 = vpack.c.b16 %v1726, %v1718
        %v2743 = vpack.c.b16 %v1727, %v1719
        %v2744 = vpack.c.b16 %v1736, %v1728
        %v2745 = vpack.c.b16 %v1737, %v1729
        %v2746 = vpack.c.b16 %v1738, %v1730
        %v2747 = vpack.c.b16 %v1739, %v1731
        %v2748 = vpack.c.b16 %v1740, %v1732
        %v2749 = vpack.c.b16 %v1741, %v1733
        %v2750 = vpack.c.b16 %v1742, %v1734
        %v2751 = vpack.c.b16 %v1743, %v1735
        %v2752 = vpack.c.b16 %v1752, %v1744
        %v2753 = vpack.c.b16 %v1753, %v1745
        %v2754 = vpack.c.b16 %v1754, %v1746
        %v2755 = vpack.c.b16 %v1755, %v1747
        %v2756 = vpack.c.b16 %v1756, %v1748
        %v2757 = vpack.c.b16 %v1757, %v1749
        %v2758 = vpack.c.b16 %v1758, %v1750
        %v2759 = vpack.c.b16 %v1759, %v1751
        %v2760 = vpack.c.b16 %v1768, %v1760
        %v2761 = vpack.c.b16 %v1769, %v1761
        %v2762 = vpack.c.b16 %v1770, %v1762
        %v2763 = vpack.c.b16 %v1771, %v1763
        %v2764 = vpack.c.b16 %v1772, %v1764
        %v2765 = vpack.c.b16 %v1773, %v1765
        %v2766 = vpack.c.b16 %v1774, %v1766
        %v2767 = vpack.c.b16 %v1775, %v1767
        %v2768 = vpack.c.b16 %v1784, %v1776
        %v2769 = vpack.c.b16 %v1785, %v1777
        %v2770 = vpack.c.b16 %v1786, %v1778
        %v2771 = vpack.c.b16 %v1787, %v1779
        %v2772 = vpack.c.b16 %v1788, %v1780
        %v2773 = vpack.c.b16 %v1789, %v1781
        %v2774 = vpack.c.b16 %v1790, %v1782
        %v2775 = vpack.c.b16 %v1791, %v1783
        %v2776 = vpack.c.b16 %v1800, %v1792
        %v2777 = vpack.c.b16 %v1801, %v1793
        %v2778 = vpack.c.b16 %v1802, %v1794
        %v2779 = vpack.c.b16 %v1803, %v1795
        %v2780 = vpack.c.b16 %v1804, %v1796
        %v2781 = vpack.c.b16 %v1805, %v1797
        %v2782 = vpack.c.b16 %v1806, %v1798
        %v2783 = vpack.c.b16 %v1807, %v1799
        %v2784 = vpack.c.b16 %v1816, %v1808
        %v2785 = vpack.c.b16 %v1817, %v1809
        %v2786 = vpack.c.b16 %v1818, %v1810
        %v2787 = vpack.c.b16 %v1819, %v1811
        %v2788 = vpack.c.b16 %v1820, %v1812
        %v2789 = vpack.c.b16 %v1821, %v1813
        %v2790 = vpack.c.b16 %v1822, %v1814
        %v2791 = vpack.c.b16 %v1823, %v1815
        %v2792 = vpack.c.b16 %v1832, %v1824
        %v2793 = vpack.c.b16 %v1833, %v1825
        %v2794 = vpack.c.b16 %v1834, %v1826
        %v2795 = vpack.c.b16 %v1835, %v1827
        %v2796 = vpack.c.b16 %v1836, %v1828
        %v2797 = vpack.c.b16 %v1837, %v1829
        %v2798 = vpack.c.b16 %v1838, %v1830
        %v2799 = vpack.c.b16 %v1839, %v1831
        %v2800 = vpack.c.b16 %v1848, %v1840
        %v2801 = vpack.c.b16 %v1849, %v1841
        %v2802 = vpack.c.b16 %v1850, %v1842
        %v2803 = vpack.c.b16 %v1851, %v1843
        %v2804 = vpack.c.b16 %v1852, %v1844
        %v2805 = vpack.c.b16 %v1853, %v1845
        %v2806 = vpack.c.b16 %v1854, %v1846
        %v2807 = vpack.c.b16 %v1855, %v1847
        %v2808 = vpack.c.b16 %v1864, %v1856
        %v2809 = vpack.c.b16 %v1865, %v1857
        %v2810 = vpack.c.b16 %v1866, %v1858
        %v2811 = vpack.c.b16 %v1867, %v1859
        %v2812 = vpack.c.b16 %v1868, %v1860
        %v2813 = vpack.c.b16 %v1869, %v1861
        %v2814 = vpack.c.b16 %v1870, %v1862
        %v2815 = vpack.c.b16 %v1871, %v1863
        %v2816 = vpack.c.b16 %v1880, %v1872
        %v2817 = vpack.c.b16 %v1881, %v1873
        %v2818 = vpack.c.b16 %v1882, %v1874
        %v2819 = vpack.c.b16 %v1883, %v1875
        %v2820 = vpack.c.b16 %v1884, %v1876
        %v2821 = vpack.c.b16 %v1885, %v1877
        %v2822 = vpack.c.b16 %v1886, %v1878
        %v2823 = vpack.c.b16 %v1887, %v1879
        %v2824 = vpack.c.b16 %v1896, %v1888
        %v2825 = vpack.c.b16 %v1897, %v1889
        %v2826 = vpack.c.b16 %v1898, %v1890
        %v2827 = vpack.c.b16 %v1899, %v1891
        %v2828 = vpack.c.b16 %v1900, %v1892
        %v2829 = vpack.c.b16 %v1901, %v1893
        %v2830 = vpack.c.b16 %v1902, %v1894
        %v2831 = vpack.c.b16 %v1903, %v1895
        %v2832 = vpack.c.b16 %v1912, %v1904
        %v2833 = vpack.c.b16 %v1913, %v1905
        %v2834 = vpack.c.b16 %v1914, %v1906
        %v2835 = vpack.c.b16 %v1915, %v1907
        %v2836 = vpack.c.b16 %v1916, %v1908
        %v2837 = vpack.c.b16 %v1917, %v1909
        %v2838 = vpack.c.b16 %v1918, %v1910
        %v2839 = vpack.c.b16 %v1919, %v1911
        %v2840 = vpack.c.b16 %v1928, %v1920
        %v2841 = vpack.c.b16 %v1929, %v1921
        %v2842 = vpack.c.b16 %v1930, %v1922
        %v2843 = vpack.c.b16 %v1931, %v1923
        %v2844 = vpack.c.b16 %v1932, %v1924
        %v2845 = vpack.c.b16 %v1933, %v1925
        %v2846 = vpack.c.b16 %v1934, %v1926
        %v2847 = vpack.c.b16 %v1935, %v1927
        %v2848 = vpack.c.b16 %v1944, %v1936
        %v2849 = vpack.c.b16 %v1945, %v1937
        %v2850 = vpack.c.b16 %v1946, %v1938
        %v2851 = vpack.c.b16 %v1947, %v1939
        %v2852 = vpack.c.b16 %v1948, %v1940
        %v2853 = vpack.c.b16 %v1949, %v1941
        %v2854 = vpack.c.b16 %v1950, %v1942
        %v2855 = vpack.c.b16 %v1951, %v1943
        %v2856 = vpack.c.b16 %v1960, %v1952
        %v2857 = vpack.c.b16 %v1961, %v1953
        %v2858 = vpack.c.b16 %v1962, %v1954
        %v2859 = vpack.c.b16 %v1963, %v1955
        %v2860 = vpack.c.b16 %v1964, %v1956
        %v2861 = vpack.c.b16 %v1965, %v1957
        %v2862 = vpack.c.b16 %v1966, %v1958
        %v2863 = vpack.c.b16 %v1967, %v1959
        %v2864 = vpack.c.b16 %v1976, %v1968
        %v2865 = vpack.c.b16 %v1977, %v1969
        %v2866 = vpack.c.b16 %v1978, %v1970
        %v2867 = vpack.c.b16 %v1979, %v1971
        %v2868 = vpack.c.b16 %v1980, %v1972
        %v2869 = vpack.c.b16 %v1981, %v1973
        %v2870 = vpack.c.b16 %v1982, %v1974
        %v2871 = vpack.c.b16 %v1983, %v1975
        %v2872 = vpack.c.b16 %v1992, %v1984
        %v2873 = vpack.c.b16 %v1993, %v1985
        %v2874 = vpack.c.b16 %v1994, %v1986
        %v2875 = vpack.c.b16 %v1995, %v1987
        %v2876 = vpack.c.b16 %v1996, %v1988
        %v2877 = vpack.c.b16 %v1997, %v1989
        %v2878 = vpack.c.b16 %v1998, %v1990
        %v2879 = vpack.c.b16 %v1999, %v1991
        %v2880 = vpack.c.b16 %v2008, %v2000
        %v2881 = vpack.c.b16 %v2009, %v2001
        %v2882 = vpack.c.b16 %v2010, %v2002
        %v2883 = vpack.c.b16 %v2011, %v2003
        %v2884 = vpack.c.b16 %v2012, %v2004
        %v2885 = vpack.c.b16 %v2013, %v2005
        %v2886 = vpack.c.b16 %v2014, %v2006
        %v2887 = vpack.c.b16 %v2015, %v2007
        %v2888 = vpack.c.b16 %v2024, %v2016
        %v2889 = vpack.c.b16 %v2025, %v2017
        %v2890 = vpack.c.b16 %v2026, %v2018
        %v2891 = vpack.c.b16 %v2027, %v2019
        %v2892 = vpack.c.b16 %v2028, %v2020
        %v2893 = vpack.c.b16 %v2029, %v2021
        %v2894 = vpack.c.b16 %v2030, %v2022
        %v2895 = vpack.c.b16 %v2031, %v2023
        %v2896 = vpack.c.b16 %v2040, %v2032
        %v2897 = vpack.c.b16 %v2041, %v2033
        %v2898 = vpack.c.b16 %v2042, %v2034
        %v2899 = vpack.c.b16 %v2043, %v2035
        %v2900 = vpack.c.b16 %v2044, %v2036
        %v2901 = vpack.c.b16 %v2045, %v2037
        %v2902 = vpack.c.b16 %v2046, %v2038
        %v2903 = vpack.c.b16 %v2047, %v2039
        %v2904 = vpack.c.b16 %v2056, %v2048
        %v2905 = vpack.c.b16 %v2057, %v2049
        %v2906 = vpack.c.b16 %v2058, %v2050
        %v2907 = vpack.c.b16 %v2059, %v2051
        %v2908 = vpack.c.b16 %v2060, %v2052
        %v2909 = vpack.c.b16 %v2061, %v2053
        %v2910 = vpack.c.b16 %v2062, %v2054
        %v2911 = vpack.c.b16 %v2063, %v2055
        %v2912 = vpack.c.b16 %v2072, %v2064
        %v2913 = vpack.c.b16 %v2073, %v2065
        %v2914 = vpack.c.b16 %v2074, %v2066
        %v2915 = vpack.c.b16 %v2075, %v2067
        %v2916 = vpack.c.b16 %v2076, %v2068
        %v2917 = vpack.c.b16 %v2077, %v2069
        %v2918 = vpack.c.b16 %v2078, %v2070
        %v2919 = vpack.c.b16 %v2079, %v2071
        %v2920 = vpack.c.b16 %v2088, %v2080
        %v2921 = vpack.c.b16 %v2089, %v2081
        %v2922 = vpack.c.b16 %v2090, %v2082
        %v2923 = vpack.c.b16 %v2091, %v2083
        %v2924 = vpack.c.b16 %v2092, %v2084
        %v2925 = vpack.c.b16 %v2093, %v2085
        %v2926 = vpack.c.b16 %v2094, %v2086
        %v2927 = vpack.c.b16 %v2095, %v2087
        %v2928 = vpack.c.b16 %v2104, %v2096
        %v2929 = vpack.c.b16 %v2105, %v2097
        %v2930 = vpack.c.b16 %v2106, %v2098
        %v2931 = vpack.c.b16 %v2107, %v2099
        %v2932 = vpack.c.b16 %v2108, %v2100
        %v2933 = vpack.c.b16 %v2109, %v2101
        %v2934 = vpack.c.b16 %v2110, %v2102
        %v2935 = vpack.c.b16 %v2111, %v2103
        %v2936 = vpack.c.b16 %v2120, %v2112
        %v2937 = vpack.c.b16 %v2121, %v2113
        %v2938 = vpack.c.b16 %v2122, %v2114
        %v2939 = vpack.c.b16 %v2123, %v2115
        %v2940 = vpack.c.b16 %v2124, %v2116
        %v2941 = vpack.c.b16 %v2125, %v2117
        %v2942 = vpack.c.b16 %v2126, %v2118
        %v2943 = vpack.c.b16 %v2127, %v2119
        %v2944 = vpack.c.b16 %v2136, %v2128
        %v2945 = vpack.c.b16 %v2137, %v2129
        %v2946 = vpack.c.b16 %v2138, %v2130
        %v2947 = vpack.c.b16 %v2139, %v2131
        %v2948 = vpack.c.b16 %v2140, %v2132
        %v2949 = vpack.c.b16 %v2141, %v2133
        %v2950 = vpack.c.b16 %v2142, %v2134
        %v2951 = vpack.c.b16 %v2143, %v2135
        %v2952 = vpack.c.b16 %v2152, %v2144
        %v2953 = vpack.c.b16 %v2153, %v2145
        %v2954 = vpack.c.b16 %v2154, %v2146
        %v2955 = vpack.c.b16 %v2155, %v2147
        %v2956 = vpack.c.b16 %v2156, %v2148
        %v2957 = vpack.c.b16 %v2157, %v2149
        %v2958 = vpack.c.b16 %v2158, %v2150
        %v2959 = vpack.c.b16 %v2159, %v2151
        %v2960 = vpack.c.b16 %v2168, %v2160
        %v2961 = vpack.c.b16 %v2169, %v2161
        %v2962 = vpack.c.b16 %v2170, %v2162
        %v2963 = vpack.c.b16 %v2171, %v2163
        %v2964 = vpack.c.b16 %v2172, %v2164
        %v2965 = vpack.c.b16 %v2173, %v2165
        %v2966 = vpack.c.b16 %v2174, %v2166
        %v2967 = vpack.c.b16 %v2175, %v2167
        %v2968 = vpack.c.b16 %v2184, %v2176
        %v2969 = vpack.c.b16 %v2185, %v2177
        %v2970 = vpack.c.b16 %v2186, %v2178
        %v2971 = vpack.c.b16 %v2187, %v2179
        %v2972 = vpack.c.b16 %v2188, %v2180
        %v2973 = vpack.c.b16 %v2189, %v2181
        %v2974 = vpack.c.b16 %v2190, %v2182
        %v2975 = vpack.c.b16 %v2191, %v2183
        %v2976 = vpack.c.b16 %v2200, %v2192
        %v2977 = vpack.c.b16 %v2201, %v2193
        %v2978 = vpack.c.b16 %v2202, %v2194
        %v2979 = vpack.c.b16 %v2203, %v2195
        %v2980 = vpack.c.b16 %v2204, %v2196
        %v2981 = vpack.c.b16 %v2205, %v2197
        %v2982 = vpack.c.b16 %v2206, %v2198
        %v2983 = vpack.c.b16 %v2207, %v2199
        %v2984 = vpack.c.b16 %v2216, %v2208
        %v2985 = vpack.c.b16 %v2217, %v2209
        %v2986 = vpack.c.b16 %v2218, %v2210
        %v2987 = vpack.c.b16 %v2219, %v2211
        %v2988 = vpack.c.b16 %v2220, %v2212
        %v2989 = vpack.c.b16 %v2221, %v2213
        %v2990 = vpack.c.b16 %v2222, %v2214
        %v2991 = vpack.c.b16 %v2223, %v2215
        %v2992 = vpack.c.b16 %v2232, %v2224
        %v2993 = vpack.c.b16 %v2233, %v2225
        %v2994 = vpack.c.b16 %v2234, %v2226
        %v2995 = vpack.c.b16 %v2235, %v2227
        %v2996 = vpack.c.b16 %v2236, %v2228
        %v2997 = vpack.c.b16 %v2237, %v2229
        %v2998 = vpack.c.b16 %v2238, %v2230
        %v2999 = vpack.c.b16 %v2239, %v2231
        %v3000 = vpack.c.b16 %v2248, %v2240
        %v3001 = vpack.c.b16 %v2249, %v2241
        %v3002 = vpack.c.b16 %v2250, %v2242
        %v3003 = vpack.c.b16 %v2251, %v2243
        %v3004 = vpack.c.b16 %v2252, %v2244
        %v3005 = vpack.c.b16 %v2253, %v2245
        %v3006 = vpack.c.b16 %v2254, %v2246
        %v3007 = vpack.c.b16 %v2255, %v2247
        %v3008 = vpack.c.b16 %v2264, %v2256
        %v3009 = vpack.c.b16 %v2265, %v2257
        %v3010 = vpack.c.b16 %v2266, %v2258
        %v3011 = vpack.c.b16 %v2267, %v2259
        %v3012 = vpack.c.b16 %v2268, %v2260
        %v3013 = vpack.c.b16 %v2269, %v2261
        %v3014 = vpack.c.b16 %v2270, %v2262
        %v3015 = vpack.c.b16 %v2271, %v2263
        %v3016 = vpack.c.b16 %v2280, %v2272
        %v3017 = vpack.c.b16 %v2281, %v2273
        %v3018 = vpack.c.b16 %v2282, %v2274
        %v3019 = vpack.c.b16 %v2283, %v2275
        %v3020 = vpack.c.b16 %v2284, %v2276
        %v3021 = vpack.c.b16 %v2285, %v2277
        %v3022 = vpack.c.b16 %v2286, %v2278
        %v3023 = vpack.c.b16 %v2287, %v2279
        %v3024 = vpack.c.b16 %v2296, %v2288
        %v3025 = vpack.c.b16 %v2297, %v2289
        %v3026 = vpack.c.b16 %v2298, %v2290
        %v3027 = vpack.c.b16 %v2299, %v2291
        %v3028 = vpack.c.b16 %v2300, %v2292
        %v3029 = vpack.c.b16 %v2301, %v2293
        %v3030 = vpack.c.b16 %v2302, %v2294
        %v3031 = vpack.c.b16 %v2303, %v2295
        %v3032 = vpack.c.b16 %v2312, %v2304
        %v3033 = vpack.c.b16 %v2313, %v2305
        %v3034 = vpack.c.b16 %v2314, %v2306
        %v3035 = vpack.c.b16 %v2315, %v2307
        %v3036 = vpack.c.b16 %v2316, %v2308
        %v3037 = vpack.c.b16 %v2317, %v2309
        %v3038 = vpack.c.b16 %v2318, %v2310
        %v3039 = vpack.c.b16 %v2319, %v2311
        %v3040 = vpack.c.b16 %v2328, %v2320
        %v3041 = vpack.c.b16 %v2329, %v2321
        %v3042 = vpack.c.b16 %v2330, %v2322
        %v3043 = vpack.c.b16 %v2331, %v2323
        %v3044 = vpack.c.b16 %v2332, %v2324
        %v3045 = vpack.c.b16 %v2333, %v2325
        %v3046 = vpack.c.b16 %v2334, %v2326
        %v3047 = vpack.c.b16 %v2335, %v2327
        %v3048 = vpack.c.b16 %v2344, %v2336
        %v3049 = vpack.c.b16 %v2345, %v2337
        %v3050 = vpack.c.b16 %v2346, %v2338
        %v3051 = vpack.c.b16 %v2347, %v2339
        %v3052 = vpack.c.b16 %v2348, %v2340
        %v3053 = vpack.c.b16 %v2349, %v2341
        %v3054 = vpack.c.b16 %v2350, %v2342
        %v3055 = vpack.c.b16 %v2351, %v2343
        %v3056 = vpack.c.b16 %v2360, %v2352
        %v3057 = vpack.c.b16 %v2361, %v2353
        %v3058 = vpack.c.b16 %v2362, %v2354
        %v3059 = vpack.c.b16 %v2363, %v2355
        %v3060 = vpack.c.b16 %v2364, %v2356
        %v3061 = vpack.c.b16 %v2365, %v2357
        %v3062 = vpack.c.b16 %v2366, %v2358
        %v3063 = vpack.c.b16 %v2367, %v2359
        %v3064 = vpack.c.b16 %v2376, %v2368
        %v3065 = vpack.c.b16 %v2377, %v2369
        %v3066 = vpack.c.b16 %v2378, %v2370
        %v3067 = vpack.c.b16 %v2379, %v2371
        %v3068 = vpack.c.b16 %v2380, %v2372
        %v3069 = vpack.c.b16 %v2381, %v2373
        %v3070 = vpack.c.b16 %v2382, %v2374
        %v3071 = vpack.c.b16 %v2383, %v2375
        %v3072 = vpack.c.b16 %v2392, %v2384
        %v3073 = vpack.c.b16 %v2393, %v2385
        %v3074 = vpack.c.b16 %v2394, %v2386
        %v3075 = vpack.c.b16 %v2395, %v2387
        %v3076 = vpack.c.b16 %v2396, %v2388
        %v3077 = vpack.c.b16 %v2397, %v2389
        %v3078 = vpack.c.b16 %v2398, %v2390
        %v3079 = vpack.c.b16 %v2399, %v2391
        %v3080 = vpack.c.b16 %v2408, %v2400
        %v3081 = vpack.c.b16 %v2409, %v2401
        %v3082 = vpack.c.b16 %v2410, %v2402
        %v3083 = vpack.c.b16 %v2411, %v2403
        %v3084 = vpack.c.b16 %v2412, %v2404
        %v3085 = vpack.c.b16 %v2413, %v2405
        %v3086 = vpack.c.b16 %v2414, %v2406
        %v3087 = vpack.c.b16 %v2415, %v2407
        %v3088 = vpack.c.b16 %v2424, %v2416
        %v3089 = vpack.c.b16 %v2425, %v2417
        %v3090 = vpack.c.b16 %v2426, %v2418
        %v3091 = vpack.c.b16 %v2427, %v2419
        %v3092 = vpack.c.b16 %v2428, %v2420
        %v3093 = vpack.c.b16 %v2429, %v2421
        %v3094 = vpack.c.b16 %v2430, %v2422
        %v3095 = vpack.c.b16 %v2431, %v2423
        %v3096 = vpack.c.b16 %v2440, %v2432
        %v3097 = vpack.c.b16 %v2441, %v2433
        %v3098 = vpack.c.b16 %v2442, %v2434
        %v3099 = vpack.c.b16 %v2443, %v2435
        %v3100 = vpack.c.b16 %v2444, %v2436
        %v3101 = vpack.c.b16 %v2445, %v2437
        %v3102 = vpack.c.b16 %v2446, %v2438
        %v3103 = vpack.c.b16 %v2447, %v2439
        %v3104 = vpack.c.b16 %v2456, %v2448
        %v3105 = vpack.c.b16 %v2457, %v2449
        %v3106 = vpack.c.b16 %v2458, %v2450
        %v3107 = vpack.c.b16 %v2459, %v2451
        %v3108 = vpack.c.b16 %v2460, %v2452
        %v3109 = vpack.c.b16 %v2461, %v2453
        %v3110 = vpack.c.b16 %v2462, %v2454
        %v3111 = vpack.c.b16 %v2463, %v2455
        %v3112 = vpack.c.b16 %v2472, %v2464
        %v3113 = vpack.c.b16 %v2473, %v2465
        %v3114 = vpack.c.b16 %v2474, %v2466
        %v3115 = vpack.c.b16 %v2475, %v2467
        %v3116 = vpack.c.b16 %v2476, %v2468
        %v3117 = vpack.c.b16 %v2477, %v2469
        %v3118 = vpack.c.b16 %v2478, %v2470
        %v3119 = vpack.c.b16 %v2479, %v2471
        %v3120 = vpack.c.b16 %v2488, %v2480
        %v3121 = vpack.c.b16 %v2489, %v2481
        %v3122 = vpack.c.b16 %v2490, %v2482
        %v3123 = vpack.c.b16 %v2491, %v2483
        %v3124 = vpack.c.b16 %v2492, %v2484
        %v3125 = vpack.c.b16 %v2493, %v2485
        %v3126 = vpack.c.b16 %v2494, %v2486
        %v3127 = vpack.c.b16 %v2495, %v2487
        %v3128 = vpack.c.b16 %v2504, %v2496
        %v3129 = vpack.c.b16 %v2505, %v2497
        %v3130 = vpack.c.b16 %v2506, %v2498
        %v3131 = vpack.c.b16 %v2507, %v2499
        %v3132 = vpack.c.b16 %v2508, %v2500
        %v3133 = vpack.c.b16 %v2509, %v2501
        %v3134 = vpack.c.b16 %v2510, %v2502
        %v3135 = vpack.c.b16 %v2511, %v2503
        %v3136 = vpack.c.b16 %v2520, %v2512
        %v3137 = vpack.c.b16 %v2521, %v2513
        %v3138 = vpack.c.b16 %v2522, %v2514
        %v3139 = vpack.c.b16 %v2523, %v2515
        %v3140 = vpack.c.b16 %v2524, %v2516
        %v3141 = vpack.c.b16 %v2525, %v2517
        %v3142 = vpack.c.b16 %v2526, %v2518
        %v3143 = vpack.c.b16 %v2527, %v2519
        %v3144 = vpack.c.b16 %v2536, %v2528
        %v3145 = vpack.c.b16 %v2537, %v2529
        %v3146 = vpack.c.b16 %v2538, %v2530
        %v3147 = vpack.c.b16 %v2539, %v2531
        %v3148 = vpack.c.b16 %v2540, %v2532
        %v3149 = vpack.c.b16 %v2541, %v2533
        %v3150 = vpack.c.b16 %v2542, %v2534
        %v3151 = vpack.c.b16 %v2543, %v2535
        %v3152 = vpack.c.b16 %v2552, %v2544
        %v3153 = vpack.c.b16 %v2553, %v2545
        %v3154 = vpack.c.b16 %v2554, %v2546
        %v3155 = vpack.c.b16 %v2555, %v2547
        %v3156 = vpack.c.b16 %v2556, %v2548
        %v3157 = vpack.c.b16 %v2557, %v2549
        %v3158 = vpack.c.b16 %v2558, %v2550
        %v3159 = vpack.c.b16 %v2559, %v2551
        %v3160 = vpack.c.b16 %v2568, %v2560
        %v3161 = vpack.c.b16 %v2569, %v2561
        %v3162 = vpack.c.b16 %v2570, %v2562
        %v3163 = vpack.c.b16 %v2571, %v2563
        %v3164 = vpack.c.b16 %v2572, %v2564
        %v3165 = vpack.c.b16 %v2573, %v2565
        %v3166 = vpack.c.b16 %v2574, %v2566
        %v3167 = vpack.c.b16 %v2575, %v2567
        %v3168 = vpack.c.b16 %v2584, %v2576
        %v3169 = vpack.c.b16 %v2585, %v2577
        %v3170 = vpack.c.b16 %v2586, %v2578
        %v3171 = vpack.c.b16 %v2587, %v2579
        %v3172 = vpack.c.b16 %v2588, %v2580
        %v3173 = vpack.c.b16 %v2589, %v2581
        %v3174 = vpack.c.b16 %v2590, %v2582
        %v3175 = vpack.c.b16 %v2591, %v2583
        %v3176 = vpack.c.b16 %v2600, %v2592
        %v3177 = vpack.c.b16 %v2601, %v2593
        %v3178 = vpack.c.b16 %v2602, %v2594
        %v3179 = vpack.c.b16 %v2603, %v2595
        %v3180 = vpack.c.b16 %v2604, %v2596
        %v3181 = vpack.c.b16 %v2605, %v2597
        %v3182 = vpack.c.b16 %v2606, %v2598
        %v3183 = vpack.c.b16 %v2607, %v2599
        %v3184 = vpack.c.b16 %v2616, %v2608
        %v3185 = vpack.c.b16 %v2617, %v2609
        %v3186 = vpack.c.b16 %v2618, %v2610
        %v3187 = vpack.c.b16 %v2619, %v2611
        %v3188 = vpack.c.b16 %v2620, %v2612
        %v3189 = vpack.c.b16 %v2621, %v2613
        %v3190 = vpack.c.b16 %v2622, %v2614
        %v3191 = vpack.c.b16 %v2623, %v2615
        %v3192 = vpack.c.b16 %v2632, %v2624
        %v3193 = vpack.c.b16 %v2633, %v2625
        %v3194 = vpack.c.b16 %v2634, %v2626
        %v3195 = vpack.c.b16 %v2635, %v2627
        %v3196 = vpack.c.b16 %v2636, %v2628
        %v3197 = vpack.c.b16 %v2637, %v2629
        %v3198 = vpack.c.b16 %v2638, %v2630
        %v3199 = vpack.c.b16 %v2639, %v2631
        %v3200 = vpack.c.b16 %v2648, %v2640
        %v3201 = vpack.c.b16 %v2649, %v2641
        %v3202 = vpack.c.b16 %v2650, %v2642
        %v3203 = vpack.c.b16 %v2651, %v2643
        %v3204 = vpack.c.b16 %v2652, %v2644
        %v3205 = vpack.c.b16 %v2653, %v2645
        %v3206 = vpack.c.b16 %v2654, %v2646
        %v3207 = vpack.c.b16 %v2655, %v2647
        %v3208 = vpack.c.b16 %v2664, %v2656
        %v3209 = vpack.c.b16 %v2665, %v2657
        %v3210 = vpack.c.b16 %v2666, %v2658
        %v3211 = vpack.c.b16 %v2667, %v2659
        %v3212 = vpack.c.b16 %v2668, %v2660
        %v3213 = vpack.c.b16 %v2669, %v2661
        %v3214 = vpack.c.b16 %v2670, %v2662
        %v3215 = vpack.c.b16 %v2671, %v2663
        %v3216 = vpack.c.b16 %v2680, %v2672
        %v3217 = vpack.c.b16 %v2681, %v2673
        %v3218 = vpack.c.b16 %v2682, %v2674
        %v3219 = vpack.c.b16 %v2683, %v2675
        %v3220 = vpack.c.b16 %v2684, %v2676
        %v3221 = vpack.c.b16 %v2685, %v2677
        %v3222 = vpack.c.b16 %v2686, %v2678
        %v3223 = vpack.c.b16 %v2687, %v2679
        %v3224 = vpack.c.b16 %v2696, %v2688
        %v3225 = vpack.c.b16 %v2697, %v2689
        %v3226 = vpack.c.b16 %v2698, %v2690
        %v3227 = vpack.c.b16 %v2699, %v2691
        %v3228 = vpack.c.b16 %v2700, %v2692
        %v3229 = vpack.c.b16 %v2701, %v2693
        %v3230 = vpack.c.b16 %v2702, %v2694
        %v3231 = vpack.c.b16 %v2703, %v2695
        %v3232 = vpack.c.b16 %v2712, %v2704
        %v3233 = vpack.c.b16 %v2713, %v2705
        %v3234 = vpack.c.b16 %v2714, %v2706
        %v3235 = vpack.c.b16 %v2715, %v2707
        %v3236 = vpack.c.b16 %v2716, %v2708
        %v3237 = vpack.c.b16 %v2717, %v2709
        %v3238 = vpack.c.b16 %v2718, %v2710
        %v3239 = vpack.c.b16 %v2719, %v2711
        %vm3752 = vcmask 97280
        %v3754 = vsel %vm3752, %v1151, 0
        %vm3756 = vcmask 1045504
        %v3758 = vsel %vm3756, %v3232, 0
        %v3761 = vsel %vm3756, %v3233, 0
        %v3764 = vsel %vm3756, %v3234, 0
        %v3767 = vsel %vm3756, %v3235, 0
        %v3770 = vsel %vm3756, %v3236, 0
        %v3773 = vsel %vm3756, %v3237, 0
        %v3776 = vsel %vm3756, %v3238, 0
        %v3779 = vsel %vm3756, %v3239, 0
        %3781 = vmatprep.subr.bf16.mxu0 %v2721
        %3782 = vmatpush1.bf16.msra.mxu0 %v2720
        %3783 = vmatprep.subr.bf16.mxu0 %v2729
        %3784 = vmatpush1.bf16.msra.mxu0 %v2728
        %3785 = vmatprep.subr.bf16.mxu0 %v2737
        %3786 = vmatpush1.bf16.msra.mxu0 %v2736
        %3787 = vmatprep.subr.bf16.mxu0 %v2745
        %3788 = vmatpush1.bf16.msra.mxu0 %v2744
        %3789 = vmatprep.subr.bf16.mxu0 %v2753
        %3790 = vmatpush1.bf16.msra.mxu0 %v2752
        %3791 = vmatprep.subr.bf16.mxu0 %v2761
        %3792 = vmatpush1.bf16.msra.mxu0 %v2760
        %3793 = vmatprep.subr.bf16.mxu0 %v2769
        %3794 = vmatpush1.bf16.msra.mxu0 %v2768
        %3795 = vmatprep.subr.bf16.mxu0 %v2777
        %3796 = vmatpush1.bf16.msra.mxu0 %v2776
        %3797 = vmatprep.subr.bf16.mxu0 %v2785
        %3798 = vmatpush1.bf16.msra.mxu0 %v2784
        %3799 = vmatprep.subr.bf16.mxu0 %v2793
        %3800 = vmatpush1.bf16.msra.mxu0 %v2792
        %3801 = vmatprep.subr.bf16.mxu0 %v2801
        %3802 = vmatpush1.bf16.msra.mxu0 %v2800
        %3803 = vmatprep.subr.bf16.mxu0 %v2809
        %3804 = vmatpush1.bf16.msra.mxu0 %v2808
        %3805 = vmatprep.subr.bf16.mxu0 %v2817
        %3806 = vmatpush1.bf16.msra.mxu0 %v2816
        %3807 = vmatprep.subr.bf16.mxu0 %v2825
        %3808 = vmatpush1.bf16.msra.mxu0 %v2824
        %3809 = vmatprep.subr.bf16.mxu0 %v2833
        %3810 = vmatpush1.bf16.msra.mxu0 %v2832
        %3811 = vmatprep.subr.bf16.mxu0 %v2841
        %3812 = vmatpush1.bf16.msra.mxu0 %v2840
        %3813 = vmatprep.mubr.bf16.mxu0 %v1144
        %3814 = vmatmul.mubr.bf16.gmra.mrb[0].mxu0 %v1143
        %v3815 = vpop.f32.mrb[0].mxu0
        %v3816 = vadd.f32 0.0, %v3815
        %v3817 = vpop.f32.mrb[0].mxu0
        %v3818 = vadd.f32 0.0, %v3817
        %v3819 = vpop.f32.mrb[0].mxu0
        %v3820 = vadd.f32 0.0, %v3819
        %v3821 = vpop.f32.mrb[0].mxu0
        %v3822 = vadd.f32 0.0, %v3821
        %3823 = vdwg.mxu0
        %3824 = vmatprep.subr.bf16.mxu0 %v2849
        %3825 = vmatpush1.bf16.msra.mxu0 %v2848
        %3826 = vmatprep.subr.bf16.mxu0 %v2857
        %3827 = vmatpush1.bf16.msra.mxu0 %v2856
        %3828 = vmatprep.subr.bf16.mxu0 %v2865
        %3829 = vmatpush1.bf16.msra.mxu0 %v2864
        %3830 = vmatprep.subr.bf16.mxu0 %v2873
        %3831 = vmatpush1.bf16.msra.mxu0 %v2872
        %3832 = vmatprep.subr.bf16.mxu0 %v2881
        %3833 = vmatpush1.bf16.msra.mxu0 %v2880
        %3834 = vmatprep.subr.bf16.mxu0 %v2889
        %3835 = vmatpush1.bf16.msra.mxu0 %v2888
        %3836 = vmatprep.subr.bf16.mxu0 %v2897
        %3837 = vmatpush1.bf16.msra.mxu0 %v2896
        %3838 = vmatprep.subr.bf16.mxu0 %v2905
        %3839 = vmatpush1.bf16.msra.mxu0 %v2904
        %3840 = vmatprep.subr.bf16.mxu0 %v2913
        %3841 = vmatpush1.bf16.msra.mxu0 %v2912
        %3842 = vmatprep.subr.bf16.mxu0 %v2921
        %3843 = vmatpush1.bf16.msra.mxu0 %v2920
        %3844 = vmatprep.subr.bf16.mxu0 %v2929
        %3845 = vmatpush1.bf16.msra.mxu0 %v2928
        %3846 = vmatprep.subr.bf16.mxu0 %v2937
        %3847 = vmatpush1.bf16.msra.mxu0 %v2936
        %3848 = vmatprep.subr.bf16.mxu0 %v2945
        %3849 = vmatpush1.bf16.msra.mxu0 %v2944
        %3850 = vmatprep.subr.bf16.mxu0 %v2953
        %3851 = vmatpush1.bf16.msra.mxu0 %v2952
        %3852 = vmatprep.subr.bf16.mxu0 %v2961
        %3853 = vmatpush1.bf16.msra.mxu0 %v2960
        %3854 = vmatprep.subr.bf16.mxu0 %v2969
        %3855 = vmatpush1.bf16.msra.mxu0 %v2968
        %3856 = vmatprep.mubr.bf16.mxu0 %v1146
        %3857 = vmatmul.mubr.bf16.gmra.mrb[0].mxu0 %v1145
        %v3858 = vpop.f32.mrb[0].mxu0
        %v3859 = vadd.f32 %v3816, %v3858
        %v3860 = vpop.f32.mrb[0].mxu0
        %v3861 = vadd.f32 %v3818, %v3860
        %v3862 = vpop.f32.mrb[0].mxu0
        %v3863 = vadd.f32 %v3820, %v3862
        %v3864 = vpop.f32.mrb[0].mxu0
        %v3865 = vadd.f32 %v3822, %v3864
        %3866 = vdwg.mxu0
        %3867 = vmatprep.subr.bf16.mxu0 %v2977
        %3868 = vmatpush1.bf16.msra.mxu0 %v2976
        %3869 = vmatprep.subr.bf16.mxu0 %v2985
        %3870 = vmatpush1.bf16.msra.mxu0 %v2984
        %3871 = vmatprep.subr.bf16.mxu0 %v2993
        %3872 = vmatpush1.bf16.msra.mxu0 %v2992
        %3873 = vmatprep.subr.bf16.mxu0 %v3001
        %3874 = vmatpush1.bf16.msra.mxu0 %v3000
        %3875 = vmatprep.subr.bf16.mxu0 %v3009
        %3876 = vmatpush1.bf16.msra.mxu0 %v3008
        %3877 = vmatprep.subr.bf16.mxu0 %v3017
        %3878 = vmatpush1.bf16.msra.mxu0 %v3016
        %3879 = vmatprep.subr.bf16.mxu0 %v3025
        %3880 = vmatpush1.bf16.msra.mxu0 %v3024
        %3881 = vmatprep.subr.bf16.mxu0 %v3033
        %3882 = vmatpush1.bf16.msra.mxu0 %v3032
        %3883 = vmatprep.subr.bf16.mxu0 %v3041
        %3884 = vmatpush1.bf16.msra.mxu0 %v3040
        %3885 = vmatprep.subr.bf16.mxu0 %v3049
        %3886 = vmatpush1.bf16.msra.mxu0 %v3048
        %3887 = vmatprep.subr.bf16.mxu0 %v3057
        %3888 = vmatpush1.bf16.msra.mxu0 %v3056
        %3889 = vmatprep.subr.bf16.mxu0 %v3065
        %3890 = vmatpush1.bf16.msra.mxu0 %v3064
        %3891 = vmatprep.subr.bf16.mxu0 %v3073
        %3892 = vmatpush1.bf16.msra.mxu0 %v3072
        %3893 = vmatprep.subr.bf16.mxu0 %v3081
        %3894 = vmatpush1.bf16.msra.mxu0 %v3080
        %3895 = vmatprep.subr.bf16.mxu0 %v3089
        %3896 = vmatpush1.bf16.msra.mxu0 %v3088
        %3897 = vmatprep.subr.bf16.mxu0 %v3097
        %3898 = vmatpush1.bf16.msra.mxu0 %v3096
        %3899 = vmatprep.mubr.bf16.mxu0 %v1148
        %3900 = vmatmul.mubr.bf16.gmra.mrb[0].mxu0 %v1147
        %v3901 = vpop.f32.mrb[0].mxu0
        %v3902 = vadd.f32 %v3859, %v3901
        %v3903 = vpop.f32.mrb[0].mxu0
        %v3904 = vadd.f32 %v3861, %v3903
        %v3905 = vpop.f32.mrb[0].mxu0
        %v3906 = vadd.f32 %v3863, %v3905
        %v3907 = vpop.f32.mrb[0].mxu0
        %v3908 = vadd.f32 %v3865, %v3907
        %3909 = vdwg.mxu0
        %3910 = vmatprep.subr.bf16.mxu0 %v3105
        %3911 = vmatpush1.bf16.msra.mxu0 %v3104
        %3912 = vmatprep.subr.bf16.mxu0 %v3113
        %3913 = vmatpush1.bf16.msra.mxu0 %v3112
        %3914 = vmatprep.subr.bf16.mxu0 %v3121
        %3915 = vmatpush1.bf16.msra.mxu0 %v3120
        %3916 = vmatprep.subr.bf16.mxu0 %v3129
        %3917 = vmatpush1.bf16.msra.mxu0 %v3128
        %3918 = vmatprep.subr.bf16.mxu0 %v3137
        %3919 = vmatpush1.bf16.msra.mxu0 %v3136
        %3920 = vmatprep.subr.bf16.mxu0 %v3145
        %3921 = vmatpush1.bf16.msra.mxu0 %v3144
        %3922 = vmatprep.subr.bf16.mxu0 %v3153
        %3923 = vmatpush1.bf16.msra.mxu0 %v3152
        %3924 = vmatprep.subr.bf16.mxu0 %v3161
        %3925 = vmatpush1.bf16.msra.mxu0 %v3160
        %3926 = vmatprep.subr.bf16.mxu0 %v3169
        %3927 = vmatpush1.bf16.msra.mxu0 %v3168
        %3928 = vmatprep.subr.bf16.mxu0 %v3177
        %3929 = vmatpush1.bf16.msra.mxu0 %v3176
        %3930 = vmatprep.subr.bf16.mxu0 %v3185
        %3931 = vmatpush1.bf16.msra.mxu0 %v3184
        %3932 = vmatprep.subr.bf16.mxu0 %v3193
        %3933 = vmatpush1.bf16.msra.mxu0 %v3192
        %3934 = vmatprep.subr.bf16.mxu0 %v3201
        %3935 = vmatpush1.bf16.msra.mxu0 %v3200
        %3936 = vmatprep.subr.bf16.mxu0 %v3209
        %3937 = vmatpush1.bf16.msra.mxu0 %v3208
        %3938 = vmatprep.subr.bf16.mxu0 %v3217
        %3939 = vmatpush1.bf16.msra.mxu0 %v3216
        %3940 = vmatprep.subr.bf16.mxu0 %v3225
        %3941 = vmatpush1.bf16.msra.mxu0 %v3224
        %3942 = vmatprep.mubr.bf16.mxu0 %v1150
        %3943 = vmatmul.mubr.bf16.gmra.mrb[0].mxu0 %v1149
        %v3944 = vpop.f32.mrb[0].mxu0
        %v3945 = vadd.f32 %v3902, %v3944
        %v3946 = vpop.f32.mrb[0].mxu0
        %v3947 = vadd.f32 %v3904, %v3946
        %v3948 = vpop.f32.mrb[0].mxu0
        %v3949 = vadd.f32 %v3906, %v3948
        %v3950 = vpop.f32.mrb[0].mxu0
        %v3951 = vadd.f32 %v3908, %v3950
        %3952 = vdwg.mxu0
        %3953 = vmatprep.subr.bf16.mxu0 %v3761
        %3954 = vmatpush1.bf16.msra.mxu0 %v3758
        %3955 = vmatprep.subr.bf16.mxu0 0
        %3956 = vmatpush1.bf16.msra.mxu0 0
        %3957 = vmatprep.subr.bf16.mxu0 0
        %3958 = vmatpush1.bf16.msra.mxu0 0
        %3959 = vmatprep.subr.bf16.mxu0 0
        %3960 = vmatpush1.bf16.msra.mxu0 0
        %3961 = vmatprep.subr.bf16.mxu0 0
        %3962 = vmatpush1.bf16.msra.mxu0 0
        %3963 = vmatprep.subr.bf16.mxu0 0
        %3964 = vmatpush1.bf16.msra.mxu0 0
        %3965 = vmatprep.subr.bf16.mxu0 0
        %3966 = vmatpush1.bf16.msra.mxu0 0
        %3967 = vmatprep.subr.bf16.mxu0 0
        %3968 = vmatpush1.bf16.msra.mxu0 0
        %3969 = vmatprep.subr.bf16.mxu0 0
        %3970 = vmatpush1.bf16.msra.mxu0 0
        %3971 = vmatprep.subr.bf16.mxu0 0
        %3972 = vmatpush1.bf16.msra.mxu0 0
        %3973 = vmatprep.subr.bf16.mxu0 0
        %3974 = vmatpush1.bf16.msra.mxu0 0
        %3975 = vmatprep.subr.bf16.mxu0 0
        %3976 = vmatpush1.bf16.msra.mxu0 0
        %3977 = vmatprep.subr.bf16.mxu0 0
        %3978 = vmatpush1.bf16.msra.mxu0 0
        %3979 = vmatprep.subr.bf16.mxu0 0
        %3980 = vmatpush1.bf16.msra.mxu0 0
        %3981 = vmatprep.subr.bf16.mxu0 0
        %3982 = vmatpush1.bf16.msra.mxu0 0
        %3983 = vmatprep.subr.bf16.mxu0 0
        %3984 = vmatpush1.bf16.msra.mxu0 0
        %3985 = vmatprep.mubr.bf16.mxu0 0
        %3986 = vmatmul.mubr.bf16.gmra.mrb[0].mxu0 %v3754
        %v3987 = vpop.f32.mrb[0].mxu0
        %v3988 = vadd.f32 %v3945, %v3987
        %v3989 = vpop.f32.mrb[0].mxu0
        %v3990 = vadd.f32 %v3947, %v3989
        %v3991 = vpop.f32.mrb[0].mxu0
        %v3992 = vadd.f32 %v3949, %v3991
        %v3993 = vpop.f32.mrb[0].mxu0
        %v3994 = vadd.f32 %v3951, %v3993
        %3995 = vdwg.mxu0
        %3996 = vmatprep.subr.bf16.mxu0 %v2723
        %3997 = vmatpush1.bf16.msra.mxu0 %v2722
        %3998 = vmatprep.subr.bf16.mxu0 %v2731
        %3999 = vmatpush1.bf16.msra.mxu0 %v2730
        %4000 = vmatprep.subr.bf16.mxu0 %v2739
        %4001 = vmatpush1.bf16.msra.mxu0 %v2738
        %4002 = vmatprep.subr.bf16.mxu0 %v2747
        %4003 = vmatpush1.bf16.msra.mxu0 %v2746
        %4004 = vmatprep.subr.bf16.mxu0 %v2755
        %4005 = vmatpush1.bf16.msra.mxu0 %v2754
        %4006 = vmatprep.subr.bf16.mxu0 %v2763
        %4007 = vmatpush1.bf16.msra.mxu0 %v2762
        %4008 = vmatprep.subr.bf16.mxu0 %v2771
        %4009 = vmatpush1.bf16.msra.mxu0 %v2770
        %4010 = vmatprep.subr.bf16.mxu0 %v2779
        %4011 = vmatpush1.bf16.msra.mxu0 %v2778
        %4012 = vmatprep.subr.bf16.mxu0 %v2787
        %4013 = vmatpush1.bf16.msra.mxu0 %v2786
        %4014 = vmatprep.subr.bf16.mxu0 %v2795
        %4015 = vmatpush1.bf16.msra.mxu0 %v2794
        %4016 = vmatprep.subr.bf16.mxu0 %v2803
        %4017 = vmatpush1.bf16.msra.mxu0 %v2802
        %4018 = vmatprep.subr.bf16.mxu0 %v2811
        %4019 = vmatpush1.bf16.msra.mxu0 %v2810
        %4020 = vmatprep.subr.bf16.mxu0 %v2819
        %4021 = vmatpush1.bf16.msra.mxu0 %v2818
        %4022 = vmatprep.subr.bf16.mxu0 %v2827
        %4023 = vmatpush1.bf16.msra.mxu0 %v2826
        %4024 = vmatprep.subr.bf16.mxu0 %v2835
        %4025 = vmatpush1.bf16.msra.mxu0 %v2834
        %4026 = vmatprep.subr.bf16.mxu0 %v2843
        %4027 = vmatpush1.bf16.msra.mxu0 %v2842
        %4028 = vmatprep.mubr.bf16.mxu0 %v1144
        %4029 = vmatmul.mubr.bf16.gmra.mrb[0].mxu0 %v1143
        %v4030 = vpop.f32.mrb[0].mxu0
        %v4031 = vadd.f32 0.0, %v4030
        %v4032 = vpop.f32.mrb[0].mxu0
        %v4033 = vadd.f32 0.0, %v4032
        %v4034 = vpop.f32.mrb[0].mxu0
        %v4035 = vadd.f32 0.0, %v4034
        %v4036 = vpop.f32.mrb[0].mxu0
        %v4037 = vadd.f32 0.0, %v4036
        %4038 = vdwg.mxu0
        %4039 = vmatprep.subr.bf16.mxu0 %v2851
        %4040 = vmatpush1.bf16.msra.mxu0 %v2850
        %4041 = vmatprep.subr.bf16.mxu0 %v2859
        %4042 = vmatpush1.bf16.msra.mxu0 %v2858
        %4043 = vmatprep.subr.bf16.mxu0 %v2867
        %4044 = vmatpush1.bf16.msra.mxu0 %v2866
        %4045 = vmatprep.subr.bf16.mxu0 %v2875
        %4046 = vmatpush1.bf16.msra.mxu0 %v2874
        %4047 = vmatprep.subr.bf16.mxu0 %v2883
        %4048 = vmatpush1.bf16.msra.mxu0 %v2882
        %4049 = vmatprep.subr.bf16.mxu0 %v2891
        %4050 = vmatpush1.bf16.msra.mxu0 %v2890
        %4051 = vmatprep.subr.bf16.mxu0 %v2899
        %4052 = vmatpush1.bf16.msra.mxu0 %v2898
        %4053 = vmatprep.subr.bf16.mxu0 %v2907
        %4054 = vmatpush1.bf16.msra.mxu0 %v2906
        %4055 = vmatprep.subr.bf16.mxu0 %v2915
        %4056 = vmatpush1.bf16.msra.mxu0 %v2914
        %4057 = vmatprep.subr.bf16.mxu0 %v2923
        %4058 = vmatpush1.bf16.msra.mxu0 %v2922
        %4059 = vmatprep.subr.bf16.mxu0 %v2931
        %4060 = vmatpush1.bf16.msra.mxu0 %v2930
        %4061 = vmatprep.subr.bf16.mxu0 %v2939
        %4062 = vmatpush1.bf16.msra.mxu0 %v2938
        %4063 = vmatprep.subr.bf16.mxu0 %v2947
        %4064 = vmatpush1.bf16.msra.mxu0 %v2946
        %4065 = vmatprep.subr.bf16.mxu0 %v2955
        %4066 = vmatpush1.bf16.msra.mxu0 %v2954
        %4067 = vmatprep.subr.bf16.mxu0 %v2963
        %4068 = vmatpush1.bf16.msra.mxu0 %v2962
        %4069 = vmatprep.subr.bf16.mxu0 %v2971
        %4070 = vmatpush1.bf16.msra.mxu0 %v2970
        %4071 = vmatprep.mubr.bf16.mxu0 %v1146
        %4072 = vmatmul.mubr.bf16.gmra.mrb[0].mxu0 %v1145
        %v4073 = vpop.f32.mrb[0].mxu0
        %v4074 = vadd.f32 %v4031, %v4073
        %v4075 = vpop.f32.mrb[0].mxu0
        %v4076 = vadd.f32 %v4033, %v4075
        %v4077 = vpop.f32.mrb[0].mxu0
        %v4078 = vadd.f32 %v4035, %v4077
        %v4079 = vpop.f32.mrb[0].mxu0
        %v4080 = vadd.f32 %v4037, %v4079
        %4081 = vdwg.mxu0
        %4082 = vmatprep.subr.bf16.mxu0 %v2979
        %4083 = vmatpush1.bf16.msra.mxu0 %v2978
        %4084 = vmatprep.subr.bf16.mxu0 %v2987
        %4085 = vmatpush1.bf16.msra.mxu0 %v2986
        %4086 = vmatprep.subr.bf16.mxu0 %v2995
        %4087 = vmatpush1.bf16.msra.mxu0 %v2994
        %4088 = vmatprep.subr.bf16.mxu0 %v3003
        %4089 = vmatpush1.bf16.msra.mxu0 %v3002
        %4090 = vmatprep.subr.bf16.mxu0 %v3011
        %4091 = vmatpush1.bf16.msra.mxu0 %v3010
        %4092 = vmatprep.subr.bf16.mxu0 %v3019
        %4093 = vmatpush1.bf16.msra.mxu0 %v3018
        %4094 = vmatprep.subr.bf16.mxu0 %v3027
        %4095 = vmatpush1.bf16.msra.mxu0 %v3026
        %4096 = vmatprep.subr.bf16.mxu0 %v3035
        %4097 = vmatpush1.bf16.msra.mxu0 %v3034
        %4098 = vmatprep.subr.bf16.mxu0 %v3043
        %4099 = vmatpush1.bf16.msra.mxu0 %v3042
        %4100 = vmatprep.subr.bf16.mxu0 %v3051
        %4101 = vmatpush1.bf16.msra.mxu0 %v3050
        %4102 = vmatprep.subr.bf16.mxu0 %v3059
        %4103 = vmatpush1.bf16.msra.mxu0 %v3058
        %4104 = vmatprep.subr.bf16.mxu0 %v3067
        %4105 = vmatpush1.bf16.msra.mxu0 %v3066
        %4106 = vmatprep.subr.bf16.mxu0 %v3075
        %4107 = vmatpush1.bf16.msra.mxu0 %v3074
        %4108 = vmatprep.subr.bf16.mxu0 %v3083
        %4109 = vmatpush1.bf16.msra.mxu0 %v3082
        %4110 = vmatprep.subr.bf16.mxu0 %v3091
        %4111 = vmatpush1.bf16.msra.mxu0 %v3090
        %4112 = vmatprep.subr.bf16.mxu0 %v3099
        %4113 = vmatpush1.bf16.msra.mxu0 %v3098
        %4114 = vmatprep.mubr.bf16.mxu0 %v1148
        %4115 = vmatmul.mubr.bf16.gmra.mrb[0].mxu0 %v1147
        %v4116 = vpop.f32.mrb[0].mxu0
        %v4117 = vadd.f32 %v4074, %v4116
        %v4118 = vpop.f32.mrb[0].mxu0
        %v4119 = vadd.f32 %v4076, %v4118
        %v4120 = vpop.f32.mrb[0].mxu0
        %v4121 = vadd.f32 %v4078, %v4120
        %v4122 = vpop.f32.mrb[0].mxu0
        %v4123 = vadd.f32 %v4080, %v4122
        %4124 = vdwg.mxu0
        %4125 = vmatprep.subr.bf16.mxu0 %v3107
        %4126 = vmatpush1.bf16.msra.mxu0 %v3106
        %4127 = vmatprep.subr.bf16.mxu0 %v3115
        %4128 = vmatpush1.bf16.msra.mxu0 %v3114
        %4129 = vmatprep.subr.bf16.mxu0 %v3123
        %4130 = vmatpush1.bf16.msra.mxu0 %v3122
        %4131 = vmatprep.subr.bf16.mxu0 %v3131
        %4132 = vmatpush1.bf16.msra.mxu0 %v3130
        %4133 = vmatprep.subr.bf16.mxu0 %v3139
        %4134 = vmatpush1.bf16.msra.mxu0 %v3138
        %4135 = vmatprep.subr.bf16.mxu0 %v3147
        %4136 = vmatpush1.bf16.msra.mxu0 %v3146
        %4137 = vmatprep.subr.bf16.mxu0 %v3155
        %4138 = vmatpush1.bf16.msra.mxu0 %v3154
        %4139 = vmatprep.subr.bf16.mxu0 %v3163
        %4140 = vmatpush1.bf16.msra.mxu0 %v3162
        %4141 = vmatprep.subr.bf16.mxu0 %v3171
        %4142 = vmatpush1.bf16.msra.mxu0 %v3170
        %4143 = vmatprep.subr.bf16.mxu0 %v3179
        %4144 = vmatpush1.bf16.msra.mxu0 %v3178
        %4145 = vmatprep.subr.bf16.mxu0 %v3187
        %4146 = vmatpush1.bf16.msra.mxu0 %v3186
        %4147 = vmatprep.subr.bf16.mxu0 %v3195
        %4148 = vmatpush1.bf16.msra.mxu0 %v3194
        %4149 = vmatprep.subr.bf16.mxu0 %v3203
        %4150 = vmatpush1.bf16.msra.mxu0 %v3202
        %4151 = vmatprep.subr.bf16.mxu0 %v3211
        %4152 = vmatpush1.bf16.msra.mxu0 %v3210
        %4153 = vmatprep.subr.bf16.mxu0 %v3219
        %4154 = vmatpush1.bf16.msra.mxu0 %v3218
        %4155 = vmatprep.subr.bf16.mxu0 %v3227
        %4156 = vmatpush1.bf16.msra.mxu0 %v3226
        %4157 = vmatprep.mubr.bf16.mxu0 %v1150
        %4158 = vmatmul.mubr.bf16.gmra.mrb[0].mxu0 %v1149
        %v4159 = vpop.f32.mrb[0].mxu0
        %v4160 = vadd.f32 %v4117, %v4159
        %v4161 = vpop.f32.mrb[0].mxu0
        %v4162 = vadd.f32 %v4119, %v4161
        %v4163 = vpop.f32.mrb[0].mxu0
        %v4164 = vadd.f32 %v4121, %v4163
        %v4165 = vpop.f32.mrb[0].mxu0
        %v4166 = vadd.f32 %v4123, %v4165
        %4167 = vdwg.mxu0
        %4168 = vmatprep.subr.bf16.mxu0 %v3767
        %4169 = vmatpush1.bf16.msra.mxu0 %v3764
        %4170 = vmatprep.subr.bf16.mxu0 0
        %4171 = vmatpush1.bf16.msra.mxu0 0
        %4172 = vmatprep.subr.bf16.mxu0 0
        %4173 = vmatpush1.bf16.msra.mxu0 0
        %4174 = vmatprep.subr.bf16.mxu0 0
        %4175 = vmatpush1.bf16.msra.mxu0 0
        %4176 = vmatprep.subr.bf16.mxu0 0
        %4177 = vmatpush1.bf16.msra.mxu0 0
        %4178 = vmatprep.subr.bf16.mxu0 0
        %4179 = vmatpush1.bf16.msra.mxu0 0
        %4180 = vmatprep.subr.bf16.mxu0 0
        %4181 = vmatpush1.bf16.msra.mxu0 0
        %4182 = vmatprep.subr.bf16.mxu0 0
        %4183 = vmatpush1.bf16.msra.mxu0 0
        %4184 = vmatprep.subr.bf16.mxu0 0
        %4185 = vmatpush1.bf16.msra.mxu0 0
        %4186 = vmatprep.subr.bf16.mxu0 0
        %4187 = vmatpush1.bf16.msra.mxu0 0
        %4188 = vmatprep.subr.bf16.mxu0 0
        %4189 = vmatpush1.bf16.msra.mxu0 0
        %4190 = vmatprep.subr.bf16.mxu0 0
        %4191 = vmatpush1.bf16.msra.mxu0 0
        %4192 = vmatprep.subr.bf16.mxu0 0
        %4193 = vmatpush1.bf16.msra.mxu0 0
        %4194 = vmatprep.subr.bf16.mxu0 0
        %4195 = vmatpush1.bf16.msra.mxu0 0
        %4196 = vmatprep.subr.bf16.mxu0 0
        %4197 = vmatpush1.bf16.msra.mxu0 0
        %4198 = vmatprep.subr.bf16.mxu0 0
        %4199 = vmatpush1.bf16.msra.mxu0 0
        %4200 = vmatprep.mubr.bf16.mxu0 0
        %4201 = vmatmul.mubr.bf16.gmra.mrb[0].mxu0 %v3754
        %v4202 = vpop.f32.mrb[0].mxu0
        %v4203 = vadd.f32 %v4160, %v4202
        %v4204 = vpop.f32.mrb[0].mxu0
        %v4205 = vadd.f32 %v4162, %v4204
        %v4206 = vpop.f32.mrb[0].mxu0
        %v4207 = vadd.f32 %v4164, %v4206
        %v4208 = vpop.f32.mrb[0].mxu0
        %v4209 = vadd.f32 %v4166, %v4208
        %4210 = vdwg.mxu0
        %4211 = vmatprep.subr.bf16.mxu0 %v2725
        %4212 = vmatpush1.bf16.msra.mxu0 %v2724
        %4213 = vmatprep.subr.bf16.mxu0 %v2733
        %4214 = vmatpush1.bf16.msra.mxu0 %v2732
        %4215 = vmatprep.subr.bf16.mxu0 %v2741
        %4216 = vmatpush1.bf16.msra.mxu0 %v2740
        %4217 = vmatprep.subr.bf16.mxu0 %v2749
        %4218 = vmatpush1.bf16.msra.mxu0 %v2748
        %4219 = vmatprep.subr.bf16.mxu0 %v2757
        %4220 = vmatpush1.bf16.msra.mxu0 %v2756
        %4221 = vmatprep.subr.bf16.mxu0 %v2765
        %4222 = vmatpush1.bf16.msra.mxu0 %v2764
        %4223 = vmatprep.subr.bf16.mxu0 %v2773
        %4224 = vmatpush1.bf16.msra.mxu0 %v2772
        %4225 = vmatprep.subr.bf16.mxu0 %v2781
        %4226 = vmatpush1.bf16.msra.mxu0 %v2780
        %4227 = vmatprep.subr.bf16.mxu0 %v2789
        %4228 = vmatpush1.bf16.msra.mxu0 %v2788
        %4229 = vmatprep.subr.bf16.mxu0 %v2797
        %4230 = vmatpush1.bf16.msra.mxu0 %v2796
        %4231 = vmatprep.subr.bf16.mxu0 %v2805
        %4232 = vmatpush1.bf16.msra.mxu0 %v2804
        %4233 = vmatprep.subr.bf16.mxu0 %v2813
        %4234 = vmatpush1.bf16.msra.mxu0 %v2812
        %4235 = vmatprep.subr.bf16.mxu0 %v2821
        %4236 = vmatpush1.bf16.msra.mxu0 %v2820
        %4237 = vmatprep.subr.bf16.mxu0 %v2829
        %4238 = vmatpush1.bf16.msra.mxu0 %v2828
        %4239 = vmatprep.subr.bf16.mxu0 %v2837
        %4240 = vmatpush1.bf16.msra.mxu0 %v2836
        %4241 = vmatprep.subr.bf16.mxu0 %v2845
        %4242 = vmatpush1.bf16.msra.mxu0 %v2844
        %4243 = vmatprep.mubr.bf16.mxu0 %v1144
        %4244 = vmatmul.mubr.bf16.gmra.mrb[0].mxu0 %v1143
        %v4245 = vpop.f32.mrb[0].mxu0
        %v4246 = vadd.f32 0.0, %v4245
        %v4247 = vpop.f32.mrb[0].mxu0
        %v4248 = vadd.f32 0.0, %v4247
        %v4249 = vpop.f32.mrb[0].mxu0
        %v4250 = vadd.f32 0.0, %v4249
        %v4251 = vpop.f32.mrb[0].mxu0
        %v4252 = vadd.f32 0.0, %v4251
        %4253 = vdwg.mxu0
        %4254 = vmatprep.subr.bf16.mxu0 %v2853
        %4255 = vmatpush1.bf16.msra.mxu0 %v2852
        %4256 = vmatprep.subr.bf16.mxu0 %v2861
        %4257 = vmatpush1.bf16.msra.mxu0 %v2860
        %4258 = vmatprep.subr.bf16.mxu0 %v2869
        %4259 = vmatpush1.bf16.msra.mxu0 %v2868
        %4260 = vmatprep.subr.bf16.mxu0 %v2877
        %4261 = vmatpush1.bf16.msra.mxu0 %v2876
        %4262 = vmatprep.subr.bf16.mxu0 %v2885
        %4263 = vmatpush1.bf16.msra.mxu0 %v2884
        %4264 = vmatprep.subr.bf16.mxu0 %v2893
        %4265 = vmatpush1.bf16.msra.mxu0 %v2892
        %4266 = vmatprep.subr.bf16.mxu0 %v2901
        %4267 = vmatpush1.bf16.msra.mxu0 %v2900
        %4268 = vmatprep.subr.bf16.mxu0 %v2909
        %4269 = vmatpush1.bf16.msra.mxu0 %v2908
        %4270 = vmatprep.subr.bf16.mxu0 %v2917
        %4271 = vmatpush1.bf16.msra.mxu0 %v2916
        %4272 = vmatprep.subr.bf16.mxu0 %v2925
        %4273 = vmatpush1.bf16.msra.mxu0 %v2924
        %4274 = vmatprep.subr.bf16.mxu0 %v2933
        %4275 = vmatpush1.bf16.msra.mxu0 %v2932
        %4276 = vmatprep.subr.bf16.mxu0 %v2941
        %4277 = vmatpush1.bf16.msra.mxu0 %v2940
        %4278 = vmatprep.subr.bf16.mxu0 %v2949
        %4279 = vmatpush1.bf16.msra.mxu0 %v2948
        %4280 = vmatprep.subr.bf16.mxu0 %v2957
        %4281 = vmatpush1.bf16.msra.mxu0 %v2956
        %4282 = vmatprep.subr.bf16.mxu0 %v2965
        %4283 = vmatpush1.bf16.msra.mxu0 %v2964
        %4284 = vmatprep.subr.bf16.mxu0 %v2973
        %4285 = vmatpush1.bf16.msra.mxu0 %v2972
        %4286 = vmatprep.mubr.bf16.mxu0 %v1146
        %4287 = vmatmul.mubr.bf16.gmra.mrb[0].mxu0 %v1145
        %v4288 = vpop.f32.mrb[0].mxu0
        %v4289 = vadd.f32 %v4246, %v4288
        %v4290 = vpop.f32.mrb[0].mxu0
        %v4291 = vadd.f32 %v4248, %v4290
        %v4292 = vpop.f32.mrb[0].mxu0
        %v4293 = vadd.f32 %v4250, %v4292
        %v4294 = vpop.f32.mrb[0].mxu0
        %v4295 = vadd.f32 %v4252, %v4294
        %4296 = vdwg.mxu0
        %4297 = vmatprep.subr.bf16.mxu0 %v2981
        %4298 = vmatpush1.bf16.msra.mxu0 %v2980
        %4299 = vmatprep.subr.bf16.mxu0 %v2989
        %4300 = vmatpush1.bf16.msra.mxu0 %v2988
        %4301 = vmatprep.subr.bf16.mxu0 %v2997
        %4302 = vmatpush1.bf16.msra.mxu0 %v2996
        %4303 = vmatprep.subr.bf16.mxu0 %v3005
        %4304 = vmatpush1.bf16.msra.mxu0 %v3004
        %4305 = vmatprep.subr.bf16.mxu0 %v3013
        %4306 = vmatpush1.bf16.msra.mxu0 %v3012
        %4307 = vmatprep.subr.bf16.mxu0 %v3021
        %4308 = vmatpush1.bf16.msra.mxu0 %v3020
        %4309 = vmatprep.subr.bf16.mxu0 %v3029
        %4310 = vmatpush1.bf16.msra.mxu0 %v3028
        %4311 = vmatprep.subr.bf16.mxu0 %v3037
        %4312 = vmatpush1.bf16.msra.mxu0 %v3036
        %4313 = vmatprep.subr.bf16.mxu0 %v3045
        %4314 = vmatpush1.bf16.msra.mxu0 %v3044
        %4315 = vmatprep.subr.bf16.mxu0 %v3053
        %4316 = vmatpush1.bf16.msra.mxu0 %v3052
        %4317 = vmatprep.subr.bf16.mxu0 %v3061
        %4318 = vmatpush1.bf16.msra.mxu0 %v3060
        %4319 = vmatprep.subr.bf16.mxu0 %v3069
        %4320 = vmatpush1.bf16.msra.mxu0 %v3068
        %4321 = vmatprep.subr.bf16.mxu0 %v3077
        %4322 = vmatpush1.bf16.msra.mxu0 %v3076
        %4323 = vmatprep.subr.bf16.mxu0 %v3085
        %4324 = vmatpush1.bf16.msra.mxu0 %v3084
        %4325 = vmatprep.subr.bf16.mxu0 %v3093
        %4326 = vmatpush1.bf16.msra.mxu0 %v3092
        %4327 = vmatprep.subr.bf16.mxu0 %v3101
        %4328 = vmatpush1.bf16.msra.mxu0 %v3100
        %4329 = vmatprep.mubr.bf16.mxu0 %v1148
        %4330 = vmatmul.mubr.bf16.gmra.mrb[0].mxu0 %v1147
        %v4331 = vpop.f32.mrb[0].mxu0
        %v4332 = vadd.f32 %v4289, %v4331
        %v4333 = vpop.f32.mrb[0].mxu0
        %v4334 = vadd.f32 %v4291, %v4333
        %v4335 = vpop.f32.mrb[0].mxu0
        %v4336 = vadd.f32 %v4293, %v4335
        %v4337 = vpop.f32.mrb[0].mxu0
        %v4338 = vadd.f32 %v4295, %v4337
        %4339 = vdwg.mxu0
        %4340 = vmatprep.subr.bf16.mxu0 %v3109
        %4341 = vmatpush1.bf16.msra.mxu0 %v3108
        %4342 = vmatprep.subr.bf16.mxu0 %v3117
        %4343 = vmatpush1.bf16.msra.mxu0 %v3116
        %4344 = vmatprep.subr.bf16.mxu0 %v3125
        %4345 = vmatpush1.bf16.msra.mxu0 %v3124
        %4346 = vmatprep.subr.bf16.mxu0 %v3133
        %4347 = vmatpush1.bf16.msra.mxu0 %v3132
        %4348 = vmatprep.subr.bf16.mxu0 %v3141
        %4349 = vmatpush1.bf16.msra.mxu0 %v3140
        %4350 = vmatprep.subr.bf16.mxu0 %v3149
        %4351 = vmatpush1.bf16.msra.mxu0 %v3148
        %4352 = vmatprep.subr.bf16.mxu0 %v3157
        %4353 = vmatpush1.bf16.msra.mxu0 %v3156
        %4354 = vmatprep.subr.bf16.mxu0 %v3165
        %4355 = vmatpush1.bf16.msra.mxu0 %v3164
        %4356 = vmatprep.subr.bf16.mxu0 %v3173
        %4357 = vmatpush1.bf16.msra.mxu0 %v3172
        %4358 = vmatprep.subr.bf16.mxu0 %v3181
        %4359 = vmatpush1.bf16.msra.mxu0 %v3180
        %4360 = vmatprep.subr.bf16.mxu0 %v3189
        %4361 = vmatpush1.bf16.msra.mxu0 %v3188
        %4362 = vmatprep.subr.bf16.mxu0 %v3197
        %4363 = vmatpush1.bf16.msra.mxu0 %v3196
        %4364 = vmatprep.subr.bf16.mxu0 %v3205
        %4365 = vmatpush1.bf16.msra.mxu0 %v3204
        %4366 = vmatprep.subr.bf16.mxu0 %v3213
        %4367 = vmatpush1.bf16.msra.mxu0 %v3212
        %4368 = vmatprep.subr.bf16.mxu0 %v3221
        %4369 = vmatpush1.bf16.msra.mxu0 %v3220
        %4370 = vmatprep.subr.bf16.mxu0 %v3229
        %4371 = vmatpush1.bf16.msra.mxu0 %v3228
        %4372 = vmatprep.mubr.bf16.mxu0 %v1150
        %4373 = vmatmul.mubr.bf16.gmra.mrb[0].mxu0 %v1149
        %v4374 = vpop.f32.mrb[0].mxu0
        %v4375 = vadd.f32 %v4332, %v4374
        %v4376 = vpop.f32.mrb[0].mxu0
        %v4377 = vadd.f32 %v4334, %v4376
        %v4378 = vpop.f32.mrb[0].mxu0
        %v4379 = vadd.f32 %v4336, %v4378
        %v4380 = vpop.f32.mrb[0].mxu0
        %v4381 = vadd.f32 %v4338, %v4380
        %4382 = vdwg.mxu0
        %4383 = vmatprep.subr.bf16.mxu0 %v3773
        %4384 = vmatpush1.bf16.msra.mxu0 %v3770
        %4385 = vmatprep.subr.bf16.mxu0 0
        %4386 = vmatpush1.bf16.msra.mxu0 0
        %4387 = vmatprep.subr.bf16.mxu0 0
        %4388 = vmatpush1.bf16.msra.mxu0 0
        %4389 = vmatprep.subr.bf16.mxu0 0
        %4390 = vmatpush1.bf16.msra.mxu0 0
        %4391 = vmatprep.subr.bf16.mxu0 0
        %4392 = vmatpush1.bf16.msra.mxu0 0
        %4393 = vmatprep.subr.bf16.mxu0 0
        %4394 = vmatpush1.bf16.msra.mxu0 0
        %4395 = vmatprep.subr.bf16.mxu0 0
        %4396 = vmatpush1.bf16.msra.mxu0 0
        %4397 = vmatprep.subr.bf16.mxu0 0
        %4398 = vmatpush1.bf16.msra.mxu0 0
        %4399 = vmatprep.subr.bf16.mxu0 0
        %4400 = vmatpush1.bf16.msra.mxu0 0
        %4401 = vmatprep.subr.bf16.mxu0 0
        %4402 = vmatpush1.bf16.msra.mxu0 0
        %4403 = vmatprep.subr.bf16.mxu0 0
        %4404 = vmatpush1.bf16.msra.mxu0 0
        %4405 = vmatprep.subr.bf16.mxu0 0
        %4406 = vmatpush1.bf16.msra.mxu0 0
        %4407 = vmatprep.subr.bf16.mxu0 0
        %4408 = vmatpush1.bf16.msra.mxu0 0
        %4409 = vmatprep.subr.bf16.mxu0 0
        %4410 = vmatpush1.bf16.msra.mxu0 0
        %4411 = vmatprep.subr.bf16.mxu0 0
        %4412 = vmatpush1.bf16.msra.mxu0 0
        %4413 = vmatprep.subr.bf16.mxu0 0
        %4414 = vmatpush1.bf16.msra.mxu0 0
        %4415 = vmatprep.mubr.bf16.mxu0 0
        %4416 = vmatmul.mubr.bf16.gmra.mrb[0].mxu0 %v3754
        %v4417 = vpop.f32.mrb[0].mxu0
        %v4418 = vadd.f32 %v4375, %v4417
        %v4419 = vpop.f32.mrb[0].mxu0
        %v4420 = vadd.f32 %v4377, %v4419
        %v4421 = vpop.f32.mrb[0].mxu0
        %v4422 = vadd.f32 %v4379, %v4421
        %v4423 = vpop.f32.mrb[0].mxu0
        %v4424 = vadd.f32 %v4381, %v4423
        %4425 = vdwg.mxu0
        %4426 = vmatprep.subr.bf16.mxu0 %v2727
        %4427 = vmatpush1.bf16.msra.mxu0 %v2726
        %4428 = vmatprep.subr.bf16.mxu0 %v2735
        %4429 = vmatpush1.bf16.msra.mxu0 %v2734
        %4430 = vmatprep.subr.bf16.mxu0 %v2743
        %4431 = vmatpush1.bf16.msra.mxu0 %v2742
        %4432 = vmatprep.subr.bf16.mxu0 %v2751
        %4433 = vmatpush1.bf16.msra.mxu0 %v2750
        %4434 = vmatprep.subr.bf16.mxu0 %v2759
        %4435 = vmatpush1.bf16.msra.mxu0 %v2758
        %4436 = vmatprep.subr.bf16.mxu0 %v2767
        %4437 = vmatpush1.bf16.msra.mxu0 %v2766
        %4438 = vmatprep.subr.bf16.mxu0 %v2775
        %4439 = vmatpush1.bf16.msra.mxu0 %v2774
        %4440 = vmatprep.subr.bf16.mxu0 %v2783
        %4441 = vmatpush1.bf16.msra.mxu0 %v2782
        %4442 = vmatprep.subr.bf16.mxu0 %v2791
        %4443 = vmatpush1.bf16.msra.mxu0 %v2790
        %4444 = vmatprep.subr.bf16.mxu0 %v2799
        %4445 = vmatpush1.bf16.msra.mxu0 %v2798
        %4446 = vmatprep.subr.bf16.mxu0 %v2807
        %4447 = vmatpush1.bf16.msra.mxu0 %v2806
        %4448 = vmatprep.subr.bf16.mxu0 %v2815
        %4449 = vmatpush1.bf16.msra.mxu0 %v2814
        %4450 = vmatprep.subr.bf16.mxu0 %v2823
        %4451 = vmatpush1.bf16.msra.mxu0 %v2822
        %4452 = vmatprep.subr.bf16.mxu0 %v2831
        %4453 = vmatpush1.bf16.msra.mxu0 %v2830
        %4454 = vmatprep.subr.bf16.mxu0 %v2839
        %4455 = vmatpush1.bf16.msra.mxu0 %v2838
        %4456 = vmatprep.subr.bf16.mxu0 %v2847
        %4457 = vmatpush1.bf16.msra.mxu0 %v2846
        %4458 = vmatprep.mubr.bf16.mxu0 %v1144
        %4459 = vmatmul.mubr.bf16.gmra.mrb[0].mxu0 %v1143
        %v4460 = vpop.f32.mrb[0].mxu0
        %v4461 = vadd.f32 0.0, %v4460
        %v4462 = vpop.f32.mrb[0].mxu0
        %v4463 = vadd.f32 0.0, %v4462
        %v4464 = vpop.f32.mrb[0].mxu0
        %v4465 = vadd.f32 0.0, %v4464
        %v4466 = vpop.f32.mrb[0].mxu0
        %v4467 = vadd.f32 0.0, %v4466
        %4468 = vdwg.mxu0
        %4469 = vmatprep.subr.bf16.mxu0 %v2855
        %4470 = vmatpush1.bf16.msra.mxu0 %v2854
        %4471 = vmatprep.subr.bf16.mxu0 %v2863
        %4472 = vmatpush1.bf16.msra.mxu0 %v2862
        %4473 = vmatprep.subr.bf16.mxu0 %v2871
        %4474 = vmatpush1.bf16.msra.mxu0 %v2870
        %4475 = vmatprep.subr.bf16.mxu0 %v2879
        %4476 = vmatpush1.bf16.msra.mxu0 %v2878
        %4477 = vmatprep.subr.bf16.mxu0 %v2887
        %4478 = vmatpush1.bf16.msra.mxu0 %v2886
        %4479 = vmatprep.subr.bf16.mxu0 %v2895
        %4480 = vmatpush1.bf16.msra.mxu0 %v2894
        %4481 = vmatprep.subr.bf16.mxu0 %v2903
        %4482 = vmatpush1.bf16.msra.mxu0 %v2902
        %4483 = vmatprep.subr.bf16.mxu0 %v2911
        %4484 = vmatpush1.bf16.msra.mxu0 %v2910
        %4485 = vmatprep.subr.bf16.mxu0 %v2919
        %4486 = vmatpush1.bf16.msra.mxu0 %v2918
        %4487 = vmatprep.subr.bf16.mxu0 %v2927
        %4488 = vmatpush1.bf16.msra.mxu0 %v2926
        %4489 = vmatprep.subr.bf16.mxu0 %v2935
        %4490 = vmatpush1.bf16.msra.mxu0 %v2934
        %4491 = vmatprep.subr.bf16.mxu0 %v2943
        %4492 = vmatpush1.bf16.msra.mxu0 %v2942
        %4493 = vmatprep.subr.bf16.mxu0 %v2951
        %4494 = vmatpush1.bf16.msra.mxu0 %v2950
        %4495 = vmatprep.subr.bf16.mxu0 %v2959
        %4496 = vmatpush1.bf16.msra.mxu0 %v2958
        %4497 = vmatprep.subr.bf16.mxu0 %v2967
        %4498 = vmatpush1.bf16.msra.mxu0 %v2966
        %4499 = vmatprep.subr.bf16.mxu0 %v2975
        %4500 = vmatpush1.bf16.msra.mxu0 %v2974
        %4501 = vmatprep.mubr.bf16.mxu0 %v1146
        %4502 = vmatmul.mubr.bf16.gmra.mrb[0].mxu0 %v1145
        %v4503 = vpop.f32.mrb[0].mxu0
        %v4504 = vadd.f32 %v4461, %v4503
        %v4505 = vpop.f32.mrb[0].mxu0
        %v4506 = vadd.f32 %v4463, %v4505
        %v4507 = vpop.f32.mrb[0].mxu0
        %v4508 = vadd.f32 %v4465, %v4507
        %v4509 = vpop.f32.mrb[0].mxu0
        %v4510 = vadd.f32 %v4467, %v4509
        %4511 = vdwg.mxu0
        %4512 = vmatprep.subr.bf16.mxu0 %v2983
        %4513 = vmatpush1.bf16.msra.mxu0 %v2982
        %4514 = vmatprep.subr.bf16.mxu0 %v2991
        %4515 = vmatpush1.bf16.msra.mxu0 %v2990
        %4516 = vmatprep.subr.bf16.mxu0 %v2999
        %4517 = vmatpush1.bf16.msra.mxu0 %v2998
        %4518 = vmatprep.subr.bf16.mxu0 %v3007
        %4519 = vmatpush1.bf16.msra.mxu0 %v3006
        %4520 = vmatprep.subr.bf16.mxu0 %v3015
        %4521 = vmatpush1.bf16.msra.mxu0 %v3014
        %4522 = vmatprep.subr.bf16.mxu0 %v3023
        %4523 = vmatpush1.bf16.msra.mxu0 %v3022
        %4524 = vmatprep.subr.bf16.mxu0 %v3031
        %4525 = vmatpush1.bf16.msra.mxu0 %v3030
        %4526 = vmatprep.subr.bf16.mxu0 %v3039
        %4527 = vmatpush1.bf16.msra.mxu0 %v3038
        %4528 = vmatprep.subr.bf16.mxu0 %v3047
        %4529 = vmatpush1.bf16.msra.mxu0 %v3046
        %4530 = vmatprep.subr.bf16.mxu0 %v3055
        %4531 = vmatpush1.bf16.msra.mxu0 %v3054
        %4532 = vmatprep.subr.bf16.mxu0 %v3063
        %4533 = vmatpush1.bf16.msra.mxu0 %v3062
        %4534 = vmatprep.subr.bf16.mxu0 %v3071
        %4535 = vmatpush1.bf16.msra.mxu0 %v3070
        %4536 = vmatprep.subr.bf16.mxu0 %v3079
        %4537 = vmatpush1.bf16.msra.mxu0 %v3078
        %4538 = vmatprep.subr.bf16.mxu0 %v3087
        %4539 = vmatpush1.bf16.msra.mxu0 %v3086
        %4540 = vmatprep.subr.bf16.mxu0 %v3095
        %4541 = vmatpush1.bf16.msra.mxu0 %v3094
        %4542 = vmatprep.subr.bf16.mxu0 %v3103
        %4543 = vmatpush1.bf16.msra.mxu0 %v3102
        %4544 = vmatprep.mubr.bf16.mxu0 %v1148
        %4545 = vmatmul.mubr.bf16.gmra.mrb[0].mxu0 %v1147
        %v4546 = vpop.f32.mrb[0].mxu0
        %v4547 = vadd.f32 %v4504, %v4546
        %v4548 = vpop.f32.mrb[0].mxu0
        %v4549 = vadd.f32 %v4506, %v4548
        %v4550 = vpop.f32.mrb[0].mxu0
        %v4551 = vadd.f32 %v4508, %v4550
        %v4552 = vpop.f32.mrb[0].mxu0
        %v4553 = vadd.f32 %v4510, %v4552
        %4554 = vdwg.mxu0
        %4555 = vmatprep.subr.bf16.mxu0 %v3111
        %4556 = vmatpush1.bf16.msra.mxu0 %v3110
        %4557 = vmatprep.subr.bf16.mxu0 %v3119
        %4558 = vmatpush1.bf16.msra.mxu0 %v3118
        %4559 = vmatprep.subr.bf16.mxu0 %v3127
        %4560 = vmatpush1.bf16.msra.mxu0 %v3126
        %4561 = vmatprep.subr.bf16.mxu0 %v3135
        %4562 = vmatpush1.bf16.msra.mxu0 %v3134
        %4563 = vmatprep.subr.bf16.mxu0 %v3143
        %4564 = vmatpush1.bf16.msra.mxu0 %v3142
        %4565 = vmatprep.subr.bf16.mxu0 %v3151
        %4566 = vmatpush1.bf16.msra.mxu0 %v3150
        %4567 = vmatprep.subr.bf16.mxu0 %v3159
        %4568 = vmatpush1.bf16.msra.mxu0 %v3158
        %4569 = vmatprep.subr.bf16.mxu0 %v3167
        %4570 = vmatpush1.bf16.msra.mxu0 %v3166
        %4571 = vmatprep.subr.bf16.mxu0 %v3175
        %4572 = vmatpush1.bf16.msra.mxu0 %v3174
        %4573 = vmatprep.subr.bf16.mxu0 %v3183
        %4574 = vmatpush1.bf16.msra.mxu0 %v3182
        %4575 = vmatprep.subr.bf16.mxu0 %v3191
        %4576 = vmatpush1.bf16.msra.mxu0 %v3190
        %4577 = vmatprep.subr.bf16.mxu0 %v3199
        %4578 = vmatpush1.bf16.msra.mxu0 %v3198
        %4579 = vmatprep.subr.bf16.mxu0 %v3207
        %4580 = vmatpush1.bf16.msra.mxu0 %v3206
        %4581 = vmatprep.subr.bf16.mxu0 %v3215
        %4582 = vmatpush1.bf16.msra.mxu0 %v3214
        %4583 = vmatprep.subr.bf16.mxu0 %v3223
        %4584 = vmatpush1.bf16.msra.mxu0 %v3222
        %4585 = vmatprep.subr.bf16.mxu0 %v3231
        %4586 = vmatpush1.bf16.msra.mxu0 %v3230
        %4587 = vmatprep.mubr.bf16.mxu0 %v1150
        %4588 = vmatmul.mubr.bf16.gmra.mrb[0].mxu0 %v1149
        %v4589 = vpop.f32.mrb[0].mxu0
        %v4590 = vadd.f32 %v4547, %v4589
        %v4591 = vpop.f32.mrb[0].mxu0
        %v4592 = vadd.f32 %v4549, %v4591
        %v4593 = vpop.f32.mrb[0].mxu0
        %v4594 = vadd.f32 %v4551, %v4593
        %v4595 = vpop.f32.mrb[0].mxu0
        %v4596 = vadd.f32 %v4553, %v4595
        %4597 = vdwg.mxu0
        %4598 = vmatprep.subr.bf16.mxu0 %v3779
        %4599 = vmatpush1.bf16.msra.mxu0 %v3776
        %4600 = vmatprep.subr.bf16.mxu0 0
        %4601 = vmatpush1.bf16.msra.mxu0 0
        %4602 = vmatprep.subr.bf16.mxu0 0
        %4603 = vmatpush1.bf16.msra.mxu0 0
        %4604 = vmatprep.subr.bf16.mxu0 0
        %4605 = vmatpush1.bf16.msra.mxu0 0
        %4606 = vmatprep.subr.bf16.mxu0 0
        %4607 = vmatpush1.bf16.msra.mxu0 0
        %4608 = vmatprep.subr.bf16.mxu0 0
        %4609 = vmatpush1.bf16.msra.mxu0 0
        %4610 = vmatprep.subr.bf16.mxu0 0
        %4611 = vmatpush1.bf16.msra.mxu0 0
        %4612 = vmatprep.subr.bf16.mxu0 0
        %4613 = vmatpush1.bf16.msra.mxu0 0
        %4614 = vmatprep.subr.bf16.mxu0 0
        %4615 = vmatpush1.bf16.msra.mxu0 0
        %4616 = vmatprep.subr.bf16.mxu0 0
        %4617 = vmatpush1.bf16.msra.mxu0 0
        %4618 = vmatprep.subr.bf16.mxu0 0
        %4619 = vmatpush1.bf16.msra.mxu0 0
        %4620 = vmatprep.subr.bf16.mxu0 0
        %4621 = vmatpush1.bf16.msra.mxu0 0
        %4622 = vmatprep.subr.bf16.mxu0 0
        %4623 = vmatpush1.bf16.msra.mxu0 0
        %4624 = vmatprep.subr.bf16.mxu0 0
        %4625 = vmatpush1.bf16.msra.mxu0 0
        %4626 = vmatprep.subr.bf16.mxu0 0
        %4627 = vmatpush1.bf16.msra.mxu0 0
        %4628 = vmatprep.subr.bf16.mxu0 0
        %4629 = vmatpush1.bf16.msra.mxu0 0
        %4630 = vmatprep.mubr.bf16.mxu0 0
        %4631 = vmatmul.mubr.bf16.gmra.mrb[0].mxu0 %v3754
        %v4632 = vpop.f32.mrb[0].mxu0
        %v4633 = vadd.f32 %v4590, %v4632
        %v4634 = vpop.f32.mrb[0].mxu0
        %v4635 = vadd.f32 %v4592, %v4634
        %v4636 = vpop.f32.mrb[0].mxu0
        %v4637 = vadd.f32 %v4594, %v4636
        %v4638 = vpop.f32.mrb[0].mxu0
        %v4639 = vadd.f32 %v4596, %v4638
        %4640 = vdwg.mxu0
        %v4641 = vld [vmem:[#allocation6] sm:$0xff]
        %v4643 = vlaneseq
        %v4644 = vshrl.u32 %v4643, 7
        %v4645 = vsub.s32 0, %v4644
        %v4646 = vrot.slane %v4641, %v4645
        %v4647 = vlaneseq
        %v4648 = vshrl.u32 %v4647, 7
        %v4649 = vsub.s32 1, %v4648
        %v4650 = vrot.slane %v4641, %v4649
        %v4651 = vlaneseq
        %v4652 = vshrl.u32 %v4651, 7
        %v4653 = vsub.s32 2, %v4652
        %v4654 = vrot.slane %v4641, %v4653
        %v4655 = vlaneseq
        %v4656 = vshrl.u32 %v4655, 7
        %v4657 = vsub.s32 3, %v4656
        %v4658 = vrot.slane %v4641, %v4657
        %v4659 = vlaneseq
        %v4660 = vshrl.u32 %v4659, 7
        %v4661 = vsub.s32 4, %v4660
        %v4662 = vrot.slane %v4641, %v4661
        %v4663 = vlaneseq
        %v4664 = vshrl.u32 %v4663, 7
        %v4665 = vsub.s32 5, %v4664
        %v4666 = vrot.slane %v4641, %v4665
        %v4667 = vlaneseq
        %v4668 = vshrl.u32 %v4667, 7
        %v4669 = vsub.s32 6, %v4668
        %v4670 = vrot.slane %v4641, %v4669
        %v4671 = vlaneseq
        %v4672 = vshrl.u32 %v4671, 7
        %v4673 = vsub.s32 7, %v4672
        %v4674 = vrot.slane %v4641, %v4673
        %v4683 = vmul.f32 %v3988, %v4646
        %v4684 = vmul.f32 %v3990, %v4650
        %v4685 = vmul.f32 %v4203, %v4654
        %v4686 = vmul.f32 %v4205, %v4658
        %v4687 = vmul.f32 %v4418, %v4662
        %v4688 = vmul.f32 %v4420, %v4666
        %v4689 = vmul.f32 %v4633, %v4670
        %v4690 = vmul.f32 %v4635, %v4674
        %v4691 = vmul.f32 %v3992, %v4646
        %v4692 = vmul.f32 %v3994, %v4650
        %v4693 = vmul.f32 %v4207, %v4654
        %v4694 = vmul.f32 %v4209, %v4658
        %v4695 = vmul.f32 %v4422, %v4662
        %v4696 = vmul.f32 %v4424, %v4666
        %v4697 = vmul.f32 %v4637, %v4670
        %v4698 = vmul.f32 %v4639, %v4674
        %v4699 = vld [vmem:[#allocation8] sm:$0xff]
        %v4701 = vlaneseq
        %v4702 = vshrl.u32 %v4701, 7
        %v4703 = vsub.s32 0, %v4702
        %v4704 = vrot.slane %v4699, %v4703
        %v4705 = vlaneseq
        %v4706 = vshrl.u32 %v4705, 7
        %v4707 = vsub.s32 1, %v4706
        %v4708 = vrot.slane %v4699, %v4707
        %v4709 = vlaneseq
        %v4710 = vshrl.u32 %v4709, 7
        %v4711 = vsub.s32 2, %v4710
        %v4712 = vrot.slane %v4699, %v4711
        %v4713 = vlaneseq
        %v4714 = vshrl.u32 %v4713, 7
        %v4715 = vsub.s32 3, %v4714
        %v4716 = vrot.slane %v4699, %v4715
        %v4717 = vlaneseq
        %v4718 = vshrl.u32 %v4717, 7
        %v4719 = vsub.s32 4, %v4718
        %v4720 = vrot.slane %v4699, %v4719
        %v4721 = vlaneseq
        %v4722 = vshrl.u32 %v4721, 7
        %v4723 = vsub.s32 5, %v4722
        %v4724 = vrot.slane %v4699, %v4723
        %v4725 = vlaneseq
        %v4726 = vshrl.u32 %v4725, 7
        %v4727 = vsub.s32 6, %v4726
        %v4728 = vrot.slane %v4699, %v4727
        %v4729 = vlaneseq
        %v4730 = vshrl.u32 %v4729, 7
        %v4731 = vsub.s32 7, %v4730
        %v4732 = vrot.slane %v4699, %v4731
        %v4741 = vadd.f32 %v4683, %v4704
        %v4742 = vadd.f32 %v4684, %v4708
        %v4743 = vadd.f32 %v4685, %v4712
        %v4744 = vadd.f32 %v4686, %v4716
        %v4745 = vadd.f32 %v4687, %v4720
        %v4746 = vadd.f32 %v4688, %v4724
        %v4747 = vadd.f32 %v4689, %v4728
        %v4748 = vadd.f32 %v4690, %v4732
        %v4749 = vadd.f32 %v4691, %v4704
        %v4750 = vadd.f32 %v4692, %v4708
        %v4751 = vadd.f32 %v4693, %v4712
        %v4752 = vadd.f32 %v4694, %v4716
        %v4753 = vadd.f32 %v4695, %v4720
        %v4754 = vadd.f32 %v4696, %v4724
        %v4755 = vadd.f32 %v4697, %v4728
        %v4756 = vadd.f32 %v4698, %v4732
        %v4757 = vmax.f32 %v4741, 0.0
        %v4758 = vmax.f32 %v4742, 0.0
        %v4759 = vmax.f32 %v4743, 0.0
        %v4760 = vmax.f32 %v4744, 0.0
        %v4761 = vmax.f32 %v4745, 0.0
        %v4762 = vmax.f32 %v4746, 0.0
        %v4763 = vmax.f32 %v4747, 0.0
        %v4764 = vmax.f32 %v4748, 0.0
        %v4765 = vmax.f32 %v4749, 0.0
        %v4766 = vmax.f32 %v4750, 0.0
        %v4767 = vmax.f32 %v4751, 0.0
        %v4768 = vmax.f32 %v4752, 0.0
        %v4769 = vmax.f32 %v4753, 0.0
        %v4770 = vmax.f32 %v4754, 0.0
        %v4771 = vmax.f32 %v4755, 0.0
        %v4772 = vmax.f32 %v4756, 0.0
        %v4773 = vpack.c.bf16 %v4765, %v4757
        %v4774 = vpack.c.bf16 %v4766, %v4758
        %v4775 = vpack.c.bf16 %v4767, %v4759
        %v4776 = vpack.c.bf16 %v4768, %v4760
        %v4777 = vpack.c.bf16 %v4769, %v4761
        %v4778 = vpack.c.bf16 %v4770, %v4762
        %v4779 = vpack.c.bf16 %v4771, %v4763
        %v4780 = vpack.c.bf16 %v4772, %v4764
        %v4781 = vld [vmem:[#allocation9] sm:$0xff]
        %v4782 = vld [vmem:[#allocation9 + $0x8] sm:$0xff]
        %v4783 = vld [vmem:[#allocation9 + $0x10] sm:$0xff]
        %v4784 = vld [vmem:[#allocation9 + $0x18] sm:$0xff]
        %v4785 = vld [vmem:[#allocation9 + $0x20] sm:$0xff]
        %v4786 = vld [vmem:[#allocation9 + $0x28] sm:$0xff]
        %v4787 = vld [vmem:[#allocation9 + $0x30] sm:$0xff]
        %v4788 = vld [vmem:[#allocation9 + $0x38] sm:$0xff]
        %v4789 = vld [vmem:[#allocation9 + $0x40] sm:$0xff]
        %v4790 = vld [vmem:[#allocation9 + $0x48] sm:$0xff]
        %v4791 = vld [vmem:[#allocation9 + $0x50] sm:$0xff]
        %v4792 = vld [vmem:[#allocation9 + $0x58] sm:$0xff]
        %v4793 = vld [vmem:[#allocation9 + $0x60] sm:$0xff]
        %v4794 = vld [vmem:[#allocation9 + $0x68] sm:$0xff]
        %v4795 = vld [vmem:[#allocation9 + $0x70] sm:$0xff]
        %v4796 = vld [vmem:[#allocation9 + $0x78] sm:$0xff]
        %v4797 = vld [vmem:[#allocation9 + $0x80] sm:$0xff]
        %v4798 = vld [vmem:[#allocation9 + $0x88] sm:$0xff]
        %v4799 = vld [vmem:[#allocation9 + $0x90] sm:$0xff]
        %v4800 = vld [vmem:[#allocation9 + $0x98] sm:$0xff]
        %v4801 = vld [vmem:[#allocation9 + $0xa0] sm:$0xff]
        %v4802 = vld [vmem:[#allocation9 + $0xa8] sm:$0xff]
        %v4803 = vld [vmem:[#allocation9 + $0xb0] sm:$0xff]
        %v4804 = vld [vmem:[#allocation9 + $0xb8] sm:$0xff]
        %v4805 = vld [vmem:[#allocation9 + $0xc0] sm:$0xff]
        %v4806 = vld [vmem:[#allocation9 + $0xc8] sm:$0xff]
        %v4807 = vld [vmem:[#allocation9 + $0xd0] sm:$0xff]
        %v4808 = vld [vmem:[#allocation9 + $0xd8] sm:$0xff]
        %v4809 = vld [vmem:[#allocation9 + $0xe0] sm:$0xff]
        %v4810 = vld [vmem:[#allocation9 + $0xe8] sm:$0xff]
        %v4811 = vld [vmem:[#allocation9 + $0xf0] sm:$0xff]
        %v4812 = vld [vmem:[#allocation9 + $0xf8] sm:$0xff]
        %v4813 = vld [vmem:[#allocation9 + $0x100] sm:$0xff]
        %v4814 = vld [vmem:[#allocation9 + $0x108] sm:$0xff]
        %v4815 = vld [vmem:[#allocation9 + $0x110] sm:$0xff]
        %v4816 = vld [vmem:[#allocation9 + $0x118] sm:$0xff]
        %v4817 = vld [vmem:[#allocation9 + $0x120] sm:$0xff]
        %v4818 = vld [vmem:[#allocation9 + $0x128] sm:$0xff]
        %v4819 = vld [vmem:[#allocation9 + $0x130] sm:$0xff]
        %v4820 = vld [vmem:[#allocation9 + $0x138] sm:$0xff]
        %v4821 = vld [vmem:[#allocation9 + $0x140] sm:$0xff]
        %v4822 = vld [vmem:[#allocation9 + $0x148] sm:$0xff]
        %v4823 = vld [vmem:[#allocation9 + $0x150] sm:$0xff]
        %v4824 = vld [vmem:[#allocation9 + $0x158] sm:$0xff]
        %v4825 = vld [vmem:[#allocation9 + $0x160] sm:$0xff]
        %v4826 = vld [vmem:[#allocation9 + $0x168] sm:$0xff]
        %v4827 = vld [vmem:[#allocation9 + $0x170] sm:$0xff]
        %v4828 = vld [vmem:[#allocation9 + $0x178] sm:$0xff]
        %v4829 = vld [vmem:[#allocation9 + $0x180] sm:$0xff]
        %v4830 = vld [vmem:[#allocation9 + $0x188] sm:$0xff]
        %v4831 = vld [vmem:[#allocation9 + $0x190] sm:$0xff]
        %v4832 = vld [vmem:[#allocation9 + $0x198] sm:$0xff]
        %v4833 = vld [vmem:[#allocation9 + $0x1a0] sm:$0xff]
        %v4834 = vld [vmem:[#allocation9 + $0x1a8] sm:$0xff]
        %v4835 = vld [vmem:[#allocation9 + $0x1b0] sm:$0xff]
        %v4836 = vld [vmem:[#allocation9 + $0x1b8] sm:$0xff]
        %v4837 = vld [vmem:[#allocation9 + $0x1c0] sm:$0xff]
        %v4838 = vld [vmem:[#allocation9 + $0x1c8] sm:$0xff]
        %v4839 = vld [vmem:[#allocation9 + $0x1d0] sm:$0xff]
        %v4840 = vld [vmem:[#allocation9 + $0x1d8] sm:$0xff]
        %v4841 = vld [vmem:[#allocation9 + $0x1e0] sm:$0xff]
        %v4842 = vld [vmem:[#allocation9 + $0x1e8] sm:$0xff]
        %v4843 = vld [vmem:[#allocation9 + $0x1f0] sm:$0xff]
        %v4844 = vld [vmem:[#allocation9 + $0x1f8] sm:$0xff]
        %v4845 = vld [vmem:[#allocation9 + $0x200] sm:$0xff]
        %v4846 = vld [vmem:[#allocation9 + $0x208] sm:$0xff]
        %v4847 = vld [vmem:[#allocation9 + $0x210] sm:$0xff]
        %v4848 = vld [vmem:[#allocation9 + $0x218] sm:$0xff]
        %v4849 = vld [vmem:[#allocation9 + $0x220] sm:$0xff]
        %v4850 = vld [vmem:[#allocation9 + $0x228] sm:$0xff]
        %v4851 = vld [vmem:[#allocation9 + $0x230] sm:$0xff]
        %v4852 = vld [vmem:[#allocation9 + $0x238] sm:$0xff]
        %v4853 = vld [vmem:[#allocation9 + $0x240] sm:$0xff]
        %v4854 = vld [vmem:[#allocation9 + $0x248] sm:$0xff]
        %v4855 = vld [vmem:[#allocation9 + $0x250] sm:$0xff]
        %v4856 = vld [vmem:[#allocation9 + $0x258] sm:$0xff]
        %v4857 = vld [vmem:[#allocation9 + $0x260] sm:$0xff]
        %v4858 = vld [vmem:[#allocation9 + $0x268] sm:$0xff]
        %v4859 = vld [vmem:[#allocation9 + $0x270] sm:$0xff]
        %v4860 = vld [vmem:[#allocation9 + $0x278] sm:$0xff]
        %v4861 = vld [vmem:[#allocation9 + $0x280] sm:$0xff]
        %v4862 = vld [vmem:[#allocation9 + $0x288] sm:$0xff]
        %v4863 = vld [vmem:[#allocation9 + $0x290] sm:$0xff]
        %v4864 = vld [vmem:[#allocation9 + $0x298] sm:$0xff]
        %v4865 = vld [vmem:[#allocation9 + $0x2a0] sm:$0xff]
        %v4866 = vld [vmem:[#allocation9 + $0x2a8] sm:$0xff]
        %v4867 = vld [vmem:[#allocation9 + $0x2b0] sm:$0xff]
        %v4868 = vld [vmem:[#allocation9 + $0x2b8] sm:$0xff]
        %v4869 = vld [vmem:[#allocation9 + $0x2c0] sm:$0xff]
        %v4870 = vld [vmem:[#allocation9 + $0x2c8] sm:$0xff]
        %v4871 = vld [vmem:[#allocation9 + $0x2d0] sm:$0xff]
        %v4872 = vld [vmem:[#allocation9 + $0x2d8] sm:$0xff]
        %v4873 = vld [vmem:[#allocation9 + $0x2e0] sm:$0xff]
        %v4874 = vld [vmem:[#allocation9 + $0x2e8] sm:$0xff]
        %v4875 = vld [vmem:[#allocation9 + $0x2f0] sm:$0xff]
        %v4876 = vld [vmem:[#allocation9 + $0x2f8] sm:$0xff]
        %v4877 = vld [vmem:[#allocation9 + $0x300] sm:$0xff]
        %v4878 = vld [vmem:[#allocation9 + $0x308] sm:$0xff]
        %v4879 = vld [vmem:[#allocation9 + $0x310] sm:$0xff]
        %v4880 = vld [vmem:[#allocation9 + $0x318] sm:$0xff]
        %v4881 = vld [vmem:[#allocation9 + $0x320] sm:$0xff]
        %v4882 = vld [vmem:[#allocation9 + $0x328] sm:$0xff]
        %v4883 = vld [vmem:[#allocation9 + $0x330] sm:$0xff]
        %v4884 = vld [vmem:[#allocation9 + $0x338] sm:$0xff]
        %v4885 = vld [vmem:[#allocation9 + $0x340] sm:$0xff]
        %v4886 = vld [vmem:[#allocation9 + $0x348] sm:$0xff]
        %v4887 = vld [vmem:[#allocation9 + $0x350] sm:$0xff]
        %v4888 = vld [vmem:[#allocation9 + $0x358] sm:$0xff]
        %v4889 = vld [vmem:[#allocation9 + $0x360] sm:$0xff]
        %v4890 = vld [vmem:[#allocation9 + $0x368] sm:$0xff]
        %v4891 = vld [vmem:[#allocation9 + $0x370] sm:$0xff]
        %v4892 = vld [vmem:[#allocation9 + $0x378] sm:$0xff]
        %v4893 = vld [vmem:[#allocation9 + $0x380] sm:$0xff]
        %v4894 = vld [vmem:[#allocation9 + $0x388] sm:$0xff]
        %v4895 = vld [vmem:[#allocation9 + $0x390] sm:$0xff]
        %v4896 = vld [vmem:[#allocation9 + $0x398] sm:$0xff]
        %v4897 = vld [vmem:[#allocation9 + $0x3a0] sm:$0xff]
        %v4898 = vld [vmem:[#allocation9 + $0x3a8] sm:$0xff]
        %v4899 = vld [vmem:[#allocation9 + $0x3b0] sm:$0xff]
        %v4900 = vld [vmem:[#allocation9 + $0x3b8] sm:$0xff]
        %v4901 = vld [vmem:[#allocation9 + $0x3c0] sm:$0xff]
        %v4902 = vld [vmem:[#allocation9 + $0x3c8] sm:$0xff]
        %v4903 = vld [vmem:[#allocation9 + $0x3d0] sm:$0xff]
        %v4904 = vld [vmem:[#allocation9 + $0x3d8] sm:$0xff]
        %v4905 = vld [vmem:[#allocation9 + $0x3e0] sm:$0xff]
        %v4906 = vld [vmem:[#allocation9 + $0x3e8] sm:$0xff]
        %v4907 = vld [vmem:[#allocation9 + $0x3f0] sm:$0xff]
        %v4908 = vld [vmem:[#allocation9 + $0x3f8] sm:$0xff]
        %v5037 = vunpack.c.l.b16 %v4781
        %v5038 = vunpack.c.h.b16 %v4781
        %v5039 = vunpack.c.l.b16 %v4782
        %v5040 = vunpack.c.h.b16 %v4782
        %v5041 = vunpack.c.l.b16 %v4783
        %v5042 = vunpack.c.h.b16 %v4783
        %v5043 = vunpack.c.l.b16 %v4784
        %v5044 = vunpack.c.h.b16 %v4784
        %v5045 = vunpack.c.l.b16 %v4785
        %v5046 = vunpack.c.h.b16 %v4785
        %v5047 = vunpack.c.l.b16 %v4786
        %v5048 = vunpack.c.h.b16 %v4786
        %v5049 = vunpack.c.l.b16 %v4787
        %v5050 = vunpack.c.h.b16 %v4787
        %v5051 = vunpack.c.l.b16 %v4788
        %v5052 = vunpack.c.h.b16 %v4788
        %v5053 = vunpack.c.l.b16 %v4789
        %v5054 = vunpack.c.h.b16 %v4789
        %v5055 = vunpack.c.l.b16 %v4790
        %v5056 = vunpack.c.h.b16 %v4790
        %v5057 = vunpack.c.l.b16 %v4791
        %v5058 = vunpack.c.h.b16 %v4791
        %v5059 = vunpack.c.l.b16 %v4792
        %v5060 = vunpack.c.h.b16 %v4792
        %v5061 = vunpack.c.l.b16 %v4793
        %v5062 = vunpack.c.h.b16 %v4793
        %v5063 = vunpack.c.l.b16 %v4794
        %v5064 = vunpack.c.h.b16 %v4794
        %v5065 = vunpack.c.l.b16 %v4795
        %v5066 = vunpack.c.h.b16 %v4795
        %v5067 = vunpack.c.l.b16 %v4796
        %v5068 = vunpack.c.h.b16 %v4796
        %v5069 = vunpack.c.l.b16 %v4797
        %v5070 = vunpack.c.h.b16 %v4797
        %v5071 = vunpack.c.l.b16 %v4798
        %v5072 = vunpack.c.h.b16 %v4798
        %v5073 = vunpack.c.l.b16 %v4799
        %v5074 = vunpack.c.h.b16 %v4799
        %v5075 = vunpack.c.l.b16 %v4800
        %v5076 = vunpack.c.h.b16 %v4800
        %v5077 = vunpack.c.l.b16 %v4801
        %v5078 = vunpack.c.h.b16 %v4801
        %v5079 = vunpack.c.l.b16 %v4802
        %v5080 = vunpack.c.h.b16 %v4802
        %v5081 = vunpack.c.l.b16 %v4803
        %v5082 = vunpack.c.h.b16 %v4803
        %v5083 = vunpack.c.l.b16 %v4804
        %v5084 = vunpack.c.h.b16 %v4804
        %v5085 = vunpack.c.l.b16 %v4805
        %v5086 = vunpack.c.h.b16 %v4805
        %v5087 = vunpack.c.l.b16 %v4806
        %v5088 = vunpack.c.h.b16 %v4806
        %v5089 = vunpack.c.l.b16 %v4807
        %v5090 = vunpack.c.h.b16 %v4807
        %v5091 = vunpack.c.l.b16 %v4808
        %v5092 = vunpack.c.h.b16 %v4808
        %v5093 = vunpack.c.l.b16 %v4809
        %v5094 = vunpack.c.h.b16 %v4809
        %v5095 = vunpack.c.l.b16 %v4810
        %v5096 = vunpack.c.h.b16 %v4810
        %v5097 = vunpack.c.l.b16 %v4811
        %v5098 = vunpack.c.h.b16 %v4811
        %v5099 = vunpack.c.l.b16 %v4812
        %v5100 = vunpack.c.h.b16 %v4812
        %v5101 = vunpack.c.l.b16 %v4813
        %v5102 = vunpack.c.h.b16 %v4813
        %v5103 = vunpack.c.l.b16 %v4814
        %v5104 = vunpack.c.h.b16 %v4814
        %v5105 = vunpack.c.l.b16 %v4815
        %v5106 = vunpack.c.h.b16 %v4815
        %v5107 = vunpack.c.l.b16 %v4816
        %v5108 = vunpack.c.h.b16 %v4816
        %v5109 = vunpack.c.l.b16 %v4817
        %v5110 = vunpack.c.h.b16 %v4817
        %v5111 = vunpack.c.l.b16 %v4818
        %v5112 = vunpack.c.h.b16 %v4818
        %v5113 = vunpack.c.l.b16 %v4819
        %v5114 = vunpack.c.h.b16 %v4819
        %v5115 = vunpack.c.l.b16 %v4820
        %v5116 = vunpack.c.h.b16 %v4820
        %v5117 = vunpack.c.l.b16 %v4821
        %v5118 = vunpack.c.h.b16 %v4821
        %v5119 = vunpack.c.l.b16 %v4822
        %v5120 = vunpack.c.h.b16 %v4822
        %v5121 = vunpack.c.l.b16 %v4823
        %v5122 = vunpack.c.h.b16 %v4823
        %v5123 = vunpack.c.l.b16 %v4824
        %v5124 = vunpack.c.h.b16 %v4824
        %v5125 = vunpack.c.l.b16 %v4825
        %v5126 = vunpack.c.h.b16 %v4825
        %v5127 = vunpack.c.l.b16 %v4826
        %v5128 = vunpack.c.h.b16 %v4826
        %v5129 = vunpack.c.l.b16 %v4827
        %v5130 = vunpack.c.h.b16 %v4827
        %v5131 = vunpack.c.l.b16 %v4828
        %v5132 = vunpack.c.h.b16 %v4828
        %v5133 = vunpack.c.l.b16 %v4829
        %v5134 = vunpack.c.h.b16 %v4829
        %v5135 = vunpack.c.l.b16 %v4830
        %v5136 = vunpack.c.h.b16 %v4830
        %v5137 = vunpack.c.l.b16 %v4831
        %v5138 = vunpack.c.h.b16 %v4831
        %v5139 = vunpack.c.l.b16 %v4832
        %v5140 = vunpack.c.h.b16 %v4832
        %v5141 = vunpack.c.l.b16 %v4833
        %v5142 = vunpack.c.h.b16 %v4833
        %v5143 = vunpack.c.l.b16 %v4834
        %v5144 = vunpack.c.h.b16 %v4834
        %v5145 = vunpack.c.l.b16 %v4835
        %v5146 = vunpack.c.h.b16 %v4835
        %v5147 = vunpack.c.l.b16 %v4836
        %v5148 = vunpack.c.h.b16 %v4836
        %v5149 = vunpack.c.l.b16 %v4837
        %v5150 = vunpack.c.h.b16 %v4837
        %v5151 = vunpack.c.l.b16 %v4838
        %v5152 = vunpack.c.h.b16 %v4838
        %v5153 = vunpack.c.l.b16 %v4839
        %v5154 = vunpack.c.h.b16 %v4839
        %v5155 = vunpack.c.l.b16 %v4840
        %v5156 = vunpack.c.h.b16 %v4840
        %v5157 = vunpack.c.l.b16 %v4841
        %v5158 = vunpack.c.h.b16 %v4841
        %v5159 = vunpack.c.l.b16 %v4842
        %v5160 = vunpack.c.h.b16 %v4842
        %v5161 = vunpack.c.l.b16 %v4843
        %v5162 = vunpack.c.h.b16 %v4843
        %v5163 = vunpack.c.l.b16 %v4844
        %v5164 = vunpack.c.h.b16 %v4844
        %v5165 = vunpack.c.l.b16 %v4845
        %v5166 = vunpack.c.h.b16 %v4845
        %v5167 = vunpack.c.l.b16 %v4846
        %v5168 = vunpack.c.h.b16 %v4846
        %v5169 = vunpack.c.l.b16 %v4847
        %v5170 = vunpack.c.h.b16 %v4847
        %v5171 = vunpack.c.l.b16 %v4848
        %v5172 = vunpack.c.h.b16 %v4848
        %v5173 = vunpack.c.l.b16 %v4849
        %v5174 = vunpack.c.h.b16 %v4849
        %v5175 = vunpack.c.l.b16 %v4850
        %v5176 = vunpack.c.h.b16 %v4850
        %v5177 = vunpack.c.l.b16 %v4851
        %v5178 = vunpack.c.h.b16 %v4851
        %v5179 = vunpack.c.l.b16 %v4852
        %v5180 = vunpack.c.h.b16 %v4852
        %v5181 = vunpack.c.l.b16 %v4853
        %v5182 = vunpack.c.h.b16 %v4853
        %v5183 = vunpack.c.l.b16 %v4854
        %v5184 = vunpack.c.h.b16 %v4854
        %v5185 = vunpack.c.l.b16 %v4855
        %v5186 = vunpack.c.h.b16 %v4855
        %v5187 = vunpack.c.l.b16 %v4856
        %v5188 = vunpack.c.h.b16 %v4856
        %v5189 = vunpack.c.l.b16 %v4857
        %v5190 = vunpack.c.h.b16 %v4857
        %v5191 = vunpack.c.l.b16 %v4858
        %v5192 = vunpack.c.h.b16 %v4858
        %v5193 = vunpack.c.l.b16 %v4859
        %v5194 = vunpack.c.h.b16 %v4859
        %v5195 = vunpack.c.l.b16 %v4860
        %v5196 = vunpack.c.h.b16 %v4860
        %v5197 = vunpack.c.l.b16 %v4861
        %v5198 = vunpack.c.h.b16 %v4861
        %v5199 = vunpack.c.l.b16 %v4862
        %v5200 = vunpack.c.h.b16 %v4862
        %v5201 = vunpack.c.l.b16 %v4863
        %v5202 = vunpack.c.h.b16 %v4863
        %v5203 = vunpack.c.l.b16 %v4864
        %v5204 = vunpack.c.h.b16 %v4864
        %v5205 = vunpack.c.l.b16 %v4865
        %v5206 = vunpack.c.h.b16 %v4865
        %v5207 = vunpack.c.l.b16 %v4866
        %v5208 = vunpack.c.h.b16 %v4866
        %v5209 = vunpack.c.l.b16 %v4867
        %v5210 = vunpack.c.h.b16 %v4867
        %v5211 = vunpack.c.l.b16 %v4868
        %v5212 = vunpack.c.h.b16 %v4868
        %v5213 = vunpack.c.l.b16 %v4869
        %v5214 = vunpack.c.h.b16 %v4869
        %v5215 = vunpack.c.l.b16 %v4870
        %v5216 = vunpack.c.h.b16 %v4870
        %v5217 = vunpack.c.l.b16 %v4871
        %v5218 = vunpack.c.h.b16 %v4871
        %v5219 = vunpack.c.l.b16 %v4872
        %v5220 = vunpack.c.h.b16 %v4872
        %v5221 = vunpack.c.l.b16 %v4873
        %v5222 = vunpack.c.h.b16 %v4873
        %v5223 = vunpack.c.l.b16 %v4874
        %v5224 = vunpack.c.h.b16 %v4874
        %v5225 = vunpack.c.l.b16 %v4875
        %v5226 = vunpack.c.h.b16 %v4875
        %v5227 = vunpack.c.l.b16 %v4876
        %v5228 = vunpack.c.h.b16 %v4876
        %v5229 = vunpack.c.l.b16 %v4877
        %v5230 = vunpack.c.h.b16 %v4877
        %v5231 = vunpack.c.l.b16 %v4878
        %v5232 = vunpack.c.h.b16 %v4878
        %v5233 = vunpack.c.l.b16 %v4879
        %v5234 = vunpack.c.h.b16 %v4879
        %v5235 = vunpack.c.l.b16 %v4880
        %v5236 = vunpack.c.h.b16 %v4880
        %v5237 = vunpack.c.l.b16 %v4881
        %v5238 = vunpack.c.h.b16 %v4881
        %v5239 = vunpack.c.l.b16 %v4882
        %v5240 = vunpack.c.h.b16 %v4882
        %v5241 = vunpack.c.l.b16 %v4883
        %v5242 = vunpack.c.h.b16 %v4883
        %v5243 = vunpack.c.l.b16 %v4884
        %v5244 = vunpack.c.h.b16 %v4884
        %v5245 = vunpack.c.l.b16 %v4885
        %v5246 = vunpack.c.h.b16 %v4885
        %v5247 = vunpack.c.l.b16 %v4886
        %v5248 = vunpack.c.h.b16 %v4886
        %v5249 = vunpack.c.l.b16 %v4887
        %v5250 = vunpack.c.h.b16 %v4887
        %v5251 = vunpack.c.l.b16 %v4888
        %v5252 = vunpack.c.h.b16 %v4888
        %v5253 = vunpack.c.l.b16 %v4889
        %v5254 = vunpack.c.h.b16 %v4889
        %v5255 = vunpack.c.l.b16 %v4890
        %v5256 = vunpack.c.h.b16 %v4890
        %v5257 = vunpack.c.l.b16 %v4891
        %v5258 = vunpack.c.h.b16 %v4891
        %v5259 = vunpack.c.l.b16 %v4892
        %v5260 = vunpack.c.h.b16 %v4892
        %v5261 = vunpack.c.l.b16 %v4893
        %v5262 = vunpack.c.h.b16 %v4893
        %v5263 = vunpack.c.l.b16 %v4894
        %v5264 = vunpack.c.h.b16 %v4894
        %v5265 = vunpack.c.l.b16 %v4895
        %v5266 = vunpack.c.h.b16 %v4895
        %v5267 = vunpack.c.l.b16 %v4896
        %v5268 = vunpack.c.h.b16 %v4896
        %v5269 = vunpack.c.l.b16 %v4897
        %v5270 = vunpack.c.h.b16 %v4897
        %v5271 = vunpack.c.l.b16 %v4898
        %v5272 = vunpack.c.h.b16 %v4898
        %v5273 = vunpack.c.l.b16 %v4899
        %v5274 = vunpack.c.h.b16 %v4899
        %v5275 = vunpack.c.l.b16 %v4900
        %v5276 = vunpack.c.h.b16 %v4900
        %v5277 = vunpack.c.l.b16 %v4901
        %v5278 = vunpack.c.h.b16 %v4901
        %v5279 = vunpack.c.l.b16 %v4902
        %v5280 = vunpack.c.h.b16 %v4902
        %v5281 = vunpack.c.l.b16 %v4903
        %v5282 = vunpack.c.h.b16 %v4903
        %v5283 = vunpack.c.l.b16 %v4904
        %v5284 = vunpack.c.h.b16 %v4904
        %v5285 = vunpack.c.l.b16 %v4905
        %v5286 = vunpack.c.h.b16 %v4905
        %v5287 = vunpack.c.l.b16 %v4906
        %v5288 = vunpack.c.h.b16 %v4906
        %v5289 = vunpack.c.l.b16 %v4907
        %v5290 = vunpack.c.h.b16 %v4907
        %v5291 = vunpack.c.l.b16 %v4908
        %v5292 = vunpack.c.h.b16 %v4908
        %v5293 = vpack.c.b16 %v5039, %v5037
        %v5294 = vpack.c.b16 %v5040, %v5038
        %v5295 = vpack.c.b16 %v5043, %v5041
        %v5296 = vpack.c.b16 %v5044, %v5042
        %v5297 = vpack.c.b16 %v5047, %v5045
        %v5298 = vpack.c.b16 %v5048, %v5046
        %v5299 = vpack.c.b16 %v5051, %v5049
        %v5300 = vpack.c.b16 %v5052, %v5050
        %v5301 = vpack.c.b16 %v5055, %v5053
        %v5302 = vpack.c.b16 %v5056, %v5054
        %v5303 = vpack.c.b16 %v5059, %v5057
        %v5304 = vpack.c.b16 %v5060, %v5058
        %v5305 = vpack.c.b16 %v5063, %v5061
        %v5306 = vpack.c.b16 %v5064, %v5062
        %v5307 = vpack.c.b16 %v5067, %v5065
        %v5308 = vpack.c.b16 %v5068, %v5066
        %v5309 = vpack.c.b16 %v5071, %v5069
        %v5310 = vpack.c.b16 %v5072, %v5070
        %v5311 = vpack.c.b16 %v5075, %v5073
        %v5312 = vpack.c.b16 %v5076, %v5074
        %v5313 = vpack.c.b16 %v5079, %v5077
        %v5314 = vpack.c.b16 %v5080, %v5078
        %v5315 = vpack.c.b16 %v5083, %v5081
        %v5316 = vpack.c.b16 %v5084, %v5082
        %v5317 = vpack.c.b16 %v5087, %v5085
        %v5318 = vpack.c.b16 %v5088, %v5086
        %v5319 = vpack.c.b16 %v5091, %v5089
        %v5320 = vpack.c.b16 %v5092, %v5090
        %v5321 = vpack.c.b16 %v5095, %v5093
        %v5322 = vpack.c.b16 %v5096, %v5094
        %v5323 = vpack.c.b16 %v5099, %v5097
        %v5324 = vpack.c.b16 %v5100, %v5098
        %v5325 = vpack.c.b16 %v5103, %v5101
        %v5326 = vpack.c.b16 %v5104, %v5102
        %v5327 = vpack.c.b16 %v5107, %v5105
        %v5328 = vpack.c.b16 %v5108, %v5106
        %v5329 = vpack.c.b16 %v5111, %v5109
        %v5330 = vpack.c.b16 %v5112, %v5110
        %v5331 = vpack.c.b16 %v5115, %v5113
        %v5332 = vpack.c.b16 %v5116, %v5114
        %v5333 = vpack.c.b16 %v5119, %v5117
        %v5334 = vpack.c.b16 %v5120, %v5118
        %v5335 = vpack.c.b16 %v5123, %v5121
        %v5336 = vpack.c.b16 %v5124, %v5122
        %v5337 = vpack.c.b16 %v5127, %v5125
        %v5338 = vpack.c.b16 %v5128, %v5126
        %v5339 = vpack.c.b16 %v5131, %v5129
        %v5340 = vpack.c.b16 %v5132, %v5130
        %v5341 = vpack.c.b16 %v5135, %v5133
        %v5342 = vpack.c.b16 %v5136, %v5134
        %v5343 = vpack.c.b16 %v5139, %v5137
        %v5344 = vpack.c.b16 %v5140, %v5138
        %v5345 = vpack.c.b16 %v5143, %v5141
        %v5346 = vpack.c.b16 %v5144, %v5142
        %v5347 = vpack.c.b16 %v5147, %v5145
        %v5348 = vpack.c.b16 %v5148, %v5146
        %v5349 = vpack.c.b16 %v5151, %v5149
        %v5350 = vpack.c.b16 %v5152, %v5150
        %v5351 = vpack.c.b16 %v5155, %v5153
        %v5352 = vpack.c.b16 %v5156, %v5154
        %v5353 = vpack.c.b16 %v5159, %v5157
        %v5354 = vpack.c.b16 %v5160, %v5158
        %v5355 = vpack.c.b16 %v5163, %v5161
        %v5356 = vpack.c.b16 %v5164, %v5162
        %v5357 = vpack.c.b16 %v5167, %v5165
        %v5358 = vpack.c.b16 %v5168, %v5166
        %v5359 = vpack.c.b16 %v5171, %v5169
        %v5360 = vpack.c.b16 %v5172, %v5170
        %v5361 = vpack.c.b16 %v5175, %v5173
        %v5362 = vpack.c.b16 %v5176, %v5174
        %v5363 = vpack.c.b16 %v5179, %v5177
        %v5364 = vpack.c.b16 %v5180, %v5178
        %v5365 = vpack.c.b16 %v5183, %v5181
        %v5366 = vpack.c.b16 %v5184, %v5182
        %v5367 = vpack.c.b16 %v5187, %v5185
        %v5368 = vpack.c.b16 %v5188, %v5186
        %v5369 = vpack.c.b16 %v5191, %v5189
        %v5370 = vpack.c.b16 %v5192, %v5190
        %v5371 = vpack.c.b16 %v5195, %v5193
        %v5372 = vpack.c.b16 %v5196, %v5194
        %v5373 = vpack.c.b16 %v5199, %v5197
        %v5374 = vpack.c.b16 %v5200, %v5198
        %v5375 = vpack.c.b16 %v5203, %v5201
        %v5376 = vpack.c.b16 %v5204, %v5202
        %v5377 = vpack.c.b16 %v5207, %v5205
        %v5378 = vpack.c.b16 %v5208, %v5206
        %v5379 = vpack.c.b16 %v5211, %v5209
        %v5380 = vpack.c.b16 %v5212, %v5210
        %v5381 = vpack.c.b16 %v5215, %v5213
        %v5382 = vpack.c.b16 %v5216, %v5214
        %v5383 = vpack.c.b16 %v5219, %v5217
        %v5384 = vpack.c.b16 %v5220, %v5218
        %v5385 = vpack.c.b16 %v5223, %v5221
        %v5386 = vpack.c.b16 %v5224, %v5222
        %v5387 = vpack.c.b16 %v5227, %v5225
        %v5388 = vpack.c.b16 %v5228, %v5226
        %v5389 = vpack.c.b16 %v5231, %v5229
        %v5390 = vpack.c.b16 %v5232, %v5230
        %v5391 = vpack.c.b16 %v5235, %v5233
        %v5392 = vpack.c.b16 %v5236, %v5234
        %v5393 = vpack.c.b16 %v5239, %v5237
        %v5394 = vpack.c.b16 %v5240, %v5238
        %v5395 = vpack.c.b16 %v5243, %v5241
        %v5396 = vpack.c.b16 %v5244, %v5242
        %v5397 = vpack.c.b16 %v5247, %v5245
        %v5398 = vpack.c.b16 %v5248, %v5246
        %v5399 = vpack.c.b16 %v5251, %v5249
        %v5400 = vpack.c.b16 %v5252, %v5250
        %v5401 = vpack.c.b16 %v5255, %v5253
        %v5402 = vpack.c.b16 %v5256, %v5254
        %v5403 = vpack.c.b16 %v5259, %v5257
        %v5404 = vpack.c.b16 %v5260, %v5258
        %v5405 = vpack.c.b16 %v5263, %v5261
        %v5406 = vpack.c.b16 %v5264, %v5262
        %v5407 = vpack.c.b16 %v5267, %v5265
        %v5408 = vpack.c.b16 %v5268, %v5266
        %v5409 = vpack.c.b16 %v5271, %v5269
        %v5410 = vpack.c.b16 %v5272, %v5270
        %v5411 = vpack.c.b16 %v5275, %v5273
        %v5412 = vpack.c.b16 %v5276, %v5274
        %v5413 = vpack.c.b16 %v5279, %v5277
        %v5414 = vpack.c.b16 %v5280, %v5278
        %v5415 = vpack.c.b16 %v5283, %v5281
        %v5416 = vpack.c.b16 %v5284, %v5282
        %v5417 = vpack.c.b16 %v5287, %v5285
        %v5418 = vpack.c.b16 %v5288, %v5286
        %v5419 = vpack.c.b16 %v5291, %v5289
        %v5420 = vpack.c.b16 %v5292, %v5290
        %5549 = vmatprep.subr.bf16.mxu0 %v5294
        %5550 = vmatpush1.bf16.msra.mxu0 %v5293
        %5551 = vmatprep.subr.bf16.mxu0 %v5296
        %5552 = vmatpush1.bf16.msra.mxu0 %v5295
        %5553 = vmatprep.subr.bf16.mxu0 %v5298
        %5554 = vmatpush1.bf16.msra.mxu0 %v5297
        %5555 = vmatprep.subr.bf16.mxu0 %v5300
        %5556 = vmatpush1.bf16.msra.mxu0 %v5299
        %5557 = vmatprep.subr.bf16.mxu0 %v5302
        %5558 = vmatpush1.bf16.msra.mxu0 %v5301
        %5559 = vmatprep.subr.bf16.mxu0 %v5304
        %5560 = vmatpush1.bf16.msra.mxu0 %v5303
        %5561 = vmatprep.subr.bf16.mxu0 %v5306
        %5562 = vmatpush1.bf16.msra.mxu0 %v5305
        %5563 = vmatprep.subr.bf16.mxu0 %v5308
        %5564 = vmatpush1.bf16.msra.mxu0 %v5307
        %5565 = vmatprep.subr.bf16.mxu0 %v5310
        %5566 = vmatpush1.bf16.msra.mxu0 %v5309
        %5567 = vmatprep.subr.bf16.mxu0 %v5312
        %5568 = vmatpush1.bf16.msra.mxu0 %v5311
        %5569 = vmatprep.subr.bf16.mxu0 %v5314
        %5570 = vmatpush1.bf16.msra.mxu0 %v5313
        %5571 = vmatprep.subr.bf16.mxu0 %v5316
        %5572 = vmatpush1.bf16.msra.mxu0 %v5315
        %5573 = vmatprep.subr.bf16.mxu0 %v5318
        %5574 = vmatpush1.bf16.msra.mxu0 %v5317
        %5575 = vmatprep.subr.bf16.mxu0 %v5320
        %5576 = vmatpush1.bf16.msra.mxu0 %v5319
        %5577 = vmatprep.subr.bf16.mxu0 %v5322
        %5578 = vmatpush1.bf16.msra.mxu0 %v5321
        %5579 = vmatprep.subr.bf16.mxu0 %v5324
        %5580 = vmatpush1.bf16.msra.mxu0 %v5323
        %5581 = vmatprep.mubr.bf16.mxu0 %v4774
        %5582 = vmatmul.mubr.bf16.gmra.mrb[0].mxu0 %v4773
        %v5583 = vpop.f32.mrb[0].mxu0
        %v5584 = vadd.f32 0.0, %v5583
        %v5585 = vpop.f32.mrb[0].mxu0
        %v5586 = vadd.f32 0.0, %v5585
        %v5587 = vpop.f32.mrb[0].mxu0
        %v5588 = vadd.f32 0.0, %v5587
        %v5589 = vpop.f32.mrb[0].mxu0
        %v5590 = vadd.f32 0.0, %v5589
        %5591 = vdwg.mxu0
        %5592 = vmatprep.subr.bf16.mxu0 %v5326
        %5593 = vmatpush1.bf16.msra.mxu0 %v5325
        %5594 = vmatprep.subr.bf16.mxu0 %v5328
        %5595 = vmatpush1.bf16.msra.mxu0 %v5327
        %5596 = vmatprep.subr.bf16.mxu0 %v5330
        %5597 = vmatpush1.bf16.msra.mxu0 %v5329
        %5598 = vmatprep.subr.bf16.mxu0 %v5332
        %5599 = vmatpush1.bf16.msra.mxu0 %v5331
        %5600 = vmatprep.subr.bf16.mxu0 %v5334
        %5601 = vmatpush1.bf16.msra.mxu0 %v5333
        %5602 = vmatprep.subr.bf16.mxu0 %v5336
        %5603 = vmatpush1.bf16.msra.mxu0 %v5335
        %5604 = vmatprep.subr.bf16.mxu0 %v5338
        %5605 = vmatpush1.bf16.msra.mxu0 %v5337
        %5606 = vmatprep.subr.bf16.mxu0 %v5340
        %5607 = vmatpush1.bf16.msra.mxu0 %v5339
        %5608 = vmatprep.subr.bf16.mxu0 %v5342
        %5609 = vmatpush1.bf16.msra.mxu0 %v5341
        %5610 = vmatprep.subr.bf16.mxu0 %v5344
        %5611 = vmatpush1.bf16.msra.mxu0 %v5343
        %5612 = vmatprep.subr.bf16.mxu0 %v5346
        %5613 = vmatpush1.bf16.msra.mxu0 %v5345
        %5614 = vmatprep.subr.bf16.mxu0 %v5348
        %5615 = vmatpush1.bf16.msra.mxu0 %v5347
        %5616 = vmatprep.subr.bf16.mxu0 %v5350
        %5617 = vmatpush1.bf16.msra.mxu0 %v5349
        %5618 = vmatprep.subr.bf16.mxu0 %v5352
        %5619 = vmatpush1.bf16.msra.mxu0 %v5351
        %5620 = vmatprep.subr.bf16.mxu0 %v5354
        %5621 = vmatpush1.bf16.msra.mxu0 %v5353
        %5622 = vmatprep.subr.bf16.mxu0 %v5356
        %5623 = vmatpush1.bf16.msra.mxu0 %v5355
        %5624 = vmatprep.mubr.bf16.mxu0 %v4776
        %5625 = vmatmul.mubr.bf16.gmra.mrb[0].mxu0 %v4775
        %v5626 = vpop.f32.mrb[0].mxu0
        %v5627 = vadd.f32 %v5584, %v5626
        %v5628 = vpop.f32.mrb[0].mxu0
        %v5629 = vadd.f32 %v5586, %v5628
        %v5630 = vpop.f32.mrb[0].mxu0
        %v5631 = vadd.f32 %v5588, %v5630
        %v5632 = vpop.f32.mrb[0].mxu0
        %v5633 = vadd.f32 %v5590, %v5632
        %5634 = vdwg.mxu0
        %5635 = vmatprep.subr.bf16.mxu0 %v5358
        %5636 = vmatpush1.bf16.msra.mxu0 %v5357
        %5637 = vmatprep.subr.bf16.mxu0 %v5360
        %5638 = vmatpush1.bf16.msra.mxu0 %v5359
        %5639 = vmatprep.subr.bf16.mxu0 %v5362
        %5640 = vmatpush1.bf16.msra.mxu0 %v5361
        %5641 = vmatprep.subr.bf16.mxu0 %v5364
        %5642 = vmatpush1.bf16.msra.mxu0 %v5363
        %5643 = vmatprep.subr.bf16.mxu0 %v5366
        %5644 = vmatpush1.bf16.msra.mxu0 %v5365
        %5645 = vmatprep.subr.bf16.mxu0 %v5368
        %5646 = vmatpush1.bf16.msra.mxu0 %v5367
        %5647 = vmatprep.subr.bf16.mxu0 %v5370
        %5648 = vmatpush1.bf16.msra.mxu0 %v5369
        %5649 = vmatprep.subr.bf16.mxu0 %v5372
        %5650 = vmatpush1.bf16.msra.mxu0 %v5371
        %5651 = vmatprep.subr.bf16.mxu0 %v5374
        %5652 = vmatpush1.bf16.msra.mxu0 %v5373
        %5653 = vmatprep.subr.bf16.mxu0 %v5376
        %5654 = vmatpush1.bf16.msra.mxu0 %v5375
        %5655 = vmatprep.subr.bf16.mxu0 %v5378
        %5656 = vmatpush1.bf16.msra.mxu0 %v5377
        %5657 = vmatprep.subr.bf16.mxu0 %v5380
        %5658 = vmatpush1.bf16.msra.mxu0 %v5379
        %5659 = vmatprep.subr.bf16.mxu0 %v5382
        %5660 = vmatpush1.bf16.msra.mxu0 %v5381
        %5661 = vmatprep.subr.bf16.mxu0 %v5384
        %5662 = vmatpush1.bf16.msra.mxu0 %v5383
        %5663 = vmatprep.subr.bf16.mxu0 %v5386
        %5664 = vmatpush1.bf16.msra.mxu0 %v5385
        %5665 = vmatprep.subr.bf16.mxu0 %v5388
        %5666 = vmatpush1.bf16.msra.mxu0 %v5387
        %5667 = vmatprep.mubr.bf16.mxu0 %v4778
        %5668 = vmatmul.mubr.bf16.gmra.mrb[0].mxu0 %v4777
        %v5669 = vpop.f32.mrb[0].mxu0
        %v5670 = vadd.f32 %v5627, %v5669
        %v5671 = vpop.f32.mrb[0].mxu0
        %v5672 = vadd.f32 %v5629, %v5671
        %v5673 = vpop.f32.mrb[0].mxu0
        %v5674 = vadd.f32 %v5631, %v5673
        %v5675 = vpop.f32.mrb[0].mxu0
        %v5676 = vadd.f32 %v5633, %v5675
        %5677 = vdwg.mxu0
        %5678 = vmatprep.subr.bf16.mxu0 %v5390
        %5679 = vmatpush1.bf16.msra.mxu0 %v5389
        %5680 = vmatprep.subr.bf16.mxu0 %v5392
        %5681 = vmatpush1.bf16.msra.mxu0 %v5391
        %5682 = vmatprep.subr.bf16.mxu0 %v5394
        %5683 = vmatpush1.bf16.msra.mxu0 %v5393
        %5684 = vmatprep.subr.bf16.mxu0 %v5396
        %5685 = vmatpush1.bf16.msra.mxu0 %v5395
        %5686 = vmatprep.subr.bf16.mxu0 %v5398
        %5687 = vmatpush1.bf16.msra.mxu0 %v5397
        %5688 = vmatprep.subr.bf16.mxu0 %v5400
        %5689 = vmatpush1.bf16.msra.mxu0 %v5399
        %5690 = vmatprep.subr.bf16.mxu0 %v5402
        %5691 = vmatpush1.bf16.msra.mxu0 %v5401
        %5692 = vmatprep.subr.bf16.mxu0 %v5404
        %5693 = vmatpush1.bf16.msra.mxu0 %v5403
        %5694 = vmatprep.subr.bf16.mxu0 %v5406
        %5695 = vmatpush1.bf16.msra.mxu0 %v5405
        %5696 = vmatprep.subr.bf16.mxu0 %v5408
        %5697 = vmatpush1.bf16.msra.mxu0 %v5407
        %5698 = vmatprep.subr.bf16.mxu0 %v5410
        %5699 = vmatpush1.bf16.msra.mxu0 %v5409
        %5700 = vmatprep.subr.bf16.mxu0 %v5412
        %5701 = vmatpush1.bf16.msra.mxu0 %v5411
        %5702 = vmatprep.subr.bf16.mxu0 %v5414
        %5703 = vmatpush1.bf16.msra.mxu0 %v5413
        %5704 = vmatprep.subr.bf16.mxu0 %v5416
        %5705 = vmatpush1.bf16.msra.mxu0 %v5415
        %5706 = vmatprep.subr.bf16.mxu0 %v5418
        %5707 = vmatpush1.bf16.msra.mxu0 %v5417
        %5708 = vmatprep.subr.bf16.mxu0 %v5420
        %5709 = vmatpush1.bf16.msra.mxu0 %v5419
        %5710 = vmatprep.mubr.bf16.mxu0 %v4780
        %5711 = vmatmul.mubr.bf16.gmra.mrb[0].mxu0 %v4779
        %v5712 = vpop.f32.mrb[0].mxu0
        %v5713 = vadd.f32 %v5670, %v5712
        %v5714 = vpop.f32.mrb[0].mxu0
        %v5715 = vadd.f32 %v5672, %v5714
        %v5716 = vpop.f32.mrb[0].mxu0
        %v5717 = vadd.f32 %v5674, %v5716
        %v5718 = vpop.f32.mrb[0].mxu0
        %v5719 = vadd.f32 %v5676, %v5718
        %5720 = vdwg.mxu0
        %v5721 = vld [vmem:[#allocation11] sm:$0x3]
        %v5723 = vlaneseq
        %v5724 = vshrl.u32 %v5723, 7
        %v5725 = vsub.s32 0, %v5724
        %v5726 = vrot.slane %v5721, %v5725
        %v5727 = vlaneseq
        %v5728 = vshrl.u32 %v5727, 7
        %v5729 = vsub.s32 1, %v5728
        %v5730 = vrot.slane %v5721, %v5729
        %v5733 = vmul.f32 %v5713, %v5726
        %v5734 = vmul.f32 %v5715, %v5730
        %v5735 = vmul.f32 %v5717, %v5726
        %v5736 = vmul.f32 %v5719, %v5730
        %v5737 = vld [vmem:[#allocation12] sm:$0x3]
        %v5739 = vlaneseq
        %v5740 = vshrl.u32 %v5739, 7
        %v5741 = vsub.s32 0, %v5740
        %v5742 = vrot.slane %v5737, %v5741
        %v5743 = vlaneseq
        %v5744 = vshrl.u32 %v5743, 7
        %v5745 = vsub.s32 1, %v5744
        %v5746 = vrot.slane %v5737, %v5745
        %v5749 = vadd.f32 %v5733, %v5742
        %v5750 = vadd.f32 %v5734, %v5746
        %v5751 = vadd.f32 %v5735, %v5742
        %v5752 = vadd.f32 %v5736, %v5746
        %v5753 = vmax.f32 %v5749, 0.0
        %v5754 = vmax.f32 %v5750, 0.0
        %v5755 = vmax.f32 %v5751, 0.0
        %v5756 = vmax.f32 %v5752, 0.0
        %s5757 = smul.u32 %s35, 16
        %v5758 = vlaneseq
        %v5759 = vshrl.u32 %v5758, 7
        %v5760 = vadd.s32 %v5759, 8
        %v5761 = vstv %s5757
        %v5762 = vadd.s32 %v5761, %v5759
        %v5763 = vadd.s32 %v5761, %v5760
        %vm5764 = vcmp.lt.s32.totalorder %v5762, 16
        %vm5765 = vcmp.lt.s32.totalorder %v5763, 16
        %v5766 = vsel %vm5764, 1, 0
        %v5767 = vsel %vm5765, 1, 0
        %vm5768 = vcmp.eq.s32.totalorder %v5766, 1
        %vm5769 = vcmp.eq.s32.totalorder %v5767, 1
        %v5770 = vsel %vm5768, %v5753, -inf
        %v5771 = vsel %vm5768, %v5754, -inf
        %v5772 = vsel %vm5769, %v5755, -inf
        %v5773 = vsel %vm5769, %v5756, -inf
        %v5774 = vmax.f32 %v5770, %v5772
        %v5775 = vrot.slane %v5774, 4
        %v5776 = vmax.f32 %v5774, %v5775
        %v5777 = vrot.slane %v5776, 2
        %v5778 = vmax.f32 %v5776, %v5777
        %v5779 = vrot.slane %v5778, 1
        %v5780 = vmax.f32 %v5778, %v5779
        %v5781 = vmax.f32 %v5771, %v5773
        %v5782 = vrot.slane %v5781, 4
        %v5783 = vmax.f32 %v5781, %v5782
        %v5784 = vrot.slane %v5783, 2
        %v5785 = vmax.f32 %v5783, %v5784
        %v5786 = vrot.slane %v5785, 1
        %v5787 = vmax.f32 %v5785, %v5786
        %v5788 = vld [vmem:[#allocation2] sm:$0xf]
        %v5789 = vstv %s34
        %vm5790 = vcmp.eq.s32.totalorder %v5759, %v5789
        %v5793 = vcombine.low %v5780, %v5787
        %v5795 = vunpack.c.l.s4 1983009808
        %v5796 = vunpack.c.0.s8 %v5795
        %v5797 = vlaneseq
        %v5798 = vshrl.u32 %v5797, 7
        %v5799 = vsub.s32 %v5796, %v5798
        %v5800 = vrot.slane %v5793, %v5799
        %v5802 = vmax.f32 %v5788, %v5800
        %v5803 = vsel %vm5790, 1, 0
        %vm5804 = vcmp.eq.s32.totalorder %v5803, 1
        %v5807 = vunpack.c.l.s4 1983009808
        %v5808 = vunpack.c.0.s8 %v5807
        %v5809 = vlaneseq
        %v5810 = vshrl.u32 %v5809, 7
        %v5811 = vsub.s32 %v5808, %v5810
        %v5812 = vrot.slane %v5802, %v5811
        %v5813 = vcombine.high %v5812, %v5812
        %v5818 = vunpack.c.l.s4 1983009808
        %v5819 = vunpack.c.0.s8 %v5818
        %v5820 = vlaneseq
        %v5821 = vshrl.u32 %v5820, 7
        %v5822 = vsub.s32 %v5819, %v5821
        %v5823 = vrot.slane %v5788, %v5822
        %v5824 = vcombine.high %v5823, %v5823
        %v5827 = vsel %vm5804, %v5812, %v5823
        %v5828 = vsel %vm5804, %v5813, %v5824
        %v5831 = vcombine.low %v5827, %v5828
        %v5833 = vunpack.c.l.s4 1983009808
        %v5834 = vunpack.c.0.s8 %v5833
        %v5835 = vlaneseq
        %v5836 = vshrl.u32 %v5835, 7
        %v5837 = vsub.s32 %v5834, %v5836
        %v5838 = vrot.slane %v5831, %v5837
        %5840 = vst [vmem:[#allocation2] sm:$0xf] %v5838
        %p5841 = scmp.eq.s32.totalorder %s34, 1
        %p5842 = pnand %p5841, %p579
        %p5843 = pneg %p5842
        // Predicated region
        $region117: #{rot_red_forward.1} parent=67 // pred_check
          _
        $region118: #{rot_red_forward.1} parent=67 // pred_check_branch
          %5845 = sbr.rel (%p5842) target = $region120
        $region119: #{rot_red_forward.1} parent=67 // pred_region
          %v5846 = vld [vmem:[#allocation2] sm:$0xf]
          %v5849 = vunpack.c.l.s4 1983009808
          %v5850 = vunpack.c.0.s8 %v5849
          %v5851 = vlaneseq
          %v5852 = vshrl.u32 %v5851, 7
          %v5853 = vsub.s32 %v5850, %v5852
          %v5854 = vrot.slane %v5846, %v5853
          %v5855 = vcombine.high %v5854, %v5854
          %v5858 = vpack.c.bf16 %v5854, %v5854
          %v5859 = vpack.c.bf16 %v5855, %v5855
          %v5860 = vld [vmem:[#allocation14] sm:$0xff]
          %v5861 = vld [vmem:[#allocation14 + $0x8] sm:$0xff]
          %v5862 = vld [vmem:[#allocation14 + $0x10] sm:$0xff]
          %v5863 = vld [vmem:[#allocation14 + $0x18] sm:$0xff]
          %v5864 = vld [vmem:[#allocation14 + $0x20] sm:$0xff]
          %v5865 = vld [vmem:[#allocation14 + $0x28] sm:$0xff]
          %v5866 = vld [vmem:[#allocation14 + $0x30] sm:$0xff]
          %v5867 = vld [vmem:[#allocation14 + $0x38] sm:$0xff]
          %v5868 = vld [vmem:[#allocation14 + $0x40] sm:$0xff]
          %v5869 = vld [vmem:[#allocation14 + $0x48] sm:$0xff]
          %v5870 = vld [vmem:[#allocation14 + $0x50] sm:$0xff]
          %v5871 = vld [vmem:[#allocation14 + $0x58] sm:$0xff]
          %v5872 = vld [vmem:[#allocation14 + $0x60] sm:$0xff]
          %v5873 = vld [vmem:[#allocation14 + $0x68] sm:$0xff]
          %v5874 = vld [vmem:[#allocation14 + $0x70] sm:$0xff]
          %v5875 = vld [vmem:[#allocation14 + $0x78] sm:$0xff]
          %v5876 = vld [vmem:[#allocation14 + $0x80] sm:$0xff]
          %v5877 = vld [vmem:[#allocation14 + $0x88] sm:$0xff]
          %v5878 = vld [vmem:[#allocation14 + $0x90] sm:$0xff]
          %v5879 = vld [vmem:[#allocation14 + $0x98] sm:$0xff]
          %v5880 = vld [vmem:[#allocation14 + $0xa0] sm:$0xff]
          %v5881 = vld [vmem:[#allocation14 + $0xa8] sm:$0xff]
          %v5882 = vld [vmem:[#allocation14 + $0xb0] sm:$0xff]
          %v5883 = vld [vmem:[#allocation14 + $0xb8] sm:$0xff]
          %v5884 = vld [vmem:[#allocation14 + $0xc0] sm:$0xff]
          %v5885 = vld [vmem:[#allocation14 + $0xc8] sm:$0xff]
          %v5886 = vld [vmem:[#allocation14 + $0xd0] sm:$0xff]
          %v5887 = vld [vmem:[#allocation14 + $0xd8] sm:$0xff]
          %v5888 = vld [vmem:[#allocation14 + $0xe0] sm:$0xff]
          %v5889 = vld [vmem:[#allocation14 + $0xe8] sm:$0xff]
          %v5890 = vld [vmem:[#allocation14 + $0xf0] sm:$0xff]
          %v5891 = vld [vmem:[#allocation14 + $0xf8] sm:$0xff]
          %v5924 = vunpack.c.l.b16 %v5860
          %v5925 = vunpack.c.h.b16 %v5860
          %v5926 = vunpack.c.l.b16 %v5861
          %v5927 = vunpack.c.h.b16 %v5861
          %v5928 = vunpack.c.l.b16 %v5862
          %v5929 = vunpack.c.h.b16 %v5862
          %v5930 = vunpack.c.l.b16 %v5863
          %v5931 = vunpack.c.h.b16 %v5863
          %v5932 = vunpack.c.l.b16 %v5864
          %v5933 = vunpack.c.h.b16 %v5864
          %v5934 = vunpack.c.l.b16 %v5865
          %v5935 = vunpack.c.h.b16 %v5865
          %v5936 = vunpack.c.l.b16 %v5866
          %v5937 = vunpack.c.h.b16 %v5866
          %v5938 = vunpack.c.l.b16 %v5867
          %v5939 = vunpack.c.h.b16 %v5867
          %v5940 = vunpack.c.l.b16 %v5868
          %v5941 = vunpack.c.h.b16 %v5868
          %v5942 = vunpack.c.l.b16 %v5869
          %v5943 = vunpack.c.h.b16 %v5869
          %v5944 = vunpack.c.l.b16 %v5870
          %v5945 = vunpack.c.h.b16 %v5870
          %v5946 = vunpack.c.l.b16 %v5871
          %v5947 = vunpack.c.h.b16 %v5871
          %v5948 = vunpack.c.l.b16 %v5872
          %v5949 = vunpack.c.h.b16 %v5872
          %v5950 = vunpack.c.l.b16 %v5873
          %v5951 = vunpack.c.h.b16 %v5873
          %v5952 = vunpack.c.l.b16 %v5874
          %v5953 = vunpack.c.h.b16 %v5874
          %v5954 = vunpack.c.l.b16 %v5875
          %v5955 = vunpack.c.h.b16 %v5875
          %v5956 = vunpack.c.l.b16 %v5876
          %v5957 = vunpack.c.h.b16 %v5876
          %v5958 = vunpack.c.l.b16 %v5877
          %v5959 = vunpack.c.h.b16 %v5877
          %v5960 = vunpack.c.l.b16 %v5878
          %v5961 = vunpack.c.h.b16 %v5878
          %v5962 = vunpack.c.l.b16 %v5879
          %v5963 = vunpack.c.h.b16 %v5879
          %v5964 = vunpack.c.l.b16 %v5880
          %v5965 = vunpack.c.h.b16 %v5880
          %v5966 = vunpack.c.l.b16 %v5881
          %v5967 = vunpack.c.h.b16 %v5881
          %v5968 = vunpack.c.l.b16 %v5882
          %v5969 = vunpack.c.h.b16 %v5882
          %v5970 = vunpack.c.l.b16 %v5883
          %v5971 = vunpack.c.h.b16 %v5883
          %v5972 = vunpack.c.l.b16 %v5884
          %v5973 = vunpack.c.h.b16 %v5884
          %v5974 = vunpack.c.l.b16 %v5885
          %v5975 = vunpack.c.h.b16 %v5885
          %v5976 = vunpack.c.l.b16 %v5886
          %v5977 = vunpack.c.h.b16 %v5886
          %v5978 = vunpack.c.l.b16 %v5887
          %v5979 = vunpack.c.h.b16 %v5887
          %v5980 = vunpack.c.l.b16 %v5888
          %v5981 = vunpack.c.h.b16 %v5888
          %v5982 = vunpack.c.l.b16 %v5889
          %v5983 = vunpack.c.h.b16 %v5889
          %v5984 = vunpack.c.l.b16 %v5890
          %v5985 = vunpack.c.h.b16 %v5890
          %v5986 = vunpack.c.l.b16 %v5891
          %v5987 = vunpack.c.h.b16 %v5891
          %v5988 = vpack.c.b16 %v5926, %v5924
          %v5989 = vpack.c.b16 %v5927, %v5925
          %v5990 = vpack.c.b16 %v5930, %v5928
          %v5991 = vpack.c.b16 %v5931, %v5929
          %v5992 = vpack.c.b16 %v5934, %v5932
          %v5993 = vpack.c.b16 %v5935, %v5933
          %v5994 = vpack.c.b16 %v5938, %v5936
          %v5995 = vpack.c.b16 %v5939, %v5937
          %v5996 = vpack.c.b16 %v5942, %v5940
          %v5997 = vpack.c.b16 %v5943, %v5941
          %v5998 = vpack.c.b16 %v5946, %v5944
          %v5999 = vpack.c.b16 %v5947, %v5945
          %v6000 = vpack.c.b16 %v5950, %v5948
          %v6001 = vpack.c.b16 %v5951, %v5949
          %v6002 = vpack.c.b16 %v5954, %v5952
          %v6003 = vpack.c.b16 %v5955, %v5953
          %v6004 = vpack.c.b16 %v5958, %v5956
          %v6005 = vpack.c.b16 %v5959, %v5957
          %v6006 = vpack.c.b16 %v5962, %v5960
          %v6007 = vpack.c.b16 %v5963, %v5961
          %v6008 = vpack.c.b16 %v5966, %v5964
          %v6009 = vpack.c.b16 %v5967, %v5965
          %v6010 = vpack.c.b16 %v5970, %v5968
          %v6011 = vpack.c.b16 %v5971, %v5969
          %v6012 = vpack.c.b16 %v5974, %v5972
          %v6013 = vpack.c.b16 %v5975, %v5973
          %v6014 = vpack.c.b16 %v5978, %v5976
          %v6015 = vpack.c.b16 %v5979, %v5977
          %v6016 = vpack.c.b16 %v5982, %v5980
          %v6017 = vpack.c.b16 %v5983, %v5981
          %v6018 = vpack.c.b16 %v5986, %v5984
          %v6019 = vpack.c.b16 %v5987, %v5985
          %6052 = vmatprep.subr.bf16.mxu0 %v5989
          %6053 = vmatpush1.bf16.msra.mxu0 %v5988
          %6054 = vmatprep.subr.bf16.mxu0 %v5991
          %6055 = vmatpush1.bf16.msra.mxu0 %v5990
          %6056 = vmatprep.subr.bf16.mxu0 %v5993
          %6057 = vmatpush1.bf16.msra.mxu0 %v5992
          %6058 = vmatprep.subr.bf16.mxu0 %v5995
          %6059 = vmatpush1.bf16.msra.mxu0 %v5994
          %6060 = vmatprep.subr.bf16.mxu0 %v5997
          %6061 = vmatpush1.bf16.msra.mxu0 %v5996
          %6062 = vmatprep.subr.bf16.mxu0 %v5999
          %6063 = vmatpush1.bf16.msra.mxu0 %v5998
          %6064 = vmatprep.subr.bf16.mxu0 %v6001
          %6065 = vmatpush1.bf16.msra.mxu0 %v6000
          %6066 = vmatprep.subr.bf16.mxu0 %v6003
          %6067 = vmatpush1.bf16.msra.mxu0 %v6002
          %6068 = vmatprep.subr.bf16.mxu0 %v6005
          %6069 = vmatpush1.bf16.msra.mxu0 %v6004
          %6070 = vmatprep.subr.bf16.mxu0 %v6007
          %6071 = vmatpush1.bf16.msra.mxu0 %v6006
          %6072 = vmatprep.subr.bf16.mxu0 %v6009
          %6073 = vmatpush1.bf16.msra.mxu0 %v6008
          %6074 = vmatprep.subr.bf16.mxu0 %v6011
          %6075 = vmatpush1.bf16.msra.mxu0 %v6010
          %6076 = vmatprep.subr.bf16.mxu0 %v6013
          %6077 = vmatpush1.bf16.msra.mxu0 %v6012
          %6078 = vmatprep.subr.bf16.mxu0 %v6015
          %6079 = vmatpush1.bf16.msra.mxu0 %v6014
          %6080 = vmatprep.subr.bf16.mxu0 %v6017
          %6081 = vmatpush1.bf16.msra.mxu0 %v6016
          %6082 = vmatprep.subr.bf16.mxu0 %v6019
          %6083 = vmatpush1.bf16.msra.mxu0 %v6018
          %6084 = vmatprep.mubr.bf16.mxu0 %v5859
          %6085 = vmatmul.mubr.bf16.gmra.mrb[0].mxu0 %v5858
          %v6086 = vpop.f32.mrb[0].mxu0
          %v6087 = vadd.f32 0.0, %v6086
          %v6088 = vpop.f32.mrb[0].mxu0
          %v6089 = vadd.f32 0.0, %v6088
          %v6090 = vpop.f32.mrb[0].mxu0
          %v6091 = vpop.f32.mrb[0].mxu0
          %6092 = vdwg.mxu0
          %v6093 = vld [vmem:[#allocation15] sm:$0x3]
          %v6095 = vlaneseq
          %v6096 = vshrl.u32 %v6095, 7
          %v6097 = vsub.s32 0, %v6096
          %v6098 = vrot.slane %v6093, %v6097
          %v6099 = vlaneseq
          %v6100 = vshrl.u32 %v6099, 7
          %v6101 = vsub.s32 1, %v6100
          %v6102 = vrot.slane %v6093, %v6101
          %v6105 = vmul.f32 %v6087, %v6098
          %v6106 = vmul.f32 %v6089, %v6102
          %v6107 = vld [vmem:[#allocation17] sm:$0x3]
          %v6109 = vlaneseq
          %v6110 = vshrl.u32 %v6109, 7
          %v6111 = vsub.s32 0, %v6110
          %v6112 = vrot.slane %v6107, %v6111
          %v6113 = vlaneseq
          %v6114 = vshrl.u32 %v6113, 7
          %v6115 = vsub.s32 1, %v6114
          %v6116 = vrot.slane %v6107, %v6115
          %v6119 = vadd.f32 %v6105, %v6112
          %v6120 = vadd.f32 %v6106, %v6116
          %v6121 = vmax.f32 %v6119, 0.0
          %v6122 = vmax.f32 %v6120, 0.0
          %v6123 = vpack.c.bf16 %v6121, %v6121
          %v6124 = vpack.c.bf16 %v6122, %v6122
          %v6125 = vld [vmem:[#allocation18] sm:$0xf]
          %v6126 = vld [vmem:[#allocation18 + $0x4] sm:$0xf]
          %v6127 = vld [vmem:[#allocation18 + $0x8] sm:$0xf]
          %v6128 = vld [vmem:[#allocation18 + $0xc] sm:$0xf]
          %v6129 = vld [vmem:[#allocation18 + $0x10] sm:$0xf]
          %v6130 = vld [vmem:[#allocation18 + $0x14] sm:$0xf]
          %v6131 = vld [vmem:[#allocation18 + $0x18] sm:$0xf]
          %v6132 = vld [vmem:[#allocation18 + $0x1c] sm:$0xf]
          %v6133 = vld [vmem:[#allocation18 + $0x20] sm:$0xf]
          %v6134 = vld [vmem:[#allocation18 + $0x24] sm:$0xf]
          %v6135 = vld [vmem:[#allocation18 + $0x28] sm:$0xf]
          %v6136 = vld [vmem:[#allocation18 + $0x2c] sm:$0xf]
          %v6137 = vld [vmem:[#allocation18 + $0x30] sm:$0xf]
          %v6138 = vld [vmem:[#allocation18 + $0x34] sm:$0xf]
          %v6139 = vld [vmem:[#allocation18 + $0x38] sm:$0xf]
          %v6140 = vld [vmem:[#allocation18 + $0x3c] sm:$0xf]
          %v6141 = vld [vmem:[#allocation18 + $0x40] sm:$0xf]
          %v6142 = vld [vmem:[#allocation18 + $0x44] sm:$0xf]
          %v6143 = vld [vmem:[#allocation18 + $0x48] sm:$0xf]
          %v6144 = vld [vmem:[#allocation18 + $0x4c] sm:$0xf]
          %v6145 = vld [vmem:[#allocation18 + $0x50] sm:$0xf]
          %v6146 = vld [vmem:[#allocation18 + $0x54] sm:$0xf]
          %v6147 = vld [vmem:[#allocation18 + $0x58] sm:$0xf]
          %v6148 = vld [vmem:[#allocation18 + $0x5c] sm:$0xf]
          %v6149 = vld [vmem:[#allocation18 + $0x60] sm:$0xf]
          %v6150 = vld [vmem:[#allocation18 + $0x64] sm:$0xf]
          %v6151 = vld [vmem:[#allocation18 + $0x68] sm:$0xf]
          %v6152 = vld [vmem:[#allocation18 + $0x6c] sm:$0xf]
          %v6153 = vld [vmem:[#allocation18 + $0x70] sm:$0xf]
          %v6154 = vld [vmem:[#allocation18 + $0x74] sm:$0xf]
          %v6155 = vld [vmem:[#allocation18 + $0x78] sm:$0xf]
          %v6156 = vld [vmem:[#allocation18 + $0x7c] sm:$0xf]
          %v6157 = vld [vmem:[#allocation20] sm:$0x1]
          %v6159 = vlaneseq
          %v6160 = vshrl.u32 %v6159, 7
          %v6161 = vsub.s32 0, %v6160
          %v6162 = vrot.slane %v6157, %v6161
          %v6196 = vunpack.c.l.b16 %v6125
          %v6197 = vunpack.c.l.b16 %v6126
          %v6198 = vunpack.c.l.b16 %v6127
          %v6199 = vunpack.c.l.b16 %v6128
          %v6200 = vunpack.c.l.b16 %v6129
          %v6201 = vunpack.c.l.b16 %v6130
          %v6202 = vunpack.c.l.b16 %v6131
          %v6203 = vunpack.c.l.b16 %v6132
          %v6204 = vunpack.c.l.b16 %v6133
          %v6205 = vunpack.c.l.b16 %v6134
          %v6206 = vunpack.c.l.b16 %v6135
          %v6207 = vunpack.c.l.b16 %v6136
          %v6208 = vunpack.c.l.b16 %v6137
          %v6209 = vunpack.c.l.b16 %v6138
          %v6210 = vunpack.c.l.b16 %v6139
          %v6211 = vunpack.c.l.b16 %v6140
          %v6212 = vunpack.c.l.b16 %v6141
          %v6213 = vunpack.c.l.b16 %v6142
          %v6214 = vunpack.c.l.b16 %v6143
          %v6215 = vunpack.c.l.b16 %v6144
          %v6216 = vunpack.c.l.b16 %v6145
          %v6217 = vunpack.c.l.b16 %v6146
          %v6218 = vunpack.c.l.b16 %v6147
          %v6219 = vunpack.c.l.b16 %v6148
          %v6220 = vunpack.c.l.b16 %v6149
          %v6221 = vunpack.c.l.b16 %v6150
          %v6222 = vunpack.c.l.b16 %v6151
          %v6223 = vunpack.c.l.b16 %v6152
          %v6224 = vunpack.c.l.b16 %v6153
          %v6225 = vunpack.c.l.b16 %v6154
          %v6226 = vunpack.c.l.b16 %v6155
          %v6227 = vunpack.c.l.b16 %v6156
          %v6228 = vpack.c.b16 %v6197, %v6196
          %v6229 = vpack.c.b16 %v6199, %v6198
          %v6230 = vpack.c.b16 %v6201, %v6200
          %v6231 = vpack.c.b16 %v6203, %v6202
          %v6232 = vpack.c.b16 %v6205, %v6204
          %v6233 = vpack.c.b16 %v6207, %v6206
          %v6234 = vpack.c.b16 %v6209, %v6208
          %v6235 = vpack.c.b16 %v6211, %v6210
          %v6236 = vpack.c.b16 %v6213, %v6212
          %v6237 = vpack.c.b16 %v6215, %v6214
          %v6238 = vpack.c.b16 %v6217, %v6216
          %v6239 = vpack.c.b16 %v6219, %v6218
          %v6240 = vpack.c.b16 %v6221, %v6220
          %v6241 = vpack.c.b16 %v6223, %v6222
          %v6242 = vpack.c.b16 %v6225, %v6224
          %v6243 = vpack.c.b16 %v6227, %v6226
          %6260 = vmatprep.subr.bf16.mxu0 0
          %6261 = vmatpush1.bf16.msra.mxu0 %v6228
          %6262 = vmatprep.subr.bf16.mxu0 0
          %6263 = vmatpush1.bf16.msra.mxu0 %v6229
          %6264 = vmatprep.subr.bf16.mxu0 0
          %6265 = vmatpush1.bf16.msra.mxu0 %v6230
          %6266 = vmatprep.subr.bf16.mxu0 0
          %6267 = vmatpush1.bf16.msra.mxu0 %v6231
          %6268 = vmatprep.subr.bf16.mxu0 0
          %6269 = vmatpush1.bf16.msra.mxu0 %v6232
          %6270 = vmatprep.subr.bf16.mxu0 0
          %6271 = vmatpush1.bf16.msra.mxu0 %v6233
          %6272 = vmatprep.subr.bf16.mxu0 0
          %6273 = vmatpush1.bf16.msra.mxu0 %v6234
          %6274 = vmatprep.subr.bf16.mxu0 0
          %6275 = vmatpush1.bf16.msra.mxu0 %v6235
          %6276 = vmatprep.subr.bf16.mxu0 0
          %6277 = vmatpush1.bf16.msra.mxu0 %v6236
          %6278 = vmatprep.subr.bf16.mxu0 0
          %6279 = vmatpush1.bf16.msra.mxu0 %v6237
          %6280 = vmatprep.subr.bf16.mxu0 0
          %6281 = vmatpush1.bf16.msra.mxu0 %v6238
          %6282 = vmatprep.subr.bf16.mxu0 0
          %6283 = vmatpush1.bf16.msra.mxu0 %v6239
          %6284 = vmatprep.subr.bf16.mxu0 0
          %6285 = vmatpush1.bf16.msra.mxu0 %v6240
          %6286 = vmatprep.subr.bf16.mxu0 0
          %6287 = vmatpush1.bf16.msra.mxu0 %v6241
          %6288 = vmatprep.subr.bf16.mxu0 0
          %6289 = vmatpush1.bf16.msra.mxu0 %v6242
          %6290 = vmatprep.subr.bf16.mxu0 0
          %6291 = vmatpush1.bf16.msra.mxu0 %v6243
          %6292 = vmatprep.mubr.bf16.mxu0 %v6124
          %6293 = vmatmul.mubr.bf16.gmra.mrb[0].mxu0 %v6123
          %v6294 = vpop.f32.mrb[0].mxu0
          %v6295 = vadd.f32 %v6162, %v6294
          %v6296 = vpop.f32.mrb[0].mxu0
          %v6297 = vpop.f32.mrb[0].mxu0
          %v6298 = vpop.f32.mrb[0].mxu0
          %6299 = vdwg.mxu0
          %6300 = vst [vmem:[#allocation21] sm:$0x3] %v6295
        $region120: #{rot_red_forward.1} parent=67 // pred_fallthru
          _
        // Predicated region
        $region121: #{rot_red_forward.1} parent=67 // pred_check
          %p6301 = pneg %p314
        $region122: #{rot_red_forward.1} parent=67 // pred_check_branch
          %6303 = sbr.rel (%p6301) target = $region124
        $region123: #{rot_red_forward.1} parent=67 // pred_region
          %s6305 = ssub.s32 32, 32
          %6306 = vsyncadd [#allocation5], %s6305
          %s6308 = sshll.u32 [#allocation21], 4
          %s6309 = int_to_ptr.vmem [resolvable:$true] %s6308
          %6311 = dma.vmem_to_hbm [thread:$0]  %s6309, 32, %s12, [#allocation5]
        $region124: #{rot_red_forward.1} parent=67 // pred_fallthru
          _
        // Predicated region
        $region125: #{rot_red_forward.1} parent=67 // pred_check
          %p6312 = pneg %p314
        $region126: #{rot_red_forward.1} parent=67 // pred_check_branch
          %6314 = sbr.rel (%p6312) target = $region128
        $region127: #{rot_red_forward.1} parent=67 // pred_region
          %6315 = dma.done [#allocation5], 32
        $region128: #{rot_red_forward.1} parent=67 // pred_fallthru
          _
      $region68: #{rot_red_forward.1} parent=5 // pred_fallthru
        _
      %p6316 = scmp.le.s32.totalorder 2, %s25
      // Predicated region
      $region129: #{rot_red_forward.1} parent=5 // pred_check
        %p6317 = pneg %p6316
      $region130: #{rot_red_forward.1} parent=5 // pred_check_branch
        %6319 = sbr.rel (%p6317) target = $region132
      $region131: #{rot_red_forward.1} parent=5 // pred_region
        %s6320 = ssub.s32 %s25, 2
      $region132: #{rot_red_forward.1} parent=5 // pred_fallthru
        _
    $region6: #{rot_red_forward.1} parent=1 // loop_footer
      %s29 = sadd.s32 1, %s25
    $region7: #{rot_red_forward.1} parent=1 // loop_footer_branch
      %24 = sbr.rel target = $region3
    $region8: #{rot_red_forward.1} parent=1 // loop_exit
      _
    %6321 = vsyncpa [#allocation4], 1
    %s6322 = scalar_lea.sflag [#allocation4], 1
    %6323 = vsyncpa %s6322, 1
    %6324 = vsyncpa [#allocation7], 1
    %6325 = vsyncpa [#allocation10], 1
    %6326 = vsyncpa [#allocation13], 1
    %6327 = vsyncpa [#allocation16], 1
    %6328 = vsyncpa [#allocation19], 1
    %6329 = vsyncpa [#allocation5], 1
    %s6330 = scalar_lea.sflag [#allocation5], 1
    %6331 = vsyncpa %s6330, 1

</llo_original>
